<compile_context>
chip_gen: v6e
topology: v6e:2x2x1
jax: 0.10.0
libtpu: 0.0.40
codegen_flags: <defaults>
</compile_context>

<pallas_src>
import math
import functools

import jax
import jax.numpy as jnp
from jax.experimental import pallas as pl
from jax.experimental.pallas import tpu as pltpu


# ----------------------------------------------------------------------------
# small helpers
# ----------------------------------------------------------------------------
def _round_up(x, m):
    return -(-x // m) * m


def _pad_axis(x, axis, target):
    pad = target - x.shape[axis]
    if pad == 0:
        return x
    widths = [(0, 0)] * x.ndim
    widths[axis] = (0, pad)
    return jnp.pad(x, widths)


def _choose_kv_tile(max_seq, desired=512):
    """KV tile must divide max_seq (so tiles never DMA past the cache)."""
    if max_seq <= desired:
        return max_seq
    for t in (512, 256, 128):
        if t <= desired and max_seq % t == 0:
            return t
    # TODO(synk): max_seq_len not a multiple of 128 -> single tile over the cache.
    return max_seq


# ----------------------------------------------------------------------------
# Tiled matmul kernel (used for fused QKV projection and the output projection)
# ----------------------------------------------------------------------------
def _matmul_kernel(x_ref, w_ref, o_ref, acc_ref):
    @pl.when(pl.program_id(2) == 0)
    def _():
        acc_ref[...] = jnp.zeros_like(acc_ref)

    acc_ref[...] += jnp.dot(x_ref[...], w_ref[...],
                            preferred_element_type=jnp.float32)

    @pl.when(pl.program_id(2) == pl.num_programs(2) - 1)
    def _():
        o_ref[...] = acc_ref[...].astype(o_ref.dtype)


def pallas_matmul(x, w, *, tm=256, tn=256, tk=512):
    """x: (M, K), w: (K, N) -> (M, N), tiled with an f32 VMEM accumulator."""
    M, K = x.shape
    K2, N = w.shape
    assert K == K2
    bm, bn, bk = min(tm, M), min(tn, N), min(tk, K)
    Mp, Np, Kp = _round_up(M, bm), _round_up(N, bn), _round_up(K, bk)
    xp = _pad_axis(_pad_axis(x, 0, Mp), 1, Kp)
    wp = _pad_axis(_pad_axis(w, 0, Kp), 1, Np)

    out = pl.pallas_call(
        _matmul_kernel,
        out_shape=jax.ShapeDtypeStruct((Mp, Np), x.dtype),
        grid=(Mp // bm, Np // bn, Kp // bk),
        in_specs=[
            pl.BlockSpec((bm, bk), lambda i, j, k: (i, k)),
            pl.BlockSpec((bk, bn), lambda i, j, k: (k, j)),
        ],
        out_specs=pl.BlockSpec((bm, bn), lambda i, j, k: (i, j)),
        scratch_shapes=[pltpu.VMEM((bm, bn), jnp.float32)],
        compiler_params=pltpu.CompilerParams(
            dimension_semantics=("parallel", "parallel", "arbitrary")),
    )(xp, wp)
    if Mp != M or Np != N:
        out = out[:M, :N]
    return out


# ----------------------------------------------------------------------------
# In-place KV-cache write (aliased output -> no full-cache copy)
# ----------------------------------------------------------------------------
def _cache_write_kernel(new_ref, cache_in_ref, cache_out_ref):
    del cache_in_ref  # aliased with the output; untouched regions are preserved
    cache_out_ref[...] = new_ref[...]


def pallas_cache_update(cache, new, start_pos):
    """cache: (max_b, max_s, Hkv, D); new: (bsz, seqlen, Hkv, D); write at start_pos."""
    max_b, max_s, hkv, d = cache.shape
    bsz, seqlen = new.shape[0], new.shape[1]
    new = new.astype(cache.dtype)
    if start_pos % seqlen != 0:
        # TODO(synk): chunked prefill with unaligned start_pos falls back to XLA update.
        return jax.lax.dynamic_update_slice(cache, new, (0, start_pos, 0, 0))
    blk = start_pos // seqlen
    return pl.pallas_call(
        _cache_write_kernel,
        out_shape=jax.ShapeDtypeStruct(cache.shape, cache.dtype),
        grid=(bsz,),
        in_specs=[
            pl.BlockSpec((None, seqlen, hkv, d), lambda b: (b, 0, 0, 0)),
            pl.BlockSpec((None, seqlen, hkv, d), lambda b: (b, blk, 0, 0)),
        ],
        out_specs=pl.BlockSpec((None, seqlen, hkv, d), lambda b: (b, blk, 0, 0)),
        input_output_aliases={1: 0},
        compiler_params=pltpu.CompilerParams(dimension_semantics=("parallel",)),
    )(new, cache)


# ----------------------------------------------------------------------------
# Flash attention over the (un-repeated, GQA) KV cache
# ----------------------------------------------------------------------------
def _flash_attention_kernel(q_ref, k_ref, v_ref, mask_ref, o_ref,
                            m_ref, l_ref, acc_ref, *, scale, kv_len, kv_tile):
    # q_ref:(Sq, H, D)  k_ref/v_ref:(Tk, Hkv, D)  mask_ref:(Sq, Tk) or None
    # o_ref:(Sq, H, D)  scratch: m/l (H, Sq, 1), acc (H, Sq, D)  (all f32)
    n_heads = q_ref.shape[1]
    n_kv_heads = k_ref.shape[1]
    n_rep = n_heads // n_kv_heads

    ti = pl.program_id(2)

    @pl.when(ti == 0)
    def _init():
        m_ref[...] = jnp.full_like(m_ref, -1e30)   # finite -> no NaN on masked rows
        l_ref[...] = jnp.zeros_like(l_ref)
        acc_ref[...] = jnp.zeros_like(acc_ref)

    mask_tile = mask_ref[...].astype(jnp.float32) if mask_ref is not None else None

    # mask out the ragged tail of the last KV tile (cache positions >= kv_len)
    needs_col_mask = (kv_len % kv_tile) != 0
    if needs_col_mask:
        col = ti * kv_tile + jax.lax.broadcasted_iota(jnp.int32, (1, kv_tile), 1)
        col_ok = col < kv_len

    for g in range(n_kv_heads):
        kg = k_ref[:, g, :]                                   # (Tk, D)
        vg = v_ref[:, g, :]                                   # (Tk, D)
        for r in range(n_rep):
            h = g * n_rep + r
            qh = q_ref[:, h, :]                               # (Sq, D)
            s = jax.lax.dot_general(
                qh, kg, (((1,), (1,)), ((), ())),
                preferred_element_type=jnp.float32) * scale   # (Sq, Tk)
            if mask_tile is not None:
                s = s + mask_tile
            if needs_col_mask:
                s = jnp.where(col_ok, s, -jnp.inf)

            m_prev = m_ref[h]                                 # (Sq, 1)
            m_new = jnp.maximum(m_prev, jnp.max(s, axis=-1, keepdims=True))
            alpha = jnp.exp(m_prev - m_new)
            p = jnp.exp(s - m_new)                            # (Sq, Tk) f32
            l_ref[h] = alpha * l_ref[h] + jnp.sum(p, axis=-1, keepdims=True)
            acc_ref[h] = alpha * acc_ref[h] + jnp.dot(
                p.astype(vg.dtype), vg, preferred_element_type=jnp.float32)
            m_ref[h] = m_new

    @pl.when(ti == pl.num_programs(2) - 1)
    def _finalize():
        for h in range(n_heads):
            inv_l = pl.reciprocal(l_ref[h], approx=True)      # EUP, not VALU divide
            o_ref[:, h, :] = (acc_ref[h] * inv_l).astype(o_ref.dtype)


def pallas_flash_attention(xq, cache_k, cache_v, mask, *, kv_len, scale,
                           q_tile_desired=256, kv_tile_desired=512):
    """xq: (B, S, H, D); caches: (max_b, max_s, Hkv, D); mask: (S, kv_len) or None.
    Returns (B, S, H, D)."""
    bsz, seqlen, n_heads, head_dim = xq.shape
    max_b, max_seq, n_kv_heads, _ = cache_k.shape
    assert n_heads % n_kv_heads == 0
    assert kv_len <= max_seq

    kv_tile = _choose_kv_tile(max_seq, kv_tile_desired)
    n_kv_tiles = -(-kv_len // kv_tile)

    q_tile = seqlen if seqlen <= q_tile_desired else q_tile_desired
    s_pad = _round_up(seqlen, q_tile)
    n_q_tiles = s_pad // q_tile
    xq_p = _pad_axis(xq, 1, s_pad)

    has_mask = mask is not None
    args = [xq_p, cache_k, cache_v]
    in_specs = [
        pl.BlockSpec((None, q_tile, n_heads, head_dim),
                     lambda b, qi, ti: (b, qi, 0, 0)),
        pl.BlockSpec((None, kv_tile, n_kv_heads, head_dim),
                     lambda b, qi, ti: (b, ti, 0, 0)),
        pl.BlockSpec((None, kv_tile, n_kv_heads, head_dim),
                     lambda b, qi, ti: (b, ti, 0, 0)),
    ]

    kern = functools.partial(_flash_attention_kernel, scale=scale,
                             kv_len=kv_len, kv_tile=kv_tile)
    if has_mask:
        mask = jnp.asarray(mask, jnp.float32)
        mask = mask.reshape(mask.shape[-2], mask.shape[-1])
        assert mask.shape == (seqlen, kv_len)
        mask = _pad_axis(_pad_axis(mask, 0, s_pad), 1, n_kv_tiles * kv_tile)
        in_specs.append(pl.BlockSpec((q_tile, kv_tile),
                                     lambda b, qi, ti: (qi, ti)))
        args.append(mask)
        kernel = kern
    else:
        def kernel(q_ref, k_ref, v_ref, o_ref, m_ref, l_ref, acc_ref):
            kern(q_ref, k_ref, v_ref, None, o_ref, m_ref, l_ref, acc_ref)

    out = pl.pallas_call(
        kernel,
        out_shape=jax.ShapeDtypeStruct((bsz, s_pad, n_heads, head_dim), xq.dtype),
        grid=(bsz, n_q_tiles, n_kv_tiles),
        in_specs=in_specs,
        out_specs=pl.BlockSpec((None, q_tile, n_heads, head_dim),
                               lambda b, qi, ti: (b, qi, 0, 0)),
        scratch_shapes=[
            pltpu.VMEM((n_heads, q_tile, 1), jnp.float32),
            pltpu.VMEM((n_heads, q_tile, 1), jnp.float32),
            pltpu.VMEM((n_heads, q_tile, head_dim), jnp.float32),
        ],
        compiler_params=pltpu.CompilerParams(
            dimension_semantics=("parallel", "parallel", "arbitrary"),
            vmem_limit_bytes=48 * 1024 * 1024),
    )(*args)

    if s_pad != seqlen:
        out = out[:, :seqlen]
    return out


# ----------------------------------------------------------------------------
# Rotary embedding (interleaved real/imag pairs, matches torch view_as_complex)
# ----------------------------------------------------------------------------
def precompute_freqs(head_dim, end, theta=10000.0):
    freqs = 1.0 / (theta ** (jnp.arange(0, head_dim, 2)[: head_dim // 2]
                             .astype(jnp.float32) / head_dim))
    t = jnp.arange(end, dtype=jnp.float32)
    freqs = jnp.outer(t, freqs)                 # (end, head_dim // 2)
    return jnp.cos(freqs), jnp.sin(freqs)


def apply_rotary_emb(xq, xk, freqs_cos, freqs_sin):
    def rot(x):
        b, s, h, d = x.shape
        xr = x.astype(jnp.float32).reshape(b, s, h, d // 2, 2)
        xe, xo = xr[..., 0], xr[..., 1]
        fc = freqs_cos[None, :, None, :]
        fs = freqs_sin[None, :, None, :]
        oe = xe * fc - xo * fs
        oo = xe * fs + xo * fc
        return jnp.stack([oe, oo], axis=-1).reshape(b, s, h, d).astype(x.dtype)
    return rot(xq), rot(xk)


def repeat_kv(x, n_rep):  # reference-path only
    return x if n_rep == 1 else jnp.repeat(x, n_rep, axis=2)


# ----------------------------------------------------------------------------
# Forward pass (Pallas path)
# ----------------------------------------------------------------------------
def adaptive_cache_attention_forward(params, cache_k, cache_v, x,
                                     freqs_cos, freqs_sin, mask, *,
                                     start_pos, n_heads, n_kv_heads):
    bsz, seqlen, dim = x.shape
    head_dim = dim // n_heads
    q_out = n_heads * head_dim
    kv_out = n_kv_heads * head_dim

    # Fused QKV projection: one tiled matmul over a pre-concatenated weight.
    qkv = pallas_matmul(x.reshape(bsz * seqlen, dim), params["wqkv"])
    xq = qkv[:, :q_out].reshape(bsz, seqlen, n_heads, head_dim)
    xk = qkv[:, q_out:q_out + kv_out].reshape(bsz, seqlen, n_kv_heads, head_dim)
    xv = qkv[:, q_out + kv_out:].reshape(bsz, seqlen, n_kv_heads, head_dim)

    xq, xk = apply_rotary_emb(xq, xk, freqs_cos, freqs_sin)

    # In-place (aliased) cache writes at start_pos.
    cache_k = pallas_cache_update(cache_k, xk, start_pos)
    cache_v = pallas_cache_update(cache_v, xv, start_pos)

    kv_len = start_pos + seqlen
    attn = pallas_flash_attention(
        xq, cache_k, cache_v, mask,
        kv_len=kv_len, scale=1.0 / math.sqrt(head_dim))          # (B, S, H, D)

    # (B, S, H, D) -> (B*S, H*D) is a contiguous (free) reshape.
    out = pallas_matmul(attn.reshape(bsz * seqlen, n_heads * head_dim),
                        params["wo"])
    return out.reshape(bsz, seqlen, dim), cache_k, cache_v


# ----------------------------------------------------------------------------
# Pure-JAX reference (same math, no Pallas) for correctness checking
# ----------------------------------------------------------------------------
def reference_forward(params, cache_k, cache_v, x, freqs_cos, freqs_sin, mask, *,
                      start_pos, n_heads, n_kv_heads):
    bsz, seqlen, dim = x.shape
    head_dim = dim // n_heads
    n_rep = n_heads // n_kv_heads
    xq = (x @ params["wq"]).reshape(bsz, seqlen, n_heads, head_dim)
    xk = (x @ params["wk"]).reshape(bsz, seqlen, n_kv_heads, head_dim)
    xv = (x @ params["wv"]).reshape(bsz, seqlen, n_kv_heads, head_dim)
    xq, xk = apply_rotary_emb(xq, xk, freqs_cos, freqs_sin)
    cache_k = jax.lax.dynamic_update_slice(cache_k, xk, (0, start_pos, 0, 0))
    cache_v = jax.lax.dynamic_update_slice(cache_v, xv, (0, start_pos, 0, 0))
    T = start_pos + seqlen
    keys = repeat_kv(cache_k[:bsz, :T], n_rep)
    values = repeat_kv(cache_v[:bsz, :T], n_rep)
    q = jnp.transpose(xq, (0, 2, 1, 3))
    k = jnp.transpose(keys, (0, 2, 1, 3))
    v = jnp.transpose(values, (0, 2, 1, 3))
    scores = jnp.einsum("bhsd,bhtd->bhst", q, k) / math.sqrt(head_dim)
    if mask is not None:
        scores = scores + mask[None, None]
    probs = jax.nn.softmax(scores.astype(jnp.float32), axis=-1)
    out = jnp.einsum("bhst,bhtd->bhsd", probs, v)
    out = jnp.transpose(out, (0, 2, 1, 3)).reshape(bsz, seqlen, -1)
    return out @ params["wo"], cache_k, cache_v


# ----------------------------------------------------------------------------
if __name__ == "__main__":
    # Small ModelArgs-like config: dim=32, n_heads=4, n_kv_heads=2 (GQA n_rep=2)
    dim, n_heads, n_kv_heads = 32, 4, 2
    head_dim = dim // n_heads
    max_batch, max_seq = 2, 16
    bsz = 2

    key = jax.random.PRNGKey(0)
    k1, k2, k3, k4, kx1, kx2 = jax.random.split(key, 6)
    wscale = 1.0 / math.sqrt(dim)
    wq = jax.random.normal(k1, (dim, n_heads * head_dim), jnp.float32) * wscale
    wk = jax.random.normal(k2, (dim, n_kv_heads * head_dim), jnp.float32) * wscale
    wv = jax.random.normal(k3, (dim, n_kv_heads * head_dim), jnp.float32) * wscale
    wo = jax.random.normal(k4, (n_heads * head_dim, dim), jnp.float32) * wscale
    ref_params = {"wq": wq, "wk": wk, "wv": wv, "wo": wo}
    params = {"wqkv": jnp.concatenate([wq, wk, wv], axis=1), "wo": wo}

    cos_all, sin_all = precompute_freqs(head_dim, max_seq)

    fwd = jax.jit(
        functools.partial(adaptive_cache_attention_forward,
                          n_heads=n_heads, n_kv_heads=n_kv_heads),
        static_argnames=("start_pos",),
        donate_argnums=(1, 2),          # caches updated in place
    )

    # ---------------- step 1: prefill (seqlen=8, start_pos=0, causal mask) ----
    seqlen1, start_pos1 = 8, 0
    x1 = jax.random.normal(kx1, (bsz, seqlen1, dim), jnp.float32)
    fc1 = cos_all[start_pos1:start_pos1 + seqlen1]
    fs1 = sin_all[start_pos1:start_pos1 + seqlen1]
    causal = jnp.triu(jnp.full((seqlen1, seqlen1), -jnp.inf, jnp.float32), k=1)
    mask1 = jnp.concatenate(
        [jnp.zeros((seqlen1, start_pos1), jnp.float32), causal], axis=1)

    # pure-JAX reference (computed first; pallas path donates its own caches)
    rck = jnp.zeros((max_batch, max_seq, n_kv_heads, head_dim), jnp.float32)
    rcv = jnp.zeros_like(rck)
    ref1, rck, rcv = reference_forward(ref_params, rck, rcv, x1, fc1, fs1, mask1,
                                       start_pos=start_pos1,
                                       n_heads=n_heads, n_kv_heads=n_kv_heads)

    ck = jnp.zeros((max_batch, max_seq, n_kv_heads, head_dim), jnp.float32)
    cv = jnp.zeros_like(ck)
    out1, ck, cv = fwd(params, ck, cv, x1, fc1, fs1, mask1, start_pos=start_pos1)
    out1 = jax.block_until_ready(out1)
    assert out1.shape == (bsz, seqlen1, dim)
    # tolerance accounts for the approximate (EUP) reciprocal in the softmax
    assert jnp.allclose(out1, ref1, atol=1e-2, rtol=1e-2), "prefill mismatch"

    # ---------------- step 2: decode (seqlen=1, start_pos=8, mask=None) -------
    seqlen2, start_pos2 = 1, 8
    x2 = jax.random.normal(kx2, (bsz, seqlen2, dim), jnp.float32)
    fc2 = cos_all[start_pos2:start_pos2 + seqlen2]
    fs2 = sin_all[start_pos2:start_pos2 + seqlen2]

    ref2, rck, rcv = reference_forward(ref_params, rck, rcv, x2, fc2, fs2, None,
                                       start_pos=start_pos2,
                                       n_heads=n_heads, n_kv_heads=n_kv_heads)

    out2, ck, cv = fwd(params, ck, cv, x2, fc2, fs2, None, start_pos=start_pos2)
    out2 = jax.block_until_ready(out2)
    assert out2.shape == (bsz, seqlen2, dim)
    assert jnp.allclose(out2, ref2, atol=1e-2, rtol=1e-2), "decode mismatch"

    T = start_pos2 + seqlen2
    assert jnp.allclose(ck[:bsz, :T], rck[:bsz, :T], atol=1e-3, rtol=1e-3), \
        "kv cache mismatch"

    print("KERNEL_OK")
</pallas_src>

<mosaic_0001>
module attributes {stable_mosaic.version = 11 : i64} {
  func.func @_matmul_kernel(%arg0: i32, %arg1: i32, %arg2: i32, %arg3: memref<16x32xf32, #tpu.memory_space<vmem>>, %arg4: memref<32x64xf32, #tpu.memory_space<vmem>>, %arg5: memref<16x64xf32, #tpu.memory_space<vmem>>, %arg6: memref<16x64xf32, #tpu.memory_space<vmem>>) attributes {dimension_semantics = [#tpu.dimension_semantics<parallel>, #tpu.dimension_semantics<parallel>, #tpu.dimension_semantics<arbitrary>], iteration_bounds = array<i64: 1, 1, 1>, scalar_prefetch = 0 : i64, scratch_operands = 1 : i64, tpu.core_type = #tpu.core_type<tc>, window_params = [{transform_indices = @transform_0, window_bounds = array<i64: 16, 32>}, {transform_indices = @transform_1, window_bounds = array<i64: 32, 64>}, {transform_indices = @transform_2, window_bounds = array<i64: 16, 64>}]} {
    %c0_i32 = arith.constant 0 : i32
    %0 = arith.cmpi eq, %arg2, %c0_i32 : i32
    %1 = arith.extui %0 : i1 to i32
    %c0_i32_0 = arith.constant 0 : i32
    %2 = arith.cmpi ne, %1, %c0_i32_0 : i32
    scf.if %2 {
      %cst_10 = arith.constant 0.000000e+00 : f32
      %12 = vector.broadcast %cst_10 : f32 to vector<16x64xf32>
      %c0_11 = arith.constant 0 : index
      %c0_12 = arith.constant 0 : index
      %13 = vector.load %arg6[%c0_11, %c0_12] : memref<16x64xf32, #tpu.memory_space<vmem>>, vector<16x64xf32>
      tpu.vector_store %arg6[%c0_11, %c0_12], %12 {strides = array<i32>} : memref<16x64xf32, #tpu.memory_space<vmem>>, vector<16x64xf32>,
    } else {
    }
    %c0 = arith.constant 0 : index
    %c0_1 = arith.constant 0 : index
    %3 = vector.load %arg6[%c0, %c0_1] : memref<16x64xf32, #tpu.memory_space<vmem>>, vector<16x64xf32>
    %c0_2 = arith.constant 0 : index
    %c0_3 = arith.constant 0 : index
    %4 = vector.load %arg3[%c0_2, %c0_3] : memref<16x32xf32, #tpu.memory_space<vmem>>, vector<16x32xf32>
    %c0_4 = arith.constant 0 : index
    %c0_5 = arith.constant 0 : index
    %5 = vector.load %arg4[%c0_4, %c0_5] : memref<32x64xf32, #tpu.memory_space<vmem>>, vector<32x64xf32>
    %cst = arith.constant dense<0.000000e+00> : vector<16x64xf32>
    %6 = tpu.matmul %4, %5, %cst {dimension_numbers = #tpu.dot_dimension_numbers<[1], [0], [0], [1], [0, 0, 1, 1], [], []>} : vector<16x32xf32>, vector<32x64xf32>, vector<16x64xf32> -> vector<16x64xf32>
    %7 = arith.addf %3, %6 : vector<16x64xf32>
    %c0_6 = arith.constant 0 : index
    %c0_7 = arith.constant 0 : index
    %8 = vector.load %arg6[%c0_6, %c0_7] : memref<16x64xf32, #tpu.memory_space<vmem>>, vector<16x64xf32>
    tpu.vector_store %arg6[%c0_6, %c0_7], %7 {strides = array<i32>} : memref<16x64xf32, #tpu.memory_space<vmem>>, vector<16x64xf32>,
    %c0_i32_8 = arith.constant 0 : i32
    %9 = arith.cmpi eq, %arg2, %c0_i32_8 : i32
    %10 = arith.extui %9 : i1 to i32
    %c0_i32_9 = arith.constant 0 : i32
    %11 = arith.cmpi ne, %10, %c0_i32_9 : i32
    scf.if %11 {
      %c0_10 = arith.constant 0 : index
      %c0_11 = arith.constant 0 : index
      %12 = vector.load %arg6[%c0_10, %c0_11] : memref<16x64xf32, #tpu.memory_space<vmem>>, vector<16x64xf32>
      %c0_12 = arith.constant 0 : index
      %c0_13 = arith.constant 0 : index
      %13 = vector.load %arg5[%c0_12, %c0_13] : memref<16x64xf32, #tpu.memory_space<vmem>>, vector<16x64xf32>
      tpu.vector_store %arg5[%c0_12, %c0_13], %12 {strides = array<i32>} : memref<16x64xf32, #tpu.memory_space<vmem>>, vector<16x64xf32>,
    } else {
    }
    return
  }
  func.func @transform_0(%arg0: i32, %arg1: i32, %arg2: i32) -> (i32, i32) {
    %c0_i32 = arith.constant 0 : i32
    return %arg0, %arg2 : i32, i32
  }
  func.func @transform_1(%arg0: i32, %arg1: i32, %arg2: i32) -> (i32, i32) {
    %c0_i32 = arith.constant 0 : i32
    return %arg2, %arg1 : i32, i32
  }
  func.func @transform_2(%arg0: i32, %arg1: i32, %arg2: i32) -> (i32, i32) {
    %c0_i32 = arith.constant 0 : i32
    return %arg0, %arg1 : i32, i32
  }
}

module attributes {stable_mosaic.version = 11 : i64} {
  func.func @_cache_write_kernel(%arg0: i32, %arg1: memref<1x8x2x8xf32, #tpu.memory_space<vmem>>, %arg2: memref<1x8x2x8xf32, #tpu.memory_space<vmem>>, %arg3: memref<1x8x2x8xf32, #tpu.memory_space<vmem>>) attributes {dimension_semantics = [#tpu.dimension_semantics<parallel>], iteration_bounds = array<i64: 2>, scalar_prefetch = 0 : i64, scratch_operands = 0 : i64, tpu.core_type = #tpu.core_type<tc>, window_params = [{transform_indices = @transform_0, window_bounds = array<i64: 1, 8, 2, 8>}, {transform_indices = @transform_1, window_bounds = array<i64: 1, 8, 2, 8>}, {transform_indices = @transform_2, window_bounds = array<i64: 1, 8, 2, 8>}]} {
    %c0 = arith.constant 0 : index
    %c0_0 = arith.constant 0 : index
    %c0_1 = arith.constant 0 : index
    %c0_2 = arith.constant 0 : index
    %0 = vector.load %arg1[%c0, %c0_0, %c0_1, %c0_2] : memref<1x8x2x8xf32, #tpu.memory_space<vmem>>, vector<1x8x2x8xf32>
    %1 = vector.shape_cast %0 : vector<1x8x2x8xf32> to vector<8x2x8xf32>
    %c0_3 = arith.constant 0 : index
    %c0_4 = arith.constant 0 : index
    %c0_5 = arith.constant 0 : index
    %c0_6 = arith.constant 0 : index
    %2 = vector.load %arg3[%c0_3, %c0_4, %c0_5, %c0_6] : memref<1x8x2x8xf32, #tpu.memory_space<vmem>>, vector<1x8x2x8xf32>
    %3 = vector.shape_cast %2 : vector<1x8x2x8xf32> to vector<8x2x8xf32>
    %4 = vector.shape_cast %1 : vector<8x2x8xf32> to vector<1x8x2x8xf32>
    tpu.vector_store %arg3[%c0_3, %c0_4, %c0_5, %c0_6], %4 {strides = array<i32>} : memref<1x8x2x8xf32, #tpu.memory_space<vmem>>, vector<1x8x2x8xf32>,
    return
  }
  func.func @transform_0(%arg0: i32) -> (i32, i32, i32, i32) {
    %c0_i32 = arith.constant 0 : i32
    %c0_i32_0 = arith.constant 0 : i32
    %c0_i32_1 = arith.constant 0 : i32
    %c0_i32_2 = arith.constant 0 : i32
    return %arg0, %c0_i32, %c0_i32_0, %c0_i32_1 : i32, i32, i32, i32
  }
  func.func @transform_1(%arg0: i32) -> (i32, i32, i32, i32) {
    %c0_i32 = arith.constant 0 : i32
    %c0_i32_0 = arith.constant 0 : i32
    %c0_i32_1 = arith.constant 0 : i32
    %c0_i32_2 = arith.constant 0 : i32
    return %arg0, %c0_i32, %c0_i32_0, %c0_i32_1 : i32, i32, i32, i32
  }
  func.func @transform_2(%arg0: i32) -> (i32, i32, i32, i32) {
    %c0_i32 = arith.constant 0 : i32
    %c0_i32_0 = arith.constant 0 : i32
    %c0_i32_1 = arith.constant 0 : i32
    %c0_i32_2 = arith.constant 0 : i32
    return %arg0, %c0_i32, %c0_i32_0, %c0_i32_1 : i32, i32, i32, i32
  }
}

module attributes {stable_mosaic.version = 11 : i64} {
  func.func @_matmul_kernel(%arg0: i32, %arg1: i32, %arg2: i32, %arg3: memref<16x32xf32, #tpu.memory_space<vmem>>, %arg4: memref<32x32xf32, #tpu.memory_space<vmem>>, %arg5: memref<16x32xf32, #tpu.memory_space<vmem>>, %arg6: memref<16x32xf32, #tpu.memory_space<vmem>>) attributes {dimension_semantics = [#tpu.dimension_semantics<parallel>, #tpu.dimension_semantics<parallel>, #tpu.dimension_semantics<arbitrary>], iteration_bounds = array<i64: 1, 1, 1>, scalar_prefetch = 0 : i64, scratch_operands = 1 : i64, tpu.core_type = #tpu.core_type<tc>, window_params = [{transform_indices = @transform_0, window_bounds = array<i64: 16, 32>}, {transform_indices = @transform_1, window_bounds = array<i64: 32, 32>}, {transform_indices = @transform_2, window_bounds = array<i64: 16, 32>}]} {
    %c0_i32 = arith.constant 0 : i32
    %0 = arith.cmpi eq, %arg2, %c0_i32 : i32
    %1 = arith.extui %0 : i1 to i32
    %c0_i32_0 = arith.constant 0 : i32
    %2 = arith.cmpi ne, %1, %c0_i32_0 : i32
    scf.if %2 {
      %cst_10 = arith.constant 0.000000e+00 : f32
      %12 = vector.broadcast %cst_10 : f32 to vector<16x32xf32>
      %c0_11 = arith.constant 0 : index
      %c0_12 = arith.constant 0 : index
      %13 = vector.load %arg6[%c0_11, %c0_12] : memref<16x32xf32, #tpu.memory_space<vmem>>, vector<16x32xf32>
      tpu.vector_store %arg6[%c0_11, %c0_12], %12 {strides = array<i32>} : memref<16x32xf32, #tpu.memory_space<vmem>>, vector<16x32xf32>,
    } else {
    }
    %c0 = arith.constant 0 : index
    %c0_1 = arith.constant 0 : index
    %3 = vector.load %arg6[%c0, %c0_1] : memref<16x32xf32, #tpu.memory_space<vmem>>, vector<16x32xf32>
    %c0_2 = arith.constant 0 : index
    %c0_3 = arith.constant 0 : index
    %4 = vector.load %arg3[%c0_2, %c0_3] : memref<16x32xf32, #tpu.memory_space<vmem>>, vector<16x32xf32>
    %c0_4 = arith.constant 0 : index
    %c0_5 = arith.constant 0 : index
    %5 = vector.load %arg4[%c0_4, %c0_5] : memref<32x32xf32, #tpu.memory_space<vmem>>, vector<32x32xf32>
    %cst = arith.constant dense<0.000000e+00> : vector<16x32xf32>
    %6 = tpu.matmul %4, %5, %cst {dimension_numbers = #tpu.dot_dimension_numbers<[1], [0], [0], [1], [0, 0, 1, 1], [], []>} : vector<16x32xf32>, vector<32x32xf32>, vector<16x32xf32> -> vector<16x32xf32>
    %7 = arith.addf %3, %6 : vector<16x32xf32>
    %c0_6 = arith.constant 0 : index
    %c0_7 = arith.constant 0 : index
    %8 = vector.load %arg6[%c0_6, %c0_7] : memref<16x32xf32, #tpu.memory_space<vmem>>, vector<16x32xf32>
    tpu.vector_store %arg6[%c0_6, %c0_7], %7 {strides = array<i32>} : memref<16x32xf32, #tpu.memory_space<vmem>>, vector<16x32xf32>,
    %c0_i32_8 = arith.constant 0 : i32
    %9 = arith.cmpi eq, %arg2, %c0_i32_8 : i32
    %10 = arith.extui %9 : i1 to i32
    %c0_i32_9 = arith.constant 0 : i32
    %11 = arith.cmpi ne, %10, %c0_i32_9 : i32
    scf.if %11 {
      %c0_10 = arith.constant 0 : index
      %c0_11 = arith.constant 0 : index
      %12 = vector.load %arg6[%c0_10, %c0_11] : memref<16x32xf32, #tpu.memory_space<vmem>>, vector<16x32xf32>
      %c0_12 = arith.constant 0 : index
      %c0_13 = arith.constant 0 : index
      %13 = vector.load %arg5[%c0_12, %c0_13] : memref<16x32xf32, #tpu.memory_space<vmem>>, vector<16x32xf32>
      tpu.vector_store %arg5[%c0_12, %c0_13], %12 {strides = array<i32>} : memref<16x32xf32, #tpu.memory_space<vmem>>, vector<16x32xf32>,
    } else {
    }
    return
  }
  func.func @transform_0(%arg0: i32, %arg1: i32, %arg2: i32) -> (i32, i32) {
    %c0_i32 = arith.constant 0 : i32
    return %arg0, %arg2 : i32, i32
  }
  func.func @transform_1(%arg0: i32, %arg1: i32, %arg2: i32) -> (i32, i32) {
    %c0_i32 = arith.constant 0 : i32
    return %arg2, %arg1 : i32, i32
  }
  func.func @transform_2(%arg0: i32, %arg1: i32, %arg2: i32) -> (i32, i32) {
    %c0_i32 = arith.constant 0 : i32
    return %arg0, %arg1 : i32, i32
  }
}

module attributes {stable_mosaic.version = 11 : i64} {
  func.func @_flash_attention_kernel(%arg0: i32, %arg1: i32, %arg2: i32, %arg3: memref<1x8x4x8xf32, #tpu.memory_space<vmem>>, %arg4: memref<1x16x2x8xf32, #tpu.memory_space<vmem>>, %arg5: memref<1x16x2x8xf32, #tpu.memory_space<vmem>>, %arg6: memref<8x16xf32, #tpu.memory_space<vmem>>, %arg7: memref<1x8x4x8xf32, #tpu.memory_space<vmem>>, %arg8: memref<4x8x1xf32, #tpu.memory_space<vmem>>, %arg9: memref<4x8x1xf32, #tpu.memory_space<vmem>>, %arg10: memref<4x8x8xf32, #tpu.memory_space<vmem>>) attributes {dimension_semantics = [#tpu.dimension_semantics<parallel>, #tpu.dimension_semantics<parallel>, #tpu.dimension_semantics<arbitrary>], iteration_bounds = array<i64: 2, 1, 1>, scalar_prefetch = 0 : i64, scratch_operands = 3 : i64, tpu.core_type = #tpu.core_type<tc>, window_params = [{transform_indices = @transform_0, window_bounds = array<i64: 1, 8, 4, 8>}, {transform_indices = @transform_1, window_bounds = array<i64: 1, 16, 2, 8>}, {transform_indices = @transform_2, window_bounds = array<i64: 1, 16, 2, 8>}, {transform_indices = @transform_3, window_bounds = array<i64: 8, 16>}, {transform_indices = @transform_4, window_bounds = array<i64: 1, 8, 4, 8>}]} {
    %c0_i32 = arith.constant 0 : i32
    %0 = arith.cmpi eq, %arg2, %c0_i32 : i32
    %1 = arith.extui %0 : i1 to i32
    %c0_i32_0 = arith.constant 0 : i32
    %2 = arith.cmpi ne, %1, %c0_i32_0 : i32
    scf.if %2 {
      %cst_128 = arith.constant -1.000000e+30 : f32
      %185 = vector.broadcast %cst_128 : f32 to vector<4x8x1xf32>
      %c0_129 = arith.constant 0 : index
      %c0_130 = arith.constant 0 : index
      %c0_131 = arith.constant 0 : index
      %186 = vector.load %arg8[%c0_129, %c0_130, %c0_131] : memref<4x8x1xf32, #tpu.memory_space<vmem>>, vector<4x8x1xf32>
      tpu.vector_store %arg8[%c0_129, %c0_130, %c0_131], %185 {strides = array<i32>} : memref<4x8x1xf32, #tpu.memory_space<vmem>>, vector<4x8x1xf32>,
      %cst_132 = arith.constant 0.000000e+00 : f32
      %187 = vector.broadcast %cst_132 : f32 to vector<4x8x1xf32>
      %c0_133 = arith.constant 0 : index
      %c0_134 = arith.constant 0 : index
      %c0_135 = arith.constant 0 : index
      %188 = vector.load %arg9[%c0_133, %c0_134, %c0_135] : memref<4x8x1xf32, #tpu.memory_space<vmem>>, vector<4x8x1xf32>
      tpu.vector_store %arg9[%c0_133, %c0_134, %c0_135], %187 {strides = array<i32>} : memref<4x8x1xf32, #tpu.memory_space<vmem>>, vector<4x8x1xf32>,
      %cst_136 = arith.constant 0.000000e+00 : f32
      %189 = vector.broadcast %cst_136 : f32 to vector<4x8x8xf32>
      %c0_137 = arith.constant 0 : index
      %c0_138 = arith.constant 0 : index
      %c0_139 = arith.constant 0 : index
      %190 = vector.load %arg10[%c0_137, %c0_138, %c0_139] : memref<4x8x8xf32, #tpu.memory_space<vmem>>, vector<4x8x8xf32>
      tpu.vector_store %arg10[%c0_137, %c0_138, %c0_139], %189 {strides = array<i32>} : memref<4x8x8xf32, #tpu.memory_space<vmem>>, vector<4x8x8xf32>,
    } else {
    }
    %c0 = arith.constant 0 : index
    %c0_1 = arith.constant 0 : index
    %3 = vector.load %arg6[%c0, %c0_1] : memref<8x16xf32, #tpu.memory_space<vmem>>, vector<8x16xf32>
    %c16_i32 = arith.constant 16 : i32
    %4 = arith.muli %arg2, %c16_i32 : i32
    %5 = tpu.iota {dimensions = array<i32: 1>} : vector<1x16xi32>
    %6 = vector.broadcast %4 : i32 to vector<1x16xi32>
    %7 = arith.addi %6, %5 : vector<1x16xi32>
    %c8_i32 = arith.constant 8 : i32
    %8 = vector.broadcast %c8_i32 : i32 to vector<1x16xi32>
    %9 = arith.cmpi slt, %7, %8 : vector<1x16xi32>
    %c0_2 = arith.constant 0 : index
    %c0_3 = arith.constant 0 : index
    %c0_4 = arith.constant 0 : index
    %c0_5 = arith.constant 0 : index
    %10 = vector.load %arg4[%c0_2, %c0_3, %c0_4, %c0_5] : memref<1x16x2x8xf32, #tpu.memory_space<vmem>>, vector<1x16x1x8xf32>
    %11 = vector.shape_cast %10 : vector<1x16x1x8xf32> to vector<16x8xf32>
    %c0_6 = arith.constant 0 : index
    %c0_7 = arith.constant 0 : index
    %c0_8 = arith.constant 0 : index
    %c0_9 = arith.constant 0 : index
    %12 = vector.load %arg5[%c0_6, %c0_7, %c0_8, %c0_9] : memref<1x16x2x8xf32, #tpu.memory_space<vmem>>, vector<1x16x1x8xf32>
    %13 = vector.shape_cast %12 : vector<1x16x1x8xf32> to vector<16x8xf32>
    %c0_10 = arith.constant 0 : index
    %c0_11 = arith.constant 0 : index
    %c0_12 = arith.constant 0 : index
    %c0_13 = arith.constant 0 : index
    %14 = vector.load %arg3[%c0_10, %c0_11, %c0_12, %c0_13] : memref<1x8x4x8xf32, #tpu.memory_space<vmem>>, vector<1x8x1x8xf32>
    %15 = vector.shape_cast %14 : vector<1x8x1x8xf32> to vector<8x8xf32>
    %cst = arith.constant dense<0.000000e+00> : vector<8x16xf32>
    %16 = tpu.matmul %15, %11, %cst {dimension_numbers = #tpu.dot_dimension_numbers<[1], [1], [0], [0], [0, 0, 1, 0], [], []>} : vector<8x8xf32>, vector<16x8xf32>, vector<8x16xf32> -> vector<8x16xf32>
    %cst_14 = arith.constant 0.353553385 : f32
    %17 = vector.broadcast %cst_14 : f32 to vector<8x16xf32>
    %18 = arith.mulf %16, %17 : vector<8x16xf32>
    %19 = arith.addf %18, %3 : vector<8x16xf32>
    %cst_15 = arith.constant 0xFF800000 : f32
    %20 = vector.shape_cast %9 : vector<1x16xi1> to vector<1x16xi1>
    %21 = vector.broadcast %20 : vector<1x16xi1> to vector<8x16xi1>
    %22 = vector.broadcast %cst_15 : f32 to vector<8x16xf32>
    %23 = arith.select %21, %19, %22 : vector<8x16xi1>, vector<8x16xf32>
    %c0_16 = arith.constant 0 : index
    %c0_17 = arith.constant 0 : index
    %c0_18 = arith.constant 0 : index
    %24 = vector.load %arg8[%c0_16, %c0_17, %c0_18] : memref<4x8x1xf32, #tpu.memory_space<vmem>>, vector<1x8x1xf32>
    %25 = vector.shape_cast %24 : vector<1x8x1xf32> to vector<8x1xf32>
    %cst_19 = arith.constant dense<0xFF800000> : vector<8xf32>
    %26 = vector.multi_reduction <maximumf>, %23, %cst_19 [1] : vector<8x16xf32> to vector<8xf32>
    %27 = vector.shape_cast %26 : vector<8xf32> to vector<8x1xf32>
    %28 = arith.maximumf %25, %27 : vector<8x1xf32>
    %29 = arith.subf %25, %28 : vector<8x1xf32>
    %30 = math.exp %29 : vector<8x1xf32>
    %31 = vector.broadcast %28 : vector<8x1xf32> to vector<8x16xf32>
    %32 = arith.subf %23, %31 : vector<8x16xf32>
    %33 = math.exp %32 : vector<8x16xf32>
    %c0_20 = arith.constant 0 : index
    %c0_21 = arith.constant 0 : index
    %c0_22 = arith.constant 0 : index
    %34 = vector.load %arg9[%c0_20, %c0_21, %c0_22] : memref<4x8x1xf32, #tpu.memory_space<vmem>>, vector<1x8x1xf32>
    %35 = vector.shape_cast %34 : vector<1x8x1xf32> to vector<8x1xf32>
    %36 = arith.mulf %30, %35 : vector<8x1xf32>
    %cst_23 = arith.constant dense<0.000000e+00> : vector<8xf32>
    %37 = vector.multi_reduction <add>, %33, %cst_23 [1] : vector<8x16xf32> to vector<8xf32>
    %38 = vector.shape_cast %37 : vector<8xf32> to vector<8x1xf32>
    %39 = arith.addf %36, %38 : vector<8x1xf32>
    %c0_24 = arith.constant 0 : index
    %c0_25 = arith.constant 0 : index
    %c0_26 = arith.constant 0 : index
    %40 = vector.load %arg9[%c0_24, %c0_25, %c0_26] : memref<4x8x1xf32, #tpu.memory_space<vmem>>, vector<1x8x1xf32>
    %41 = vector.shape_cast %40 : vector<1x8x1xf32> to vector<8x1xf32>
    %42 = vector.shape_cast %39 : vector<8x1xf32> to vector<1x8x1xf32>
    tpu.vector_store %arg9[%c0_24, %c0_25, %c0_26], %42 {strides = array<i32>} : memref<4x8x1xf32, #tpu.memory_space<vmem>>, vector<1x8x1xf32>,
    %c0_27 = arith.constant 0 : index
    %c0_28 = arith.constant 0 : index
    %c0_29 = arith.constant 0 : index
    %43 = vector.load %arg10[%c0_27, %c0_28, %c0_29] : memref<4x8x8xf32, #tpu.memory_space<vmem>>, vector<1x8x8xf32>
    %44 = vector.shape_cast %43 : vector<1x8x8xf32> to vector<8x8xf32>
    %45 = vector.broadcast %30 : vector<8x1xf32> to vector<8x8xf32>
    %46 = arith.mulf %45, %44 : vector<8x8xf32>
    %cst_30 = arith.constant dense<0.000000e+00> : vector<8x8xf32>
    %47 = tpu.matmul %33, %13, %cst_30 {dimension_numbers = #tpu.dot_dimension_numbers<[1], [0], [0], [1], [0, 0, 1, 1], [], []>} : vector<8x16xf32>, vector<16x8xf32>, vector<8x8xf32> -> vector<8x8xf32>
    %48 = arith.addf %46, %47 : vector<8x8xf32>
    %c0_31 = arith.constant 0 : index
    %c0_32 = arith.constant 0 : index
    %c0_33 = arith.constant 0 : index
    %49 = vector.load %arg10[%c0_31, %c0_32, %c0_33] : memref<4x8x8xf32, #tpu.memory_space<vmem>>, vector<1x8x8xf32>
    %50 = vector.shape_cast %49 : vector<1x8x8xf32> to vector<8x8xf32>
    %51 = vector.shape_cast %48 : vector<8x8xf32> to vector<1x8x8xf32>
    tpu.vector_store %arg10[%c0_31, %c0_32, %c0_33], %51 {strides = array<i32>} : memref<4x8x8xf32, #tpu.memory_space<vmem>>, vector<1x8x8xf32>,
    %c0_34 = arith.constant 0 : index
    %c0_35 = arith.constant 0 : index
    %c0_36 = arith.constant 0 : index
    %52 = vector.load %arg8[%c0_34, %c0_35, %c0_36] : memref<4x8x1xf32, #tpu.memory_space<vmem>>, vector<1x8x1xf32>
    %53 = vector.shape_cast %52 : vector<1x8x1xf32> to vector<8x1xf32>
    %54 = vector.shape_cast %28 : vector<8x1xf32> to vector<1x8x1xf32>
    tpu.vector_store %arg8[%c0_34, %c0_35, %c0_36], %54 {strides = array<i32>} : memref<4x8x1xf32, #tpu.memory_space<vmem>>, vector<1x8x1xf32>,
    %c0_37 = arith.constant 0 : index
    %c0_38 = arith.constant 0 : index
    %c1 = arith.constant 1 : index
    %c0_39 = arith.constant 0 : index
    %55 = vector.load %arg3[%c0_37, %c0_38, %c1, %c0_39] : memref<1x8x4x8xf32, #tpu.memory_space<vmem>>, vector<1x8x1x8xf32>
    %56 = vector.shape_cast %55 : vector<1x8x1x8xf32> to vector<8x8xf32>
    %cst_40 = arith.constant dense<0.000000e+00> : vector<8x16xf32>
    %57 = tpu.matmul %56, %11, %cst_40 {dimension_numbers = #tpu.dot_dimension_numbers<[1], [1], [0], [0], [0, 0, 1, 0], [], []>} : vector<8x8xf32>, vector<16x8xf32>, vector<8x16xf32> -> vector<8x16xf32>
    %cst_41 = arith.constant 0.353553385 : f32
    %58 = vector.broadcast %cst_41 : f32 to vector<8x16xf32>
    %59 = arith.mulf %57, %58 : vector<8x16xf32>
    %60 = arith.addf %59, %3 : vector<8x16xf32>
    %cst_42 = arith.constant 0xFF800000 : f32
    %61 = vector.shape_cast %9 : vector<1x16xi1> to vector<1x16xi1>
    %62 = vector.broadcast %61 : vector<1x16xi1> to vector<8x16xi1>
    %63 = vector.broadcast %cst_42 : f32 to vector<8x16xf32>
    %64 = arith.select %62, %60, %63 : vector<8x16xi1>, vector<8x16xf32>
    %c1_43 = arith.constant 1 : index
    %c0_44 = arith.constant 0 : index
    %c0_45 = arith.constant 0 : index
    %65 = vector.load %arg8[%c1_43, %c0_44, %c0_45] : memref<4x8x1xf32, #tpu.memory_space<vmem>>, vector<1x8x1xf32>
    %66 = vector.shape_cast %65 : vector<1x8x1xf32> to vector<8x1xf32>
    %cst_46 = arith.constant dense<0xFF800000> : vector<8xf32>
    %67 = vector.multi_reduction <maximumf>, %64, %cst_46 [1] : vector<8x16xf32> to vector<8xf32>
    %68 = vector.shape_cast %67 : vector<8xf32> to vector<8x1xf32>
    %69 = arith.maximumf %66, %68 : vector<8x1xf32>
    %70 = arith.subf %66, %69 : vector<8x1xf32>
    %71 = math.exp %70 : vector<8x1xf32>
    %72 = vector.broadcast %69 : vector<8x1xf32> to vector<8x16xf32>
    %73 = arith.subf %64, %72 : vector<8x16xf32>
    %74 = math.exp %73 : vector<8x16xf32>
    %c1_47 = arith.constant 1 : index
    %c0_48 = arith.constant 0 : index
    %c0_49 = arith.constant 0 : index
    %75 = vector.load %arg9[%c1_47, %c0_48, %c0_49] : memref<4x8x1xf32, #tpu.memory_space<vmem>>, vector<1x8x1xf32>
    %76 = vector.shape_cast %75 : vector<1x8x1xf32> to vector<8x1xf32>
    %77 = arith.mulf %71, %76 : vector<8x1xf32>
    %cst_50 = arith.constant dense<0.000000e+00> : vector<8xf32>
    %78 = vector.multi_reduction <add>, %74, %cst_50 [1] : vector<8x16xf32> to vector<8xf32>
    %79 = vector.shape_cast %78 : vector<8xf32> to vector<8x1xf32>
    %80 = arith.addf %77, %79 : vector<8x1xf32>
    %c1_51 = arith.constant 1 : index
    %c0_52 = arith.constant 0 : index
    %c0_53 = arith.constant 0 : index
    %81 = vector.load %arg9[%c1_51, %c0_52, %c0_53] : memref<4x8x1xf32, #tpu.memory_space<vmem>>, vector<1x8x1xf32>
    %82 = vector.shape_cast %81 : vector<1x8x1xf32> to vector<8x1xf32>
    %83 = vector.shape_cast %80 : vector<8x1xf32> to vector<1x8x1xf32>
    tpu.vector_store %arg9[%c1_51, %c0_52, %c0_53], %83 {strides = array<i32>} : memref<4x8x1xf32, #tpu.memory_space<vmem>>, vector<1x8x1xf32>,
    %c1_54 = arith.constant 1 : index
    %c0_55 = arith.constant 0 : index
    %c0_56 = arith.constant 0 : index
    %84 = vector.load %arg10[%c1_54, %c0_55, %c0_56] : memref<4x8x8xf32, #tpu.memory_space<vmem>>, vector<1x8x8xf32>
    %85 = vector.shape_cast %84 : vector<1x8x8xf32> to vector<8x8xf32>
    %86 = vector.broadcast %71 : vector<8x1xf32> to vector<8x8xf32>
    %87 = arith.mulf %86, %85 : vector<8x8xf32>
    %cst_57 = arith.constant dense<0.000000e+00> : vector<8x8xf32>
    %88 = tpu.matmul %74, %13, %cst_57 {dimension_numbers = #tpu.dot_dimension_numbers<[1], [0], [0], [1], [0, 0, 1, 1], [], []>} : vector<8x16xf32>, vector<16x8xf32>, vector<8x8xf32> -> vector<8x8xf32>
    %89 = arith.addf %87, %88 : vector<8x8xf32>
    %c1_58 = arith.constant 1 : index
    %c0_59 = arith.constant 0 : index
    %c0_60 = arith.constant 0 : index
    %90 = vector.load %arg10[%c1_58, %c0_59, %c0_60] : memref<4x8x8xf32, #tpu.memory_space<vmem>>, vector<1x8x8xf32>
    %91 = vector.shape_cast %90 : vector<1x8x8xf32> to vector<8x8xf32>
    %92 = vector.shape_cast %89 : vector<8x8xf32> to vector<1x8x8xf32>
    tpu.vector_store %arg10[%c1_58, %c0_59, %c0_60], %92 {strides = array<i32>} : memref<4x8x8xf32, #tpu.memory_space<vmem>>, vector<1x8x8xf32>,
    %c1_61 = arith.constant 1 : index
    %c0_62 = arith.constant 0 : index
    %c0_63 = arith.constant 0 : index
    %93 = vector.load %arg8[%c1_61, %c0_62, %c0_63] : memref<4x8x1xf32, #tpu.memory_space<vmem>>, vector<1x8x1xf32>
    %94 = vector.shape_cast %93 : vector<1x8x1xf32> to vector<8x1xf32>
    %95 = vector.shape_cast %69 : vector<8x1xf32> to vector<1x8x1xf32>
    tpu.vector_store %arg8[%c1_61, %c0_62, %c0_63], %95 {strides = array<i32>} : memref<4x8x1xf32, #tpu.memory_space<vmem>>, vector<1x8x1xf32>,
    %c0_64 = arith.constant 0 : index
    %c0_65 = arith.constant 0 : index
    %c1_66 = arith.constant 1 : index
    %c0_67 = arith.constant 0 : index
    %96 = vector.load %arg4[%c0_64, %c0_65, %c1_66, %c0_67] : memref<1x16x2x8xf32, #tpu.memory_space<vmem>>, vector<1x16x1x8xf32>
    %97 = vector.shape_cast %96 : vector<1x16x1x8xf32> to vector<16x8xf32>
    %c0_68 = arith.constant 0 : index
    %c0_69 = arith.constant 0 : index
    %c1_70 = arith.constant 1 : index
    %c0_71 = arith.constant 0 : index
    %98 = vector.load %arg5[%c0_68, %c0_69, %c1_70, %c0_71] : memref<1x16x2x8xf32, #tpu.memory_space<vmem>>, vector<1x16x1x8xf32>
    %99 = vector.shape_cast %98 : vector<1x16x1x8xf32> to vector<16x8xf32>
    %c0_72 = arith.constant 0 : index
    %c0_73 = arith.constant 0 : index
    %c2 = arith.constant 2 : index
    %c0_74 = arith.constant 0 : index
    %100 = vector.load %arg3[%c0_72, %c0_73, %c2, %c0_74] : memref<1x8x4x8xf32, #tpu.memory_space<vmem>>, vector<1x8x1x8xf32>
    %101 = vector.shape_cast %100 : vector<1x8x1x8xf32> to vector<8x8xf32>
    %cst_75 = arith.constant dense<0.000000e+00> : vector<8x16xf32>
    %102 = tpu.matmul %101, %97, %cst_75 {dimension_numbers = #tpu.dot_dimension_numbers<[1], [1], [0], [0], [0, 0, 1, 0], [], []>} : vector<8x8xf32>, vector<16x8xf32>, vector<8x16xf32> -> vector<8x16xf32>
    %cst_76 = arith.constant 0.353553385 : f32
    %103 = vector.broadcast %cst_76 : f32 to vector<8x16xf32>
    %104 = arith.mulf %102, %103 : vector<8x16xf32>
    %105 = arith.addf %104, %3 : vector<8x16xf32>
    %cst_77 = arith.constant 0xFF800000 : f32
    %106 = vector.shape_cast %9 : vector<1x16xi1> to vector<1x16xi1>
    %107 = vector.broadcast %106 : vector<1x16xi1> to vector<8x16xi1>
    %108 = vector.broadcast %cst_77 : f32 to vector<8x16xf32>
    %109 = arith.select %107, %105, %108 : vector<8x16xi1>, vector<8x16xf32>
    %c2_78 = arith.constant 2 : index
    %c0_79 = arith.constant 0 : index
    %c0_80 = arith.constant 0 : index
    %110 = vector.load %arg8[%c2_78, %c0_79, %c0_80] : memref<4x8x1xf32, #tpu.memory_space<vmem>>, vector<1x8x1xf32>
    %111 = vector.shape_cast %110 : vector<1x8x1xf32> to vector<8x1xf32>
    %cst_81 = arith.constant dense<0xFF800000> : vector<8xf32>
    %112 = vector.multi_reduction <maximumf>, %109, %cst_81 [1] : vector<8x16xf32> to vector<8xf32>
    %113 = vector.shape_cast %112 : vector<8xf32> to vector<8x1xf32>
    %114 = arith.maximumf %111, %113 : vector<8x1xf32>
    %115 = arith.subf %111, %114 : vector<8x1xf32>
    %116 = math.exp %115 : vector<8x1xf32>
    %117 = vector.broadcast %114 : vector<8x1xf32> to vector<8x16xf32>
    %118 = arith.subf %109, %117 : vector<8x16xf32>
    %119 = math.exp %118 : vector<8x16xf32>
    %c2_82 = arith.constant 2 : index
    %c0_83 = arith.constant 0 : index
    %c0_84 = arith.constant 0 : index
    %120 = vector.load %arg9[%c2_82, %c0_83, %c0_84] : memref<4x8x1xf32, #tpu.memory_space<vmem>>, vector<1x8x1xf32>
    %121 = vector.shape_cast %120 : vector<1x8x1xf32> to vector<8x1xf32>
    %122 = arith.mulf %116, %121 : vector<8x1xf32>
    %cst_85 = arith.constant dense<0.000000e+00> : vector<8xf32>
    %123 = vector.multi_reduction <add>, %119, %cst_85 [1] : vector<8x16xf32> to vector<8xf32>
    %124 = vector.shape_cast %123 : vector<8xf32> to vector<8x1xf32>
    %125 = arith.addf %122, %124 : vector<8x1xf32>
    %c2_86 = arith.constant 2 : index
    %c0_87 = arith.constant 0 : index
    %c0_88 = arith.constant 0 : index
    %126 = vector.load %arg9[%c2_86, %c0_87, %c0_88] : memref<4x8x1xf32, #tpu.memory_space<vmem>>, vector<1x8x1xf32>
    %127 = vector.shape_cast %126 : vector<1x8x1xf32> to vector<8x1xf32>
    %128 = vector.shape_cast %125 : vector<8x1xf32> to vector<1x8x1xf32>
    tpu.vector_store %arg9[%c2_86, %c0_87, %c0_88], %128 {strides = array<i32>} : memref<4x8x1xf32, #tpu.memory_space<vmem>>, vector<1x8x1xf32>,
    %c2_89 = arith.constant 2 : index
    %c0_90 = arith.constant 0 : index
    %c0_91 = arith.constant 0 : index
    %129 = vector.load %arg10[%c2_89, %c0_90, %c0_91] : memref<4x8x8xf32, #tpu.memory_space<vmem>>, vector<1x8x8xf32>
    %130 = vector.shape_cast %129 : vector<1x8x8xf32> to vector<8x8xf32>
    %131 = vector.broadcast %116 : vector<8x1xf32> to vector<8x8xf32>
    %132 = arith.mulf %131, %130 : vector<8x8xf32>
    %cst_92 = arith.constant dense<0.000000e+00> : vector<8x8xf32>
    %133 = tpu.matmul %119, %99, %cst_92 {dimension_numbers = #tpu.dot_dimension_numbers<[1], [0], [0], [1], [0, 0, 1, 1], [], []>} : vector<8x16xf32>, vector<16x8xf32>, vector<8x8xf32> -> vector<8x8xf32>
    %134 = arith.addf %132, %133 : vector<8x8xf32>
    %c2_93 = arith.constant 2 : index
    %c0_94 = arith.constant 0 : index
    %c0_95 = arith.constant 0 : index
    %135 = vector.load %arg10[%c2_93, %c0_94, %c0_95] : memref<4x8x8xf32, #tpu.memory_space<vmem>>, vector<1x8x8xf32>
    %136 = vector.shape_cast %135 : vector<1x8x8xf32> to vector<8x8xf32>
    %137 = vector.shape_cast %134 : vector<8x8xf32> to vector<1x8x8xf32>
    tpu.vector_store %arg10[%c2_93, %c0_94, %c0_95], %137 {strides = array<i32>} : memref<4x8x8xf32, #tpu.memory_space<vmem>>, vector<1x8x8xf32>,
    %c2_96 = arith.constant 2 : index
    %c0_97 = arith.constant 0 : index
    %c0_98 = arith.constant 0 : index
    %138 = vector.load %arg8[%c2_96, %c0_97, %c0_98] : memref<4x8x1xf32, #tpu.memory_space<vmem>>, vector<1x8x1xf32>
    %139 = vector.shape_cast %138 : vector<1x8x1xf32> to vector<8x1xf32>
    %140 = vector.shape_cast %114 : vector<8x1xf32> to vector<1x8x1xf32>
    tpu.vector_store %arg8[%c2_96, %c0_97, %c0_98], %140 {strides = array<i32>} : memref<4x8x1xf32, #tpu.memory_space<vmem>>, vector<1x8x1xf32>,
    %c0_99 = arith.constant 0 : index
    %c0_100 = arith.constant 0 : index
    %c3 = arith.constant 3 : index
    %c0_101 = arith.constant 0 : index
    %141 = vector.load %arg3[%c0_99, %c0_100, %c3, %c0_101] : memref<1x8x4x8xf32, #tpu.memory_space<vmem>>, vector<1x8x1x8xf32>
    %142 = vector.shape_cast %141 : vector<1x8x1x8xf32> to vector<8x8xf32>
    %cst_102 = arith.constant dense<0.000000e+00> : vector<8x16xf32>
    %143 = tpu.matmul %142, %97, %cst_102 {dimension_numbers = #tpu.dot_dimension_numbers<[1], [1], [0], [0], [0, 0, 1, 0], [], []>} : vector<8x8xf32>, vector<16x8xf32>, vector<8x16xf32> -> vector<8x16xf32>
    %cst_103 = arith.constant 0.353553385 : f32
    %144 = vector.broadcast %cst_103 : f32 to vector<8x16xf32>
    %145 = arith.mulf %143, %144 : vector<8x16xf32>
    %146 = arith.addf %145, %3 : vector<8x16xf32>
    %cst_104 = arith.constant 0xFF800000 : f32
    %147 = vector.shape_cast %9 : vector<1x16xi1> to vector<1x16xi1>
    %148 = vector.broadcast %147 : vector<1x16xi1> to vector<8x16xi1>
    %149 = vector.broadcast %cst_104 : f32 to vector<8x16xf32>
    %150 = arith.select %148, %146, %149 : vector<8x16xi1>, vector<8x16xf32>
    %c3_105 = arith.constant 3 : index
    %c0_106 = arith.constant 0 : index
    %c0_107 = arith.constant 0 : index
    %151 = vector.load %arg8[%c3_105, %c0_106, %c0_107] : memref<4x8x1xf32, #tpu.memory_space<vmem>>, vector<1x8x1xf32>
    %152 = vector.shape_cast %151 : vector<1x8x1xf32> to vector<8x1xf32>
    %cst_108 = arith.constant dense<0xFF800000> : vector<8xf32>
    %153 = vector.multi_reduction <maximumf>, %150, %cst_108 [1] : vector<8x16xf32> to vector<8xf32>
    %154 = vector.shape_cast %153 : vector<8xf32> to vector<8x1xf32>
    %155 = arith.maximumf %152, %154 : vector<8x1xf32>
    %156 = arith.subf %152, %155 : vector<8x1xf32>
    %157 = math.exp %156 : vector<8x1xf32>
    %158 = vector.broadcast %155 : vector<8x1xf32> to vector<8x16xf32>
    %159 = arith.subf %150, %158 : vector<8x16xf32>
    %160 = math.exp %159 : vector<8x16xf32>
    %c3_109 = arith.constant 3 : index
    %c0_110 = arith.constant 0 : index
    %c0_111 = arith.constant 0 : index
    %161 = vector.load %arg9[%c3_109, %c0_110, %c0_111] : memref<4x8x1xf32, #tpu.memory_space<vmem>>, vector<1x8x1xf32>
    %162 = vector.shape_cast %161 : vector<1x8x1xf32> to vector<8x1xf32>
    %163 = arith.mulf %157, %162 : vector<8x1xf32>
    %cst_112 = arith.constant dense<0.000000e+00> : vector<8xf32>
    %164 = vector.multi_reduction <add>, %160, %cst_112 [1] : vector<8x16xf32> to vector<8xf32>
    %165 = vector.shape_cast %164 : vector<8xf32> to vector<8x1xf32>
    %166 = arith.addf %163, %165 : vector<8x1xf32>
    %c3_113 = arith.constant 3 : index
    %c0_114 = arith.constant 0 : index
    %c0_115 = arith.constant 0 : index
    %167 = vector.load %arg9[%c3_113, %c0_114, %c0_115] : memref<4x8x1xf32, #tpu.memory_space<vmem>>, vector<1x8x1xf32>
    %168 = vector.shape_cast %167 : vector<1x8x1xf32> to vector<8x1xf32>
    %169 = vector.shape_cast %166 : vector<8x1xf32> to vector<1x8x1xf32>
    tpu.vector_store %arg9[%c3_113, %c0_114, %c0_115], %169 {strides = array<i32>} : memref<4x8x1xf32, #tpu.memory_space<vmem>>, vector<1x8x1xf32>,
    %c3_116 = arith.constant 3 : index
    %c0_117 = arith.constant 0 : index
    %c0_118 = arith.constant 0 : index
    %170 = vector.load %arg10[%c3_116, %c0_117, %c0_118] : memref<4x8x8xf32, #tpu.memory_space<vmem>>, vector<1x8x8xf32>
    %171 = vector.shape_cast %170 : vector<1x8x8xf32> to vector<8x8xf32>
    %172 = vector.broadcast %157 : vector<8x1xf32> to vector<8x8xf32>
    %173 = arith.mulf %172, %171 : vector<8x8xf32>
    %cst_119 = arith.constant dense<0.000000e+00> : vector<8x8xf32>
    %174 = tpu.matmul %160, %99, %cst_119 {dimension_numbers = #tpu.dot_dimension_numbers<[1], [0], [0], [1], [0, 0, 1, 1], [], []>} : vector<8x16xf32>, vector<16x8xf32>, vector<8x8xf32> -> vector<8x8xf32>
    %175 = arith.addf %173, %174 : vector<8x8xf32>
    %c3_120 = arith.constant 3 : index
    %c0_121 = arith.constant 0 : index
    %c0_122 = arith.constant 0 : index
    %176 = vector.load %arg10[%c3_120, %c0_121, %c0_122] : memref<4x8x8xf32, #tpu.memory_space<vmem>>, vector<1x8x8xf32>
    %177 = vector.shape_cast %176 : vector<1x8x8xf32> to vector<8x8xf32>
    %178 = vector.shape_cast %175 : vector<8x8xf32> to vector<1x8x8xf32>
    tpu.vector_store %arg10[%c3_120, %c0_121, %c0_122], %178 {strides = array<i32>} : memref<4x8x8xf32, #tpu.memory_space<vmem>>, vector<1x8x8xf32>,
    %c3_123 = arith.constant 3 : index
    %c0_124 = arith.constant 0 : index
    %c0_125 = arith.constant 0 : index
    %179 = vector.load %arg8[%c3_123, %c0_124, %c0_125] : memref<4x8x1xf32, #tpu.memory_space<vmem>>, vector<1x8x1xf32>
    %180 = vector.shape_cast %179 : vector<1x8x1xf32> to vector<8x1xf32>
    %181 = vector.shape_cast %155 : vector<8x1xf32> to vector<1x8x1xf32>
    tpu.vector_store %arg8[%c3_123, %c0_124, %c0_125], %181 {strides = array<i32>} : memref<4x8x1xf32, #tpu.memory_space<vmem>>, vector<1x8x1xf32>,
    %c0_i32_126 = arith.constant 0 : i32
    %182 = arith.cmpi eq, %arg2, %c0_i32_126 : i32
    %183 = arith.extui %182 : i1 to i32
    %c0_i32_127 = arith.constant 0 : i32
    %184 = arith.cmpi ne, %183, %c0_i32_127 : i32
    scf.if %184 {
      %c0_128 = arith.constant 0 : index
      %c0_129 = arith.constant 0 : index
      %c0_130 = arith.constant 0 : index
      %185 = vector.load %arg9[%c0_128, %c0_129, %c0_130] : memref<4x8x1xf32, #tpu.memory_space<vmem>>, vector<1x8x1xf32>
      %186 = vector.shape_cast %185 : vector<1x8x1xf32> to vector<8x1xf32>
      %187 = tpu.reciprocal %186 {approx = true} : vector<8x1xf32> -> vector<8x1xf32>
      %c0_131 = arith.constant 0 : index
      %c0_132 = arith.constant 0 : index
      %c0_133 = arith.constant 0 : index
      %188 = vector.load %arg10[%c0_131, %c0_132, %c0_133] : memref<4x8x8xf32, #tpu.memory_space<vmem>>, vector<1x8x8xf32>
      %189 = vector.shape_cast %188 : vector<1x8x8xf32> to vector<8x8xf32>
      %190 = vector.broadcast %187 : vector<8x1xf32> to vector<8x8xf32>
      %191 = arith.mulf %189, %190 : vector<8x8xf32>
      %c0_134 = arith.constant 0 : index
      %c0_135 = arith.constant 0 : index
      %c0_136 = arith.constant 0 : index
      %c0_137 = arith.constant 0 : index
      %192 = vector.load %arg7[%c0_134, %c0_135, %c0_136, %c0_137] : memref<1x8x4x8xf32, #tpu.memory_space<vmem>>, vector<1x8x1x8xf32>
      %193 = vector.shape_cast %192 : vector<1x8x1x8xf32> to vector<8x8xf32>
      %194 = vector.shape_cast %191 : vector<8x8xf32> to vector<1x8x1x8xf32>
      tpu.vector_store %arg7[%c0_134, %c0_135, %c0_136, %c0_137], %194 {strides = array<i32>} : memref<1x8x4x8xf32, #tpu.memory_space<vmem>>, vector<1x8x1x8xf32>,
      %c1_138 = arith.constant 1 : index
      %c0_139 = arith.constant 0 : index
      %c0_140 = arith.constant 0 : index
      %195 = vector.load %arg9[%c1_138, %c0_139, %c0_140] : memref<4x8x1xf32, #tpu.memory_space<vmem>>, vector<1x8x1xf32>
      %196 = vector.shape_cast %195 : vector<1x8x1xf32> to vector<8x1xf32>
      %197 = tpu.reciprocal %196 {approx = true} : vector<8x1xf32> -> vector<8x1xf32>
      %c1_141 = arith.constant 1 : index
      %c0_142 = arith.constant 0 : index
      %c0_143 = arith.constant 0 : index
      %198 = vector.load %arg10[%c1_141, %c0_142, %c0_143] : memref<4x8x8xf32, #tpu.memory_space<vmem>>, vector<1x8x8xf32>
      %199 = vector.shape_cast %198 : vector<1x8x8xf32> to vector<8x8xf32>
      %200 = vector.broadcast %197 : vector<8x1xf32> to vector<8x8xf32>
      %201 = arith.mulf %199, %200 : vector<8x8xf32>
      %c0_144 = arith.constant 0 : index
      %c0_145 = arith.constant 0 : index
      %c1_146 = arith.constant 1 : index
      %c0_147 = arith.constant 0 : index
      %202 = vector.load %arg7[%c0_144, %c0_145, %c1_146, %c0_147] : memref<1x8x4x8xf32, #tpu.memory_space<vmem>>, vector<1x8x1x8xf32>
      %203 = vector.shape_cast %202 : vector<1x8x1x8xf32> to vector<8x8xf32>
      %204 = vector.shape_cast %201 : vector<8x8xf32> to vector<1x8x1x8xf32>
      tpu.vector_store %arg7[%c0_144, %c0_145, %c1_146, %c0_147], %204 {strides = array<i32>} : memref<1x8x4x8xf32, #tpu.memory_space<vmem>>, vector<1x8x1x8xf32>,
      %c2_148 = arith.constant 2 : index
      %c0_149 = arith.constant 0 : index
      %c0_150 = arith.constant 0 : index
      %205 = vector.load %arg9[%c2_148, %c0_149, %c0_150] : memref<4x8x1xf32, #tpu.memory_space<vmem>>, vector<1x8x1xf32>
      %206 = vector.shape_cast %205 : vector<1x8x1xf32> to vector<8x1xf32>
      %207 = tpu.reciprocal %206 {approx = true} : vector<8x1xf32> -> vector<8x1xf32>
      %c2_151 = arith.constant 2 : index
      %c0_152 = arith.constant 0 : index
      %c0_153 = arith.constant 0 : index
      %208 = vector.load %arg10[%c2_151, %c0_152, %c0_153] : memref<4x8x8xf32, #tpu.memory_space<vmem>>, vector<1x8x8xf32>
      %209 = vector.shape_cast %208 : vector<1x8x8xf32> to vector<8x8xf32>
      %210 = vector.broadcast %207 : vector<8x1xf32> to vector<8x8xf32>
      %211 = arith.mulf %209, %210 : vector<8x8xf32>
      %c0_154 = arith.constant 0 : index
      %c0_155 = arith.constant 0 : index
      %c2_156 = arith.constant 2 : index
      %c0_157 = arith.constant 0 : index
      %212 = vector.load %arg7[%c0_154, %c0_155, %c2_156, %c0_157] : memref<1x8x4x8xf32, #tpu.memory_space<vmem>>, vector<1x8x1x8xf32>
      %213 = vector.shape_cast %212 : vector<1x8x1x8xf32> to vector<8x8xf32>
      %214 = vector.shape_cast %211 : vector<8x8xf32> to vector<1x8x1x8xf32>
      tpu.vector_store %arg7[%c0_154, %c0_155, %c2_156, %c0_157], %214 {strides = array<i32>} : memref<1x8x4x8xf32, #tpu.memory_space<vmem>>, vector<1x8x1x8xf32>,
      %c3_158 = arith.constant 3 : index
      %c0_159 = arith.constant 0 : index
      %c0_160 = arith.constant 0 : index
      %215 = vector.load %arg9[%c3_158, %c0_159, %c0_160] : memref<4x8x1xf32, #tpu.memory_space<vmem>>, vector<1x8x1xf32>
      %216 = vector.shape_cast %215 : vector<1x8x1xf32> to vector<8x1xf32>
      %217 = tpu.reciprocal %216 {approx = true} : vector<8x1xf32> -> vector<8x1xf32>
      %c3_161 = arith.constant 3 : index
      %c0_162 = arith.constant 0 : index
      %c0_163 = arith.constant 0 : index
      %218 = vector.load %arg10[%c3_161, %c0_162, %c0_163] : memref<4x8x8xf32, #tpu.memory_space<vmem>>, vector<1x8x8xf32>
      %219 = vector.shape_cast %218 : vector<1x8x8xf32> to vector<8x8xf32>
      %220 = vector.broadcast %217 : vector<8x1xf32> to vector<8x8xf32>
      %221 = arith.mulf %219, %220 : vector<8x8xf32>
      %c0_164 = arith.constant 0 : index
      %c0_165 = arith.constant 0 : index
      %c3_166 = arith.constant 3 : index
      %c0_167 = arith.constant 0 : index
      %222 = vector.load %arg7[%c0_164, %c0_165, %c3_166, %c0_167] : memref<1x8x4x8xf32, #tpu.memory_space<vmem>>, vector<1x8x1x8xf32>
      %223 = vector.shape_cast %222 : vector<1x8x1x8xf32> to vector<8x8xf32>
      %224 = vector.shape_cast %221 : vector<8x8xf32> to vector<1x8x1x8xf32>
      tpu.vector_store %arg7[%c0_164, %c0_165, %c3_166, %c0_167], %224 {strides = array<i32>} : memref<1x8x4x8xf32, #tpu.memory_space<vmem>>, vector<1x8x1x8xf32>,
    } else {
    }
    return
  }
  func.func @transform_0(%arg0: i32, %arg1: i32, %arg2: i32) -> (i32, i32, i32, i32) {
    %c0_i32 = arith.constant 0 : i32
    %c0_i32_0 = arith.constant 0 : i32
    %c0_i32_1 = arith.constant 0 : i32
    return %arg0, %arg1, %c0_i32, %c0_i32_0 : i32, i32, i32, i32
  }
  func.func @transform_1(%arg0: i32, %arg1: i32, %arg2: i32) -> (i32, i32, i32, i32) {
    %c0_i32 = arith.constant 0 : i32
    %c0_i32_0 = arith.constant 0 : i32
    %c0_i32_1 = arith.constant 0 : i32
    return %arg0, %arg2, %c0_i32, %c0_i32_0 : i32, i32, i32, i32
  }
  func.func @transform_2(%arg0: i32, %arg1: i32, %arg2: i32) -> (i32, i32, i32, i32) {
    %c0_i32 = arith.constant 0 : i32
    %c0_i32_0 = arith.constant 0 : i32
    %c0_i32_1 = arith.constant 0 : i32
    return %arg0, %arg2, %c0_i32, %c0_i32_0 : i32, i32, i32, i32
  }
  func.func @transform_3(%arg0: i32, %arg1: i32, %arg2: i32) -> (i32, i32) {
    %c0_i32 = arith.constant 0 : i32
    return %arg1, %arg2 : i32, i32
  }
  func.func @transform_4(%arg0: i32, %arg1: i32, %arg2: i32) -> (i32, i32, i32, i32) {
    %c0_i32 = arith.constant 0 : i32
    %c0_i32_0 = arith.constant 0 : i32
    %c0_i32_1 = arith.constant 0 : i32
    return %arg0, %arg1, %c0_i32, %c0_i32_0 : i32, i32, i32, i32
  }
}

</mosaic_0001>

<llo_original>
// kernel: adaptive_cache_attention_forward.5
$region0: #{adaptive_cache_attention_forward.5}
  #allocation0 [shape = 'u32[]', space=smem, size = 0x4, offset = 0x4, fixed_abs, tag = 'smem constant byte address 0x4 - core index']
  #allocation1 [shape = 'u32[144,128]{1,0:T(1,128)}', space=vmem, size = 0x12000, scoped, tag = 'internal scratch']
  #allocation2 [shape = 'f32[16,64]{1,0:T(8,128)}', space=vmem, size = 0x2000, scoped, tag = 'scratch operand']
  %s0 = inlined_call_operand.hbm [shape: f32[16,32], index: 0, kind: input, shape index: {}]
  %s1 = inlined_call_operand.hbm [shape: f32[32,64], index: 1, kind: input, shape index: {}]
  %s2 = inlined_call_operand.vmem [shape: f32[16,64], index: 2, kind: output, shape index: {}]
  %s3 = sld [smem:[#allocation0]]
  $region34: #{adaptive_cache_attention_forward.5} parent=0
    _
  %s5 = ssub.s32 1, %s3
  %s6 = scalar_select 0, %s5, %s3
  $region1: #{adaptive_cache_attention_forward.5} parent=0
    #allocation3 [shape = 'u8[8192]{0}', space=vmem, size = 0x2000, scoped, tag = 'input window, operand 0, single buffered']
    #allocation4 [shape = 's32[1]{0}', space=sflag, size = 0x4, scoped, tag = 'scoped memory for adaptive_cache_attention_forward.5']
    #allocation5 [shape = 'u8[16384]{0}', space=vmem, size = 0x4000, scoped, tag = 'input window, operand 1, single buffered']
    #allocation6 [shape = 's32[1]{0}', space=sflag, size = 0x4, scoped, tag = 'scoped memory for adaptive_cache_attention_forward.5']
    %7 = vsyncpa [#allocation4], 0
    %8 = vsyncpa [#allocation6], 0
    // Predicated region
    $region2: #{adaptive_cache_attention_forward.5} parent=1 // pred_check
      _
    $region3: #{adaptive_cache_attention_forward.5} parent=1 // pred_check_branch
      %10 = sbr.rel (0) target = $region5
    $region4: #{adaptive_cache_attention_forward.5} parent=1 // pred_region
      %s12 = ssub.s32 256, 256
      %13 = vsyncadd [#allocation4], %s12
      %s14 = sshll.u32 [#allocation3], 4
      %s15 = int_to_ptr.vmem [resolvable:$true] %s14
      %20 = dma.hbm_to_vmem [thread:$0]  %s0, 256, %s15, [#allocation4], 128, 128, 8
    $region5: #{adaptive_cache_attention_forward.5} parent=1 // pred_fallthru
      _
    // Predicated region
    $region6: #{adaptive_cache_attention_forward.5} parent=1 // pred_check
      _
    $region7: #{adaptive_cache_attention_forward.5} parent=1 // pred_check_branch
      %22 = sbr.rel (0) target = $region9
    $region8: #{adaptive_cache_attention_forward.5} parent=1 // pred_region
      %s24 = ssub.s32 512, 512
      %25 = vsyncadd [#allocation6], %s24
      %s26 = sshll.u32 [#allocation5], 4
      %s27 = int_to_ptr.vmem [resolvable:$true] %s26
      %32 = dma.hbm_to_vmem [thread:$0]  %s1, 512, %s27, [#allocation6], 128, 128, 8
    $region9: #{adaptive_cache_attention_forward.5} parent=1 // pred_fallthru
      _
    // Predicated region
    $region10: #{adaptive_cache_attention_forward.5} parent=1 // pred_check
      _
    $region11: #{adaptive_cache_attention_forward.5} parent=1 // pred_check_branch
      %34 = sbr.rel (0) target = $region13
    $region12: #{adaptive_cache_attention_forward.5} parent=1 // pred_region
      %35 = dma.done [#allocation4], 256
    $region13: #{adaptive_cache_attention_forward.5} parent=1 // pred_fallthru
      _
    // Predicated region
    $region14: #{adaptive_cache_attention_forward.5} parent=1 // pred_check
      _
    $region15: #{adaptive_cache_attention_forward.5} parent=1 // pred_check_branch
      %37 = sbr.rel (0) target = $region17
    $region16: #{adaptive_cache_attention_forward.5} parent=1 // pred_region
      %38 = dma.done [#allocation6], 512
    $region17: #{adaptive_cache_attention_forward.5} parent=1 // pred_fallthru
      _
    %p39 = scmp.eq.s32.totalorder 0, 0
    // Predicated region
    $region18: #{adaptive_cache_attention_forward.5} parent=1 // pred_check
      %p40 = pneg %p39
    $region19: #{adaptive_cache_attention_forward.5} parent=1 // pred_check_branch
      %42 = sbr.rel (%p40) target = $region21
    $region20: #{adaptive_cache_attention_forward.5} parent=1 // pred_region
      %vm43 = vcmask 523264
      %44 = vst.msk [vmem:[#allocation2] sm:$0xff] %vm43, 0.0
      %45 = vst.msk [vmem:[#allocation2 + $0x8] sm:$0xff] %vm43, 0.0
    $region21: #{adaptive_cache_attention_forward.5} parent=1 // pred_fallthru
      _
    %v46 = vld [vmem:[#allocation2] sm:$0xff]
    %v47 = vld [vmem:[#allocation2 + $0x8] sm:$0xff]
    %v48 = vld [vmem:[#allocation3] sm:$0xff]
    %v49 = vld [vmem:[#allocation3 + $0x8] sm:$0xff]
    %v50 = vld [vmem:[#allocation5] sm:$0xff]
    %v51 = vld [vmem:[#allocation5 + $0x8] sm:$0xff]
    %v52 = vld [vmem:[#allocation5 + $0x10] sm:$0xff]
    %v53 = vld [vmem:[#allocation5 + $0x18] sm:$0xff]
    %vm54 = vcmask 261120
    %v56 = vsel %vm54, %v48, 0
    %v59 = vsel %vm54, %v49, 0
    %61 = vmatprep.subr.mxu0 0.0
    %62 = vmatpush1.msra.mxu0 0.0
    %63 = vmatprep.subr.mxu0 0.0
    %64 = vmatpush1.msra.mxu0 0.0
    %65 = vmatprep.subr.mxu0 0.0
    %66 = vmatpush1.msra.mxu0 0.0
    %67 = vmatprep.subr.mxu0 0.0
    %68 = vmatpush1.msra.mxu0 0.0
    %69 = vmatprep.subr.mxu0 0.0
    %70 = vmatpush1.msra.mxu0 0.0
    %71 = vmatprep.subr.mxu0 0.0
    %72 = vmatpush1.msra.mxu0 0.0
    %73 = vmatprep.subr.mxu0 0.0
    %74 = vmatpush1.msra.mxu0 0.0
    %75 = vmatprep.subr.mxu0 0.0
    %76 = vmatpush1.msra.mxu0 0.0
    %77 = vmatprep.subr.mxu0 0.0
    %78 = vmatpush1.msra.mxu0 0.0
    %79 = vmatprep.subr.mxu0 0.0
    %80 = vmatpush1.msra.mxu0 0.0
    %81 = vmatprep.subr.mxu0 0.0
    %82 = vmatpush1.msra.mxu0 0.0
    %83 = vmatprep.subr.mxu0 0.0
    %84 = vmatpush1.msra.mxu0 0.0
    %85 = vmatprep.subr.mxu0 0.0
    %86 = vmatpush1.msra.mxu0 %v53
    %87 = vmatprep.subr.mxu0 0.0
    %88 = vmatpush1.msra.mxu0 %v52
    %89 = vmatprep.subr.mxu0 0.0
    %90 = vmatpush1.msra.mxu0 %v51
    %91 = vmatprep.subr.mxu0 0.0
    %92 = vmatpush1.msra.mxu0 %v50
    %93 = vmatprep.subr.mxu0 0.0
    %94 = vmatpush2.msra.mxu0 0.0
    %95 = vmatprep.subr.mxu0 0.0
    %96 = vmatpush2.msra.mxu0 0.0
    %97 = vmatprep.subr.mxu0 0.0
    %98 = vmatpush2.msra.mxu0 0.0
    %99 = vmatprep.subr.mxu0 0.0
    %100 = vmatpush2.msra.mxu0 0.0
    %101 = vmatprep.subr.mxu0 0.0
    %102 = vmatpush2.msra.mxu0 0.0
    %103 = vmatprep.subr.mxu0 0.0
    %104 = vmatpush2.msra.mxu0 0.0
    %105 = vmatprep.subr.mxu0 0.0
    %106 = vmatpush2.msra.mxu0 0.0
    %107 = vmatprep.subr.mxu0 0.0
    %108 = vmatpush2.msra.mxu0 0.0
    %109 = vmatprep.subr.mxu0 0.0
    %110 = vmatpush2.msra.mxu0 0.0
    %111 = vmatprep.subr.mxu0 0.0
    %112 = vmatpush2.msra.mxu0 0.0
    %113 = vmatprep.subr.mxu0 0.0
    %114 = vmatpush2.msra.mxu0 0.0
    %115 = vmatprep.subr.mxu0 0.0
    %116 = vmatpush2.msra.mxu0 0.0
    %117 = vmatprep.subr.mxu0 0.0
    %118 = vmatpush2.msra.mxu0 0.0
    %119 = vmatprep.subr.mxu0 0.0
    %120 = vmatpush2.msra.mxu0 0.0
    %121 = vmatprep.subr.mxu0 0.0
    %122 = vmatpush2.msra.mxu0 0.0
    %123 = vmatprep.subr.mxu0 0.0
    %124 = vmatpush2.msra.mxu0 0.0
    %125 = vmatprep.mubr.f32.mxu0 0.0
    %126 = vmatmul.mubr.f32.gmra.mxu0 %v56
    %v127 = vpop.f32.mrf.mxu0
    %v128 = vadd.f32 0.0, %v127
    %v129 = vpop.f32.mrf.mxu0
    %130 = vmatprep.mubr.f32.mxu0 0.0
    %131 = vmatmul.mubr.f32.gmra.mxu0 %v59
    %v132 = vpop.f32.mrf.mxu0
    %v133 = vadd.f32 0.0, %v132
    %v134 = vpop.f32.mrf.mxu0
    %135 = vdwg.mxu0
    %v136 = vadd.f32 %v46, %v128
    %v137 = vadd.f32 %v47, %v133
    %vm138 = vcmask 523264
    %139 = vst.msk [vmem:[#allocation2] sm:$0xff] %vm138, %v136
    %140 = vst.msk [vmem:[#allocation2 + $0x8] sm:$0xff] %vm138, %v137
    // Predicated region
    $region22: #{adaptive_cache_attention_forward.5} parent=1 // pred_check
      %p141 = pneg %p39
    $region23: #{adaptive_cache_attention_forward.5} parent=1 // pred_check_branch
      %143 = sbr.rel (%p141) target = $region25
    $region24: #{adaptive_cache_attention_forward.5} parent=1 // pred_region
      %v144 = vld [vmem:[#allocation2] sm:$0xff]
      %v145 = vld [vmem:[#allocation2 + $0x8] sm:$0xff]
      %146 = vst.msk [vmem:[%s2] sm:$0xff] %vm138, %v144
      %147 = vst.msk [vmem:[%s2 + $0x8] sm:$0xff] %vm138, %v145
    $region25: #{adaptive_cache_attention_forward.5} parent=1 // pred_fallthru
      _
    // Predicated region
    $region26: #{adaptive_cache_attention_forward.5} parent=1 // pred_check
      _
    $region27: #{adaptive_cache_attention_forward.5} parent=1 // pred_check_branch
      %149 = sbr.rel (0) target = $region29
    $region28: #{adaptive_cache_attention_forward.5} parent=1 // pred_region
      _
    $region29: #{adaptive_cache_attention_forward.5} parent=1 // pred_fallthru
      _
    // Predicated region
    $region30: #{adaptive_cache_attention_forward.5} parent=1 // pred_check
      _
    $region31: #{adaptive_cache_attention_forward.5} parent=1 // pred_check_branch
      %151 = sbr.rel (0) target = $region33
    $region32: #{adaptive_cache_attention_forward.5} parent=1 // pred_region
      _
    $region33: #{adaptive_cache_attention_forward.5} parent=1 // pred_fallthru
      _
    %152 = vsyncpa [#allocation4], 1
    %153 = vsyncpa [#allocation6], 1

// kernel: adaptive_cache_attention_forward.6
$region0: #{adaptive_cache_attention_forward.6}
  #allocation0 [shape = 'u32[]', space=smem, size = 0x4, offset = 0x4, fixed_abs, tag = 'smem constant byte address 0x4 - core index']
  #allocation1 [shape = 'u32[144,128]{1,0:T(1,128)}', space=vmem, size = 0x12000, scoped, tag = 'internal scratch']
  %s0 = inlined_call_operand.vmem [shape: f32[2,8,2,8], index: 0, kind: input, shape index: {}]
  %s1 = inlined_call_operand.vmem [shape: f32[2,16,2,8], index: 1, kind: input, shape index: {}, may-alias: {1,2}]
  %s2 = inlined_call_operand.vmem [shape: f32[2,16,2,8], index: 2, kind: output, shape index: {}, may-alias: {1,2}]
  %s3 = sld [smem:[#allocation0]]
  $region41: #{adaptive_cache_attention_forward.6} parent=0
    _
  %s5 = ssub.s32 1, %s3
  %s6 = scalar_select 0, %s5, %s3
  loop: start=0, step=1, limit=4
  $region2: #{adaptive_cache_attention_forward.6} parent=0 // loop_pre_header
    _
  $region3: #{adaptive_cache_attention_forward.6} parent=0 // loop_header
    %s8 = sphi 0, %s12
    %p9 = scmp.ge.s32.totalorder %s8, 4
    %s18 = sphi 0, %s20
    %s21 = sphi 0, %s18
    %s22 = sphi 0, %s21
    %s38 = sphi 0, %s22
    %s44 = sphi 0, %s46
    %s47 = sphi 0, %s44
    %s48 = sphi 0, %s47
    %s64 = sphi 0, %s48
    %s70 = sphi 0, %s72
    %s73 = sphi 0, %s70
    %s74 = sphi 0, %s73
    %s90 = sphi 0, %s74
  $region4: #{adaptive_cache_attention_forward.6} parent=0 // loop_header_branch
    %11 = sbr.rel (%p9) target = $region8
  $region5: #{adaptive_cache_attention_forward.6} parent=0 // loop_body
    %s13 = ssub.s32 %s8, 1
    %s14 = ssub.s32 %s8, 2
    %s15 = sadd.s32 %s8, 1
    %s16 = ssub.s32 %s8, %s15
    %p17 = scmp.eq.s32.totalorder %s16, 0
    %s19 = sadd.s32 %s18, 1
    %s20 = scalar_select %p17, %s18, %s19
    %p23 = pneg %p17
    %p24 = scmp.eq.s32.totalorder %s8, 1
    %p25 = por %p23, %p24
    %p26 = scmp.ne.s32.totalorder %s18, %s21
    %p27 = scmp.eq.s32.totalorder %s8, 0
    %p28 = por %p26, %p27
    %p29 = scmp.ne.s32.totalorder %s18, %s21
    %p30 = scmp.eq.s32.totalorder %s13, 1
    %p31 = por %p29, %p30
    %p32 = scmp.ne.s32.totalorder %s21, %s22
    %p33 = scmp.eq.s32.totalorder %s13, 0
    %p34 = por %p32, %p33
    %p35 = scmp.ne.s32.totalorder %s21, %s22
    %p36 = scmp.eq.s32.totalorder %s14, 1
    %p37 = por %p35, %p36
    %p39 = scmp.ne.s32.totalorder %s22, %s38
    %p40 = scmp.eq.s32.totalorder %s14, 0
    %p41 = por %p39, %p40
    %s42 = ssub.s32 %s8, %s15
    %p43 = scmp.eq.s32.totalorder %s42, 0
    %s45 = sadd.s32 %s44, 1
    %s46 = scalar_select %p43, %s44, %s45
    %p49 = pneg %p43
    %p50 = scmp.eq.s32.totalorder %s8, 1
    %p51 = por %p49, %p50
    %p52 = scmp.ne.s32.totalorder %s44, %s47
    %p53 = scmp.eq.s32.totalorder %s8, 0
    %p54 = por %p52, %p53
    %p55 = scmp.ne.s32.totalorder %s44, %s47
    %p56 = scmp.eq.s32.totalorder %s13, 1
    %p57 = por %p55, %p56
    %p58 = scmp.ne.s32.totalorder %s47, %s48
    %p59 = scmp.eq.s32.totalorder %s13, 0
    %p60 = por %p58, %p59
    %p61 = scmp.ne.s32.totalorder %s47, %s48
    %p62 = scmp.eq.s32.totalorder %s14, 1
    %p63 = por %p61, %p62
    %p65 = scmp.ne.s32.totalorder %s48, %s64
    %p66 = scmp.eq.s32.totalorder %s14, 0
    %p67 = por %p65, %p66
    %s68 = ssub.s32 %s8, %s15
    %p69 = scmp.eq.s32.totalorder %s68, 0
    %s71 = sadd.s32 %s70, 1
    %s72 = scalar_select %p69, %s70, %s71
    %p75 = pneg %p69
    %p76 = scmp.eq.s32.totalorder %s8, 1
    %p77 = por %p75, %p76
    %p78 = scmp.ne.s32.totalorder %s70, %s73
    %p79 = scmp.eq.s32.totalorder %s8, 0
    %p80 = por %p78, %p79
    %p81 = scmp.ne.s32.totalorder %s70, %s73
    %p82 = scmp.eq.s32.totalorder %s13, 1
    %p83 = por %p81, %p82
    %p84 = scmp.ne.s32.totalorder %s73, %s74
    %p85 = scmp.eq.s32.totalorder %s13, 0
    %p86 = por %p84, %p85
    %p87 = scmp.ne.s32.totalorder %s73, %s74
    %p88 = scmp.eq.s32.totalorder %s14, 1
    %p89 = por %p87, %p88
    %p91 = scmp.ne.s32.totalorder %s74, %s90
    %p92 = scmp.eq.s32.totalorder %s14, 0
    %p93 = por %p91, %p92
    %p94 = scmp.le.s32.totalorder 1, %s8
    %p95 = scmp.lt.s32.totalorder %s8, 3
    %p96 = pnand %p94, %p95
    %p97 = pneg %p96
    // Predicated region
    $region9: #{adaptive_cache_attention_forward.6} parent=5 // pred_check
      _
    $region10: #{adaptive_cache_attention_forward.6} parent=5 // pred_check_branch
      %99 = sbr.rel (%p96) target = $region12
    $region11: #{adaptive_cache_attention_forward.6} parent=5 // pred_region
      %s100 = ssub.s32 %s8, 1
    $region12: #{adaptive_cache_attention_forward.6} parent=5 // pred_fallthru
      _
    %p101 = scmp.lt.s32.totalorder %s8, 2
    // Predicated region
    $region13: #{adaptive_cache_attention_forward.6} parent=5 // pred_check
      %p102 = pneg %p101
    $region14: #{adaptive_cache_attention_forward.6} parent=5 // pred_check_branch
      %104 = sbr.rel (%p102) target = $region16
    $region15: #{adaptive_cache_attention_forward.6} parent=5 // pred_region
      // Predicated region
      $region17: #{adaptive_cache_attention_forward.6} parent=15 // pred_check
        %p105 = pneg %p28
      $region18: #{adaptive_cache_attention_forward.6} parent=15 // pred_check_branch
        %107 = sbr.rel (%p105) target = $region20
      $region19: #{adaptive_cache_attention_forward.6} parent=15 // pred_region
        %p108 = scmp.lt.s32.totalorder %s8, 1
        %s109 = scalar_select %p108, %s8, 1
        %s110 = smul.addr %s109, 8
        %s111 = smul.addr %s110, 2
        %s112 = scalar_lea.vmem %s0, %s111
      $region20: #{adaptive_cache_attention_forward.6} parent=15 // pred_fallthru
        _
      // Predicated region
      $region21: #{adaptive_cache_attention_forward.6} parent=15 // pred_check
        %p113 = pneg %p54
      $region22: #{adaptive_cache_attention_forward.6} parent=15 // pred_check_branch
        %115 = sbr.rel (%p113) target = $region24
      $region23: #{adaptive_cache_attention_forward.6} parent=15 // pred_region
        %p116 = scmp.lt.s32.totalorder %s8, 1
        %s117 = scalar_select %p116, %s8, 1
        %s118 = smul.addr %s117, 16
        %s119 = smul.addr %s118, 2
        %s120 = scalar_lea.vmem %s1, %s119
      $region24: #{adaptive_cache_attention_forward.6} parent=15 // pred_fallthru
        _
    $region16: #{adaptive_cache_attention_forward.6} parent=5 // pred_fallthru
      _
    %p121 = scmp.le.s32.totalorder 1, %s8
    %p122 = scmp.lt.s32.totalorder %s8, 3
    %p123 = pnand %p121, %p122
    %p124 = pneg %p123
    // Predicated region
    $region25: #{adaptive_cache_attention_forward.6} parent=5 // pred_check
      _
    $region26: #{adaptive_cache_attention_forward.6} parent=5 // pred_check_branch
      %126 = sbr.rel (%p123) target = $region28
    $region27: #{adaptive_cache_attention_forward.6} parent=5 // pred_region
      %s127 = ssub.s32 %s8, 1
      %p128 = scmp.lt.s32.totalorder %s13, 1
      %s129 = scalar_select %p128, %s13, 1
      %s130 = smul.addr %s129, 8
      %s131 = smul.addr %s130, 2
      %s132 = scalar_lea.vmem %s0, %s131
      %p133 = pneg %p34
      %p134 = pneg %p31
      %p135 = scmp.lt.s32.totalorder %s13, 1
      %s136 = scalar_select %p135, %s13, 1
      %s137 = smul.addr %s136, 16
      %s138 = smul.addr %s137, 2
      %s139 = scalar_lea.vmem %s1, %s138
      %p140 = pneg %p60
      %p141 = pneg %p57
      %p142 = pneg %p86
      %p143 = pneg %p83
      %p144 = scmp.lt.s32.totalorder %s13, 1
      %s145 = scalar_select %p144, %s13, 1
      %s146 = smul.addr %s145, 16
      %s147 = smul.addr %s146, 2
      %s148 = scalar_lea.vmem %s2, %s147
      %p149 = scmp.lt.s32.totalorder %s13, 1
      %s150 = scalar_select %p149, %s13, 1
      %s151 = smul.addr %s150, 8
      %s152 = smul.addr %s151, 2
      %s153 = scalar_lea.vmem %s0, %s152
      %p154 = scmp.lt.s32.totalorder %s13, 1
      %s155 = scalar_select %p154, %s13, 1
      %s156 = smul.addr %s155, 16
      %s157 = smul.addr %s156, 2
      %s158 = scalar_lea.vmem %s1, %s157
      %p159 = scmp.lt.s32.totalorder %s13, 1
      %s160 = scalar_select %p159, %s13, 1
      %s161 = smul.addr %s160, 16
      %s162 = smul.addr %s161, 2
      %s163 = scalar_lea.vmem %s2, %s162
      %v164 = vld [vmem:[%s153] sm:$0x3]
      %v165 = vld [vmem:[%s153 + $0x2] sm:$0x3]
      %v166 = vld [vmem:[%s153 + $0x4] sm:$0x3]
      %v167 = vld [vmem:[%s153 + $0x6] sm:$0x3]
      %v168 = vld [vmem:[%s153 + $0x8] sm:$0x3]
      %v169 = vld [vmem:[%s153 + $0xa] sm:$0x3]
      %v170 = vld [vmem:[%s153 + $0xc] sm:$0x3]
      %v171 = vld [vmem:[%s153 + $0xe] sm:$0x3]
      %vm172 = vcmask 58368
      %173 = vst.msk [vmem:[%s163] sm:$0x3] %vm172, %v164
      %174 = vst.msk [vmem:[%s163 + $0x2] sm:$0x3] %vm172, %v165
      %175 = vst.msk [vmem:[%s163 + $0x4] sm:$0x3] %vm172, %v166
      %176 = vst.msk [vmem:[%s163 + $0x6] sm:$0x3] %vm172, %v167
      %177 = vst.msk [vmem:[%s163 + $0x8] sm:$0x3] %vm172, %v168
      %178 = vst.msk [vmem:[%s163 + $0xa] sm:$0x3] %vm172, %v169
      %179 = vst.msk [vmem:[%s163 + $0xc] sm:$0x3] %vm172, %v170
      %180 = vst.msk [vmem:[%s163 + $0xe] sm:$0x3] %vm172, %v171
      %p181 = scmp.lt.s32.totalorder %s13, 1
      %s182 = scalar_select %p181, %s13, 1
      %s183 = smul.addr %s182, 16
      %s184 = smul.addr %s183, 2
      %s185 = scalar_lea.vmem %s2, %s184
      // Predicated region
      $region29: #{adaptive_cache_attention_forward.6} parent=27 // pred_check
        %p186 = pneg %p83
      $region30: #{adaptive_cache_attention_forward.6} parent=27 // pred_check_branch
        %188 = sbr.rel (%p186) target = $region32
      $region31: #{adaptive_cache_attention_forward.6} parent=27 // pred_region
        _
      $region32: #{adaptive_cache_attention_forward.6} parent=27 // pred_fallthru
        _
    $region28: #{adaptive_cache_attention_forward.6} parent=5 // pred_fallthru
      _
    %p189 = scmp.le.s32.totalorder 2, %s8
    // Predicated region
    $region33: #{adaptive_cache_attention_forward.6} parent=5 // pred_check
      %p190 = pneg %p189
    $region34: #{adaptive_cache_attention_forward.6} parent=5 // pred_check_branch
      %192 = sbr.rel (%p190) target = $region36
    $region35: #{adaptive_cache_attention_forward.6} parent=5 // pred_region
      %s193 = ssub.s32 %s8, 2
      // Predicated region
      $region37: #{adaptive_cache_attention_forward.6} parent=35 // pred_check
        %p194 = pneg %p89
      $region38: #{adaptive_cache_attention_forward.6} parent=35 // pred_check_branch
        %196 = sbr.rel (%p194) target = $region40
      $region39: #{adaptive_cache_attention_forward.6} parent=35 // pred_region
        %p197 = scmp.lt.s32.totalorder %s14, 1
        %s198 = scalar_select %p197, %s14, 1
        %s199 = smul.addr %s198, 16
        %s200 = smul.addr %s199, 2
        %s201 = scalar_lea.vmem %s2, %s200
      $region40: #{adaptive_cache_attention_forward.6} parent=35 // pred_fallthru
        _
    $region36: #{adaptive_cache_attention_forward.6} parent=5 // pred_fallthru
      _
  $region6: #{adaptive_cache_attention_forward.6} parent=0 // loop_footer
    %s12 = sadd.s32 1, %s8
  $region7: #{adaptive_cache_attention_forward.6} parent=0 // loop_footer_branch
    %7 = sbr.rel target = $region3
  $region8: #{adaptive_cache_attention_forward.6} parent=0 // loop_exit
    _

// kernel: adaptive_cache_attention_forward.9
$region0: #{adaptive_cache_attention_forward.9}
  #allocation0 [shape = 'u32[]', space=smem, size = 0x4, offset = 0x4, fixed_abs, tag = 'smem constant byte address 0x4 - core index']
  #allocation1 [shape = 'u32[144,128]{1,0:T(1,128)}', space=vmem, size = 0x12000, scoped, tag = 'internal scratch']
  #allocation2 [shape = 'f32[16,32]{1,0:T(8,128)}', space=vmem, size = 0x2000, scoped, tag = 'scratch operand']
  %s0 = inlined_call_operand.vmem [shape: f32[16,32], index: 0, kind: input, shape index: {}]
  %s1 = inlined_call_operand.vmem [shape: f32[32,32], index: 1, kind: input, shape index: {}]
  %s2 = inlined_call_operand.hbm [shape: f32[16,32], index: 2, kind: output, shape index: {}]
  %s3 = sld [smem:[#allocation0]]
  $region26: #{adaptive_cache_attention_forward.9} parent=0
    _
  %s5 = ssub.s32 1, %s3
  %s6 = scalar_select 0, %s5, %s3
  $region1: #{adaptive_cache_attention_forward.9} parent=0
    #allocation3 [shape = 'u8[8192]{0}', space=vmem, size = 0x2000, scoped, tag = 'output window, operand 0, single buffered']
    #allocation4 [shape = 's32[1]{0}', space=sflag, size = 0x4, scoped, tag = 'scoped memory for adaptive_cache_attention_forward.9']
    %7 = vsyncpa [#allocation4], 0
    // Predicated region
    $region2: #{adaptive_cache_attention_forward.9} parent=1 // pred_check
      _
    $region3: #{adaptive_cache_attention_forward.9} parent=1 // pred_check_branch
      %9 = sbr.rel (0) target = $region5
    $region4: #{adaptive_cache_attention_forward.9} parent=1 // pred_region
      _
    $region5: #{adaptive_cache_attention_forward.9} parent=1 // pred_fallthru
      _
    // Predicated region
    $region6: #{adaptive_cache_attention_forward.9} parent=1 // pred_check
      _
    $region7: #{adaptive_cache_attention_forward.9} parent=1 // pred_check_branch
      %11 = sbr.rel (0) target = $region9
    $region8: #{adaptive_cache_attention_forward.9} parent=1 // pred_region
      _
    $region9: #{adaptive_cache_attention_forward.9} parent=1 // pred_fallthru
      _
    %p12 = scmp.eq.s32.totalorder 0, 0
    // Predicated region
    $region10: #{adaptive_cache_attention_forward.9} parent=1 // pred_check
      %p13 = pneg %p12
    $region11: #{adaptive_cache_attention_forward.9} parent=1 // pred_check_branch
      %15 = sbr.rel (%p13) target = $region13
    $region12: #{adaptive_cache_attention_forward.9} parent=1 // pred_region
      %vm16 = vcmask 261120
      %17 = vst.msk [vmem:[#allocation2] sm:$0xff] %vm16, 0.0
      %18 = vst.msk [vmem:[#allocation2 + $0x8] sm:$0xff] %vm16, 0.0
    $region13: #{adaptive_cache_attention_forward.9} parent=1 // pred_fallthru
      _
    %v19 = vld [vmem:[#allocation2] sm:$0xff]
    %v20 = vld [vmem:[#allocation2 + $0x8] sm:$0xff]
    %v21 = vld [vmem:[%s0] sm:$0xff]
    %v22 = vld [vmem:[%s0 + $0x8] sm:$0xff]
    %v23 = vld [vmem:[%s1] sm:$0xff]
    %v24 = vld [vmem:[%s1 + $0x8] sm:$0xff]
    %v25 = vld [vmem:[%s1 + $0x10] sm:$0xff]
    %v26 = vld [vmem:[%s1 + $0x18] sm:$0xff]
    %vm27 = vcmask 261120
    %v29 = vsel %vm27, %v21, 0
    %v32 = vsel %vm27, %v22, 0
    %34 = vmatprep.subr.mxu0 0.0
    %35 = vmatpush1.msra.mxu0 0.0
    %36 = vmatprep.subr.mxu0 0.0
    %37 = vmatpush1.msra.mxu0 0.0
    %38 = vmatprep.subr.mxu0 0.0
    %39 = vmatpush1.msra.mxu0 0.0
    %40 = vmatprep.subr.mxu0 0.0
    %41 = vmatpush1.msra.mxu0 0.0
    %42 = vmatprep.subr.mxu0 0.0
    %43 = vmatpush1.msra.mxu0 0.0
    %44 = vmatprep.subr.mxu0 0.0
    %45 = vmatpush1.msra.mxu0 0.0
    %46 = vmatprep.subr.mxu0 0.0
    %47 = vmatpush1.msra.mxu0 0.0
    %48 = vmatprep.subr.mxu0 0.0
    %49 = vmatpush1.msra.mxu0 0.0
    %50 = vmatprep.subr.mxu0 0.0
    %51 = vmatpush1.msra.mxu0 0.0
    %52 = vmatprep.subr.mxu0 0.0
    %53 = vmatpush1.msra.mxu0 0.0
    %54 = vmatprep.subr.mxu0 0.0
    %55 = vmatpush1.msra.mxu0 0.0
    %56 = vmatprep.subr.mxu0 0.0
    %57 = vmatpush1.msra.mxu0 0.0
    %58 = vmatprep.subr.mxu0 0.0
    %59 = vmatpush1.msra.mxu0 %v26
    %60 = vmatprep.subr.mxu0 0.0
    %61 = vmatpush1.msra.mxu0 %v25
    %62 = vmatprep.subr.mxu0 0.0
    %63 = vmatpush1.msra.mxu0 %v24
    %64 = vmatprep.subr.mxu0 0.0
    %65 = vmatpush1.msra.mxu0 %v23
    %66 = vmatprep.subr.mxu0 0.0
    %67 = vmatpush2.msra.mxu0 0.0
    %68 = vmatprep.subr.mxu0 0.0
    %69 = vmatpush2.msra.mxu0 0.0
    %70 = vmatprep.subr.mxu0 0.0
    %71 = vmatpush2.msra.mxu0 0.0
    %72 = vmatprep.subr.mxu0 0.0
    %73 = vmatpush2.msra.mxu0 0.0
    %74 = vmatprep.subr.mxu0 0.0
    %75 = vmatpush2.msra.mxu0 0.0
    %76 = vmatprep.subr.mxu0 0.0
    %77 = vmatpush2.msra.mxu0 0.0
    %78 = vmatprep.subr.mxu0 0.0
    %79 = vmatpush2.msra.mxu0 0.0
    %80 = vmatprep.subr.mxu0 0.0
    %81 = vmatpush2.msra.mxu0 0.0
    %82 = vmatprep.subr.mxu0 0.0
    %83 = vmatpush2.msra.mxu0 0.0
    %84 = vmatprep.subr.mxu0 0.0
    %85 = vmatpush2.msra.mxu0 0.0
    %86 = vmatprep.subr.mxu0 0.0
    %87 = vmatpush2.msra.mxu0 0.0
    %88 = vmatprep.subr.mxu0 0.0
    %89 = vmatpush2.msra.mxu0 0.0
    %90 = vmatprep.subr.mxu0 0.0
    %91 = vmatpush2.msra.mxu0 0.0
    %92 = vmatprep.subr.mxu0 0.0
    %93 = vmatpush2.msra.mxu0 0.0
    %94 = vmatprep.subr.mxu0 0.0
    %95 = vmatpush2.msra.mxu0 0.0
    %96 = vmatprep.subr.mxu0 0.0
    %97 = vmatpush2.msra.mxu0 0.0
    %98 = vmatprep.mubr.f32.mxu0 0.0
    %99 = vmatmul.mubr.f32.gmra.mxu0 %v29
    %v100 = vpop.f32.mrf.mxu0
    %v101 = vadd.f32 0.0, %v100
    %v102 = vpop.f32.mrf.mxu0
    %103 = vmatprep.mubr.f32.mxu0 0.0
    %104 = vmatmul.mubr.f32.gmra.mxu0 %v32
    %v105 = vpop.f32.mrf.mxu0
    %v106 = vadd.f32 0.0, %v105
    %v107 = vpop.f32.mrf.mxu0
    %108 = vdwg.mxu0
    %v109 = vadd.f32 %v19, %v101
    %v110 = vadd.f32 %v20, %v106
    %111 = vst.msk [vmem:[#allocation2] sm:$0xff] %vm27, %v109
    %112 = vst.msk [vmem:[#allocation2 + $0x8] sm:$0xff] %vm27, %v110
    // Predicated region
    $region14: #{adaptive_cache_attention_forward.9} parent=1 // pred_check
      %p113 = pneg %p12
    $region15: #{adaptive_cache_attention_forward.9} parent=1 // pred_check_branch
      %115 = sbr.rel (%p113) target = $region17
    $region16: #{adaptive_cache_attention_forward.9} parent=1 // pred_region
      %v116 = vld [vmem:[#allocation2] sm:$0xff]
      %v117 = vld [vmem:[#allocation2 + $0x8] sm:$0xff]
      %118 = vst.msk [vmem:[#allocation3] sm:$0xff] %vm27, %v116
      %119 = vst.msk [vmem:[#allocation3 + $0x8] sm:$0xff] %vm27, %v117
    $region17: #{adaptive_cache_attention_forward.9} parent=1 // pred_fallthru
      _
    // Predicated region
    $region18: #{adaptive_cache_attention_forward.9} parent=1 // pred_check
      _
    $region19: #{adaptive_cache_attention_forward.9} parent=1 // pred_check_branch
      %121 = sbr.rel (0) target = $region21
    $region20: #{adaptive_cache_attention_forward.9} parent=1 // pred_region
      %s123 = ssub.s32 256, 256
      %124 = vsyncadd [#allocation4], %s123
      %s125 = sshll.u32 [#allocation3], 4
      %s126 = int_to_ptr.vmem [resolvable:$true] %s125
      %131 = dma.vmem_to_hbm [thread:$0]  %s126, 256, %s2, [#allocation4], 128, 128, 8
    $region21: #{adaptive_cache_attention_forward.9} parent=1 // pred_fallthru
      _
    // Predicated region
    $region22: #{adaptive_cache_attention_forward.9} parent=1 // pred_check
      _
    $region23: #{adaptive_cache_attention_forward.9} parent=1 // pred_check_branch
      %133 = sbr.rel (0) target = $region25
    $region24: #{adaptive_cache_attention_forward.9} parent=1 // pred_region
      %134 = dma.done [#allocation4], 256
    $region25: #{adaptive_cache_attention_forward.9} parent=1 // pred_fallthru
      _
    %135 = vsyncpa [#allocation4], 1

// kernel: adaptive_cache_attention_forward.8
$region0: #{adaptive_cache_attention_forward.8}
  #allocation0 [shape = 'u32[]', space=smem, size = 0x4, offset = 0x4, fixed_abs, tag = 'smem constant byte address 0x4 - core index']
  #allocation1 [shape = 'u32[144,128]{1,0:T(1,128)}', space=vmem, size = 0x12000, scoped, tag = 'internal scratch']
  #allocation2 [shape = 'f32[4,8,1]{2,1,0:T(8,128)}', space=vmem, size = 0x4000, scoped, tag = 'scratch operand']
  #allocation3 [shape = 'f32[4,8,1]{2,1,0:T(8,128)}', space=vmem, size = 0x4000, scoped, tag = 'scratch operand']
  #allocation4 [shape = 'f32[4,8,8]{2,1,0:T(8,128)}', space=vmem, size = 0x4000, scoped, tag = 'scratch operand']
  %s0 = inlined_call_operand.vmem [shape: f32[2,8,4,8], index: 0, kind: input, shape index: {}]
  %s1 = inlined_call_operand.vmem [shape: f32[2,16,2,8], index: 1, kind: input, shape index: {}]
  %s2 = inlined_call_operand.vmem [shape: f32[2,16,2,8], index: 2, kind: input, shape index: {}]
  %s3 = inlined_call_operand.vmem [shape: f32[8,16], index: 3, kind: input, shape index: {}]
  %s4 = inlined_call_operand.vmem [shape: f32[2,8,4,8], index: 4, kind: output, shape index: {}]
  %s5 = sld [smem:[#allocation0]]
  $region57: #{adaptive_cache_attention_forward.8} parent=0
    _
  %s7 = ssub.s32 1, %s5
  %s8 = scalar_select 0, %s7, %s5
  loop: start=0, step=1, limit=4
  $region2: #{adaptive_cache_attention_forward.8} parent=0 // loop_pre_header
    _
  $region3: #{adaptive_cache_attention_forward.8} parent=0 // loop_header
    %s10 = sphi 0, %s14
    %p11 = scmp.ge.s32.totalorder %s10, 4
    %s17 = sphi 0, %s36
    %s18 = sphi 0, %s32
    %s19 = sphi 0, %s28
    %s20 = sphi 0, %s17
    %s21 = sphi 0, %s18
    %s22 = sphi 0, %s19
    %s23 = sphi 0, %s20
    %s24 = sphi 0, %s21
    %s25 = sphi 0, %s22
    %s41 = sphi 0, %s43
    %s44 = sphi 0, %s41
    %s45 = sphi 0, %s44
    %s61 = sphi 0, %s45
    %s69 = sphi 0, %s71
    %s72 = sphi 0, %s69
    %s73 = sphi 0, %s72
    %s89 = sphi 0, %s73
    %s97 = sphi 0, %s99
    %s100 = sphi 0, %s97
    %s101 = sphi 0, %s100
    %s117 = sphi 0, %s101
    %s125 = sphi 0, %s127
    %s128 = sphi 0, %s125
    %s129 = sphi 0, %s128
    %s145 = sphi 0, %s129
    %s153 = sphi 0, %s155
    %s156 = sphi 0, %s153
    %s157 = sphi 0, %s156
    %s173 = sphi 0, %s157
  $region4: #{adaptive_cache_attention_forward.8} parent=0 // loop_header_branch
    %13 = sbr.rel (%p11) target = $region8
  $region5: #{adaptive_cache_attention_forward.8} parent=0 // loop_body
    %s15 = ssub.s32 %s10, 1
    %s16 = ssub.s32 %s10, 2
    %s26 = sadd.s32 1, %s19
    %p27 = scmp.ge.s32.totalorder %s26, 1
    %s28 = scalar_select %p27, 0, %s26
    %s29 = sadd.s32 1, %s18
    %s30 = scalar_select %p27, %s29, %s18
    %p31 = scmp.ge.s32.totalorder %s30, 1
    %s32 = scalar_select %p31, 0, %s30
    %s33 = sadd.s32 1, %s17
    %s34 = scalar_select %p31, %s33, %s17
    %p35 = scmp.ge.s32.totalorder %s34, 2
    %s36 = scalar_select %p35, 0, %s34
    %s37 = ssub.s32 %s17, %s36
    %s38 = ssub.s32 %s18, %s32
    %s39 = sor.u32 %s37, %s38
    %p40 = scmp.eq.s32.totalorder %s39, 0
    %s42 = sadd.s32 %s41, 1
    %s43 = scalar_select %p40, %s41, %s42
    %p46 = pneg %p40
    %p47 = scmp.eq.s32.totalorder %s10, 1
    %p48 = por %p46, %p47
    %p49 = scmp.ne.s32.totalorder %s41, %s44
    %p50 = scmp.eq.s32.totalorder %s10, 0
    %p51 = por %p49, %p50
    %p52 = scmp.ne.s32.totalorder %s41, %s44
    %p53 = scmp.eq.s32.totalorder %s15, 1
    %p54 = por %p52, %p53
    %p55 = scmp.ne.s32.totalorder %s44, %s45
    %p56 = scmp.eq.s32.totalorder %s15, 0
    %p57 = por %p55, %p56
    %p58 = scmp.ne.s32.totalorder %s44, %s45
    %p59 = scmp.eq.s32.totalorder %s16, 1
    %p60 = por %p58, %p59
    %p62 = scmp.ne.s32.totalorder %s45, %s61
    %p63 = scmp.eq.s32.totalorder %s16, 0
    %p64 = por %p62, %p63
    %s65 = ssub.s32 %s17, %s36
    %s66 = ssub.s32 %s19, %s28
    %s67 = sor.u32 %s65, %s66
    %p68 = scmp.eq.s32.totalorder %s67, 0
    %s70 = sadd.s32 %s69, 1
    %s71 = scalar_select %p68, %s69, %s70
    %p74 = pneg %p68
    %p75 = scmp.eq.s32.totalorder %s10, 1
    %p76 = por %p74, %p75
    %p77 = scmp.ne.s32.totalorder %s69, %s72
    %p78 = scmp.eq.s32.totalorder %s10, 0
    %p79 = por %p77, %p78
    %p80 = scmp.ne.s32.totalorder %s69, %s72
    %p81 = scmp.eq.s32.totalorder %s15, 1
    %p82 = por %p80, %p81
    %p83 = scmp.ne.s32.totalorder %s72, %s73
    %p84 = scmp.eq.s32.totalorder %s15, 0
    %p85 = por %p83, %p84
    %p86 = scmp.ne.s32.totalorder %s72, %s73
    %p87 = scmp.eq.s32.totalorder %s16, 1
    %p88 = por %p86, %p87
    %p90 = scmp.ne.s32.totalorder %s73, %s89
    %p91 = scmp.eq.s32.totalorder %s16, 0
    %p92 = por %p90, %p91
    %s93 = ssub.s32 %s17, %s36
    %s94 = ssub.s32 %s19, %s28
    %s95 = sor.u32 %s93, %s94
    %p96 = scmp.eq.s32.totalorder %s95, 0
    %s98 = sadd.s32 %s97, 1
    %s99 = scalar_select %p96, %s97, %s98
    %p102 = pneg %p96
    %p103 = scmp.eq.s32.totalorder %s10, 1
    %p104 = por %p102, %p103
    %p105 = scmp.ne.s32.totalorder %s97, %s100
    %p106 = scmp.eq.s32.totalorder %s10, 0
    %p107 = por %p105, %p106
    %p108 = scmp.ne.s32.totalorder %s97, %s100
    %p109 = scmp.eq.s32.totalorder %s15, 1
    %p110 = por %p108, %p109
    %p111 = scmp.ne.s32.totalorder %s100, %s101
    %p112 = scmp.eq.s32.totalorder %s15, 0
    %p113 = por %p111, %p112
    %p114 = scmp.ne.s32.totalorder %s100, %s101
    %p115 = scmp.eq.s32.totalorder %s16, 1
    %p116 = por %p114, %p115
    %p118 = scmp.ne.s32.totalorder %s101, %s117
    %p119 = scmp.eq.s32.totalorder %s16, 0
    %p120 = por %p118, %p119
    %s121 = ssub.s32 %s18, %s32
    %s122 = ssub.s32 %s19, %s28
    %s123 = sor.u32 %s121, %s122
    %p124 = scmp.eq.s32.totalorder %s123, 0
    %s126 = sadd.s32 %s125, 1
    %s127 = scalar_select %p124, %s125, %s126
    %p130 = pneg %p124
    %p131 = scmp.eq.s32.totalorder %s10, 1
    %p132 = por %p130, %p131
    %p133 = scmp.ne.s32.totalorder %s125, %s128
    %p134 = scmp.eq.s32.totalorder %s10, 0
    %p135 = por %p133, %p134
    %p136 = scmp.ne.s32.totalorder %s125, %s128
    %p137 = scmp.eq.s32.totalorder %s15, 1
    %p138 = por %p136, %p137
    %p139 = scmp.ne.s32.totalorder %s128, %s129
    %p140 = scmp.eq.s32.totalorder %s15, 0
    %p141 = por %p139, %p140
    %p142 = scmp.ne.s32.totalorder %s128, %s129
    %p143 = scmp.eq.s32.totalorder %s16, 1
    %p144 = por %p142, %p143
    %p146 = scmp.ne.s32.totalorder %s129, %s145
    %p147 = scmp.eq.s32.totalorder %s16, 0
    %p148 = por %p146, %p147
    %s149 = ssub.s32 %s17, %s36
    %s150 = ssub.s32 %s18, %s32
    %s151 = sor.u32 %s149, %s150
    %p152 = scmp.eq.s32.totalorder %s151, 0
    %s154 = sadd.s32 %s153, 1
    %s155 = scalar_select %p152, %s153, %s154
    %p158 = pneg %p152
    %p159 = scmp.eq.s32.totalorder %s10, 1
    %p160 = por %p158, %p159
    %p161 = scmp.ne.s32.totalorder %s153, %s156
    %p162 = scmp.eq.s32.totalorder %s10, 0
    %p163 = por %p161, %p162
    %p164 = scmp.ne.s32.totalorder %s153, %s156
    %p165 = scmp.eq.s32.totalorder %s15, 1
    %p166 = por %p164, %p165
    %p167 = scmp.ne.s32.totalorder %s156, %s157
    %p168 = scmp.eq.s32.totalorder %s15, 0
    %p169 = por %p167, %p168
    %p170 = scmp.ne.s32.totalorder %s156, %s157
    %p171 = scmp.eq.s32.totalorder %s16, 1
    %p172 = por %p170, %p171
    %p174 = scmp.ne.s32.totalorder %s157, %s173
    %p175 = scmp.eq.s32.totalorder %s16, 0
    %p176 = por %p174, %p175
    %p177 = scmp.le.s32.totalorder 1, %s10
    %p178 = scmp.lt.s32.totalorder %s10, 3
    %p179 = pnand %p177, %p178
    %p180 = pneg %p179
    // Predicated region
    $region9: #{adaptive_cache_attention_forward.8} parent=5 // pred_check
      _
    $region10: #{adaptive_cache_attention_forward.8} parent=5 // pred_check_branch
      %182 = sbr.rel (%p179) target = $region12
    $region11: #{adaptive_cache_attention_forward.8} parent=5 // pred_region
      %s183 = ssub.s32 %s10, 1
      // Predicated region
      $region13: #{adaptive_cache_attention_forward.8} parent=11 // pred_check
        %p184 = pneg %p141
      $region14: #{adaptive_cache_attention_forward.8} parent=11 // pred_check_branch
        %186 = sbr.rel (%p184) target = $region16
      $region15: #{adaptive_cache_attention_forward.8} parent=11 // pred_region
        %p187 = scmp.lt.s32.totalorder %s21, 0
        %s188 = scalar_select %p187, %s21, 0
        %p189 = scmp.lt.s32.totalorder %s22, 0
        %s190 = scalar_select %p189, %s22, 0
        %s191 = sadd.s32 %s190, %s188
        %s192 = smul.addr %s191, 8
        %s193 = scalar_lea.vmem %s3, %s192
      $region16: #{adaptive_cache_attention_forward.8} parent=11 // pred_fallthru
        _
    $region12: #{adaptive_cache_attention_forward.8} parent=5 // pred_fallthru
      _
    %p194 = scmp.lt.s32.totalorder %s10, 2
    // Predicated region
    $region17: #{adaptive_cache_attention_forward.8} parent=5 // pred_check
      %p195 = pneg %p194
    $region18: #{adaptive_cache_attention_forward.8} parent=5 // pred_check_branch
      %197 = sbr.rel (%p195) target = $region20
    $region19: #{adaptive_cache_attention_forward.8} parent=5 // pred_region
      // Predicated region
      $region21: #{adaptive_cache_attention_forward.8} parent=19 // pred_check
        %p198 = pneg %p51
      $region22: #{adaptive_cache_attention_forward.8} parent=19 // pred_check_branch
        %200 = sbr.rel (%p198) target = $region24
      $region23: #{adaptive_cache_attention_forward.8} parent=19 // pred_region
        %s201 = smul.u32 8, %s18
        %p202 = scmp.lt.s32.totalorder %s17, 1
        %s203 = scalar_select %p202, %s17, 1
        %p204 = scmp.lt.s32.totalorder %s201, 7
        %s205 = scalar_select %p204, %s201, 7
        %s206 = smul.addr %s203, 8
        %s207 = sadd.s32 %s205, %s206
        %s208 = smul.addr %s207, 4
        %s209 = scalar_lea.vmem %s0, %s208
        %s210 = smul.u32 8, %s18
      $region24: #{adaptive_cache_attention_forward.8} parent=19 // pred_fallthru
        _
      // Predicated region
      $region25: #{adaptive_cache_attention_forward.8} parent=19 // pred_check
        %p211 = pneg %p79
      $region26: #{adaptive_cache_attention_forward.8} parent=19 // pred_check_branch
        %213 = sbr.rel (%p211) target = $region28
      $region27: #{adaptive_cache_attention_forward.8} parent=19 // pred_region
        %s214 = smul.u32 16, %s19
        %p215 = scmp.lt.s32.totalorder %s17, 1
        %s216 = scalar_select %p215, %s17, 1
        %p217 = scmp.lt.s32.totalorder %s214, 15
        %s218 = scalar_select %p217, %s214, 15
        %s219 = smul.addr %s216, 16
        %s220 = sadd.s32 %s218, %s219
        %s221 = smul.addr %s220, 2
        %s222 = scalar_lea.vmem %s1, %s221
        %s223 = smul.u32 16, %s19
      $region28: #{adaptive_cache_attention_forward.8} parent=19 // pred_fallthru
        _
      // Predicated region
      $region29: #{adaptive_cache_attention_forward.8} parent=19 // pred_check
        %p224 = pneg %p107
      $region30: #{adaptive_cache_attention_forward.8} parent=19 // pred_check_branch
        %226 = sbr.rel (%p224) target = $region32
      $region31: #{adaptive_cache_attention_forward.8} parent=19 // pred_region
        %s227 = smul.u32 16, %s19
        %p228 = scmp.lt.s32.totalorder %s17, 1
        %s229 = scalar_select %p228, %s17, 1
        %p230 = scmp.lt.s32.totalorder %s227, 15
        %s231 = scalar_select %p230, %s227, 15
        %s232 = smul.addr %s229, 16
        %s233 = sadd.s32 %s231, %s232
        %s234 = smul.addr %s233, 2
        %s235 = scalar_lea.vmem %s2, %s234
        %s236 = smul.u32 16, %s19
      $region32: #{adaptive_cache_attention_forward.8} parent=19 // pred_fallthru
        _
    $region20: #{adaptive_cache_attention_forward.8} parent=5 // pred_fallthru
      _
    %p237 = scmp.le.s32.totalorder 1, %s10
    %p238 = scmp.lt.s32.totalorder %s10, 3
    %p239 = pnand %p237, %p238
    %p240 = pneg %p239
    // Predicated region
    $region33: #{adaptive_cache_attention_forward.8} parent=5 // pred_check
      _
    $region34: #{adaptive_cache_attention_forward.8} parent=5 // pred_check_branch
      %242 = sbr.rel (%p239) target = $region36
    $region35: #{adaptive_cache_attention_forward.8} parent=5 // pred_region
      %s243 = ssub.s32 %s10, 1
      %s244 = smul.u32 8, %s21
      %p245 = scmp.lt.s32.totalorder %s20, 1
      %s246 = scalar_select %p245, %s20, 1
      %p247 = scmp.lt.s32.totalorder %s244, 7
      %s248 = scalar_select %p247, %s244, 7
      %s249 = smul.addr %s246, 8
      %s250 = sadd.s32 %s248, %s249
      %s251 = smul.addr %s250, 4
      %s252 = scalar_lea.vmem %s0, %s251
      %p253 = pneg %p57
      %p254 = pneg %p54
      %s255 = smul.u32 16, %s22
      %p256 = scmp.lt.s32.totalorder %s20, 1
      %s257 = scalar_select %p256, %s20, 1
      %p258 = scmp.lt.s32.totalorder %s255, 15
      %s259 = scalar_select %p258, %s255, 15
      %s260 = smul.addr %s257, 16
      %s261 = sadd.s32 %s259, %s260
      %s262 = smul.addr %s261, 2
      %s263 = scalar_lea.vmem %s1, %s262
      %p264 = pneg %p85
      %p265 = pneg %p82
      %s266 = smul.u32 16, %s22
      %p267 = scmp.lt.s32.totalorder %s20, 1
      %s268 = scalar_select %p267, %s20, 1
      %p269 = scmp.lt.s32.totalorder %s266, 15
      %s270 = scalar_select %p269, %s266, 15
      %s271 = smul.addr %s268, 16
      %s272 = sadd.s32 %s270, %s271
      %s273 = smul.addr %s272, 2
      %s274 = scalar_lea.vmem %s2, %s273
      %p275 = pneg %p113
      %p276 = pneg %p110
      %p277 = scmp.lt.s32.totalorder %s21, 0
      %s278 = scalar_select %p277, %s21, 0
      %p279 = scmp.lt.s32.totalorder %s22, 0
      %s280 = scalar_select %p279, %s22, 0
      %s281 = sadd.s32 %s280, %s278
      %s282 = smul.addr %s281, 8
      %s283 = scalar_lea.vmem %s3, %s282
      %p284 = pneg %p141
      %p285 = pneg %p138
      %p286 = pneg %p169
      %p287 = pneg %p166
      %s288 = smul.u32 8, %s21
      %p289 = scmp.lt.s32.totalorder %s20, 1
      %s290 = scalar_select %p289, %s20, 1
      %p291 = scmp.lt.s32.totalorder %s288, 7
      %s292 = scalar_select %p291, %s288, 7
      %s293 = smul.addr %s290, 8
      %s294 = sadd.s32 %s292, %s293
      %s295 = smul.addr %s294, 4
      %s296 = scalar_lea.vmem %s4, %s295
      %s297 = smul.u32 8, %s21
      %p298 = scmp.lt.s32.totalorder %s20, 1
      %s299 = scalar_select %p298, %s20, 1
      %p300 = scmp.lt.s32.totalorder %s297, 7
      %s301 = scalar_select %p300, %s297, 7
      %s302 = smul.addr %s299, 8
      %s303 = sadd.s32 %s301, %s302
      %s304 = smul.addr %s303, 4
      %s305 = scalar_lea.vmem %s0, %s304
      %s306 = smul.u32 8, %s21
      %s307 = smul.u32 16, %s22
      %p308 = scmp.lt.s32.totalorder %s20, 1
      %s309 = scalar_select %p308, %s20, 1
      %p310 = scmp.lt.s32.totalorder %s307, 15
      %s311 = scalar_select %p310, %s307, 15
      %s312 = smul.addr %s309, 16
      %s313 = sadd.s32 %s311, %s312
      %s314 = smul.addr %s313, 2
      %s315 = scalar_lea.vmem %s1, %s314
      %s316 = smul.u32 16, %s22
      %s317 = smul.u32 16, %s22
      %p318 = scmp.lt.s32.totalorder %s20, 1
      %s319 = scalar_select %p318, %s20, 1
      %p320 = scmp.lt.s32.totalorder %s317, 15
      %s321 = scalar_select %p320, %s317, 15
      %s322 = smul.addr %s319, 16
      %s323 = sadd.s32 %s321, %s322
      %s324 = smul.addr %s323, 2
      %s325 = scalar_lea.vmem %s2, %s324
      %s326 = smul.u32 16, %s22
      %p327 = scmp.lt.s32.totalorder %s21, 0
      %s328 = scalar_select %p327, %s21, 0
      %p329 = scmp.lt.s32.totalorder %s22, 0
      %s330 = scalar_select %p329, %s22, 0
      %s331 = sadd.s32 %s330, %s328
      %s332 = smul.addr %s331, 8
      %s333 = scalar_lea.vmem %s3, %s332
      %s334 = smul.u32 8, %s21
      %p335 = scmp.lt.s32.totalorder %s20, 1
      %s336 = scalar_select %p335, %s20, 1
      %p337 = scmp.lt.s32.totalorder %s334, 7
      %s338 = scalar_select %p337, %s334, 7
      %s339 = smul.addr %s336, 8
      %s340 = sadd.s32 %s338, %s339
      %s341 = smul.addr %s340, 4
      %s342 = scalar_lea.vmem %s4, %s341
      %s343 = smul.u32 8, %s21
      %p344 = scmp.eq.s32.totalorder %s22, 0
      // Predicated region
      $region37: #{adaptive_cache_attention_forward.8} parent=35 // pred_check
        %p345 = pneg %p344
      $region38: #{adaptive_cache_attention_forward.8} parent=35 // pred_check_branch
        %347 = sbr.rel (%p345) target = $region40
      $region39: #{adaptive_cache_attention_forward.8} parent=35 // pred_region
        %vm348 = vcmask 7168
        %349 = vst.msk [vmem:[#allocation2] sm:$0xff] %vm348, -1e+30
        %350 = vst.msk [vmem:[#allocation2 + $0x8] sm:$0xff] %vm348, -1e+30
        %351 = vst.msk [vmem:[#allocation2 + $0x10] sm:$0xff] %vm348, -1e+30
        %352 = vst.msk [vmem:[#allocation2 + $0x18] sm:$0xff] %vm348, -1e+30
        %353 = vst.msk [vmem:[#allocation3] sm:$0xff] %vm348, 0.0
        %354 = vst.msk [vmem:[#allocation3 + $0x8] sm:$0xff] %vm348, 0.0
        %355 = vst.msk [vmem:[#allocation3 + $0x10] sm:$0xff] %vm348, 0.0
        %356 = vst.msk [vmem:[#allocation3 + $0x18] sm:$0xff] %vm348, 0.0
        %vm357 = vcmask 64512
        %358 = vst.msk [vmem:[#allocation4] sm:$0xff] %vm357, 0.0
        %359 = vst.msk [vmem:[#allocation4 + $0x8] sm:$0xff] %vm357, 0.0
        %360 = vst.msk [vmem:[#allocation4 + $0x10] sm:$0xff] %vm357, 0.0
        %361 = vst.msk [vmem:[#allocation4 + $0x18] sm:$0xff] %vm357, 0.0
      $region40: #{adaptive_cache_attention_forward.8} parent=35 // pred_fallthru
        _
      %v362 = vld [vmem:[%s333] sm:$0xff]
      %s363 = smul.u32 %s22, 16
      %v364 = vlaneseq
      %v365 = vand.u32 %v364, 127
      %v366 = vstv %s363
      %v367 = vadd.s32 %v366, %v365
      %vm368 = vcmp.lt.s32.totalorder %v367, 8
      %v369 = vld [vmem:[%s315] sm:$0x1]
      %v370 = vld [vmem:[%s315 + $0x2] sm:$0x1]
      %v371 = vld [vmem:[%s315 + $0x4] sm:$0x1]
      %v372 = vld [vmem:[%s315 + $0x6] sm:$0x1]
      %v373 = vld [vmem:[%s315 + $0x8] sm:$0x1]
      %v374 = vld [vmem:[%s315 + $0xa] sm:$0x1]
      %v375 = vld [vmem:[%s315 + $0xc] sm:$0x1]
      %v376 = vld [vmem:[%s315 + $0xe] sm:$0x1]
      %v377 = vld [vmem:[%s315 + $0x10] sm:$0x1]
      %v378 = vld [vmem:[%s315 + $0x12] sm:$0x1]
      %v379 = vld [vmem:[%s315 + $0x14] sm:$0x1]
      %v380 = vld [vmem:[%s315 + $0x16] sm:$0x1]
      %v381 = vld [vmem:[%s315 + $0x18] sm:$0x1]
      %v382 = vld [vmem:[%s315 + $0x1a] sm:$0x1]
      %v383 = vld [vmem:[%s315 + $0x1c] sm:$0x1]
      %v384 = vld [vmem:[%s315 + $0x1e] sm:$0x1]
      %v385 = vld [vmem:[%s325] sm:$0x1]
      %v386 = vld [vmem:[%s325 + $0x2] sm:$0x1]
      %v387 = vld [vmem:[%s325 + $0x4] sm:$0x1]
      %v388 = vld [vmem:[%s325 + $0x6] sm:$0x1]
      %v389 = vld [vmem:[%s325 + $0x8] sm:$0x1]
      %v390 = vld [vmem:[%s325 + $0xa] sm:$0x1]
      %v391 = vld [vmem:[%s325 + $0xc] sm:$0x1]
      %v392 = vld [vmem:[%s325 + $0xe] sm:$0x1]
      %v393 = vld [vmem:[%s325 + $0x10] sm:$0x1]
      %v394 = vld [vmem:[%s325 + $0x12] sm:$0x1]
      %v395 = vld [vmem:[%s325 + $0x14] sm:$0x1]
      %v396 = vld [vmem:[%s325 + $0x16] sm:$0x1]
      %v397 = vld [vmem:[%s325 + $0x18] sm:$0x1]
      %v398 = vld [vmem:[%s325 + $0x1a] sm:$0x1]
      %v399 = vld [vmem:[%s325 + $0x1c] sm:$0x1]
      %v400 = vld [vmem:[%s325 + $0x1e] sm:$0x1]
      %v401 = vld [vmem:[%s305] sm:$0x1]
      %v402 = vld [vmem:[%s305 + $0x4] sm:$0x1]
      %v403 = vld [vmem:[%s305 + $0x8] sm:$0x1]
      %v404 = vld [vmem:[%s305 + $0xc] sm:$0x1]
      %v405 = vld [vmem:[%s305 + $0x10] sm:$0x1]
      %v406 = vld [vmem:[%s305 + $0x14] sm:$0x1]
      %v407 = vld [vmem:[%s305 + $0x18] sm:$0x1]
      %v408 = vld [vmem:[%s305 + $0x1c] sm:$0x1]
      %v417 = vrot.slane %v402, 7
      %vm418 = vcmask 1041409
      %v419 = vsel %vm418, %v417, %v401
      %v420 = vrot.slane %v403, 6
      %vm421 = vcmask 1042434
      %v422 = vsel %vm421, %v420, %v419
      %v423 = vrot.slane %v404, 5
      %vm424 = vcmask 1043459
      %v425 = vsel %vm424, %v423, %v422
      %v426 = vrot.slane %v405, 4
      %vm427 = vcmask 1044484
      %v428 = vsel %vm427, %v426, %v425
      %v429 = vrot.slane %v406, 3
      %vm430 = vcmask 1045509
      %v431 = vsel %vm430, %v429, %v428
      %v432 = vrot.slane %v407, 2
      %vm433 = vcmask 1046534
      %v434 = vsel %vm433, %v432, %v431
      %v435 = vrot.slane %v408, 1
      %vm436 = vcmask 1047559
      %v437 = vsel %vm436, %v435, %v434
      %v454 = vrot.slane %v370, 7
      %v455 = vsel %vm418, %v454, %v369
      %v456 = vrot.slane %v371, 6
      %v457 = vsel %vm421, %v456, %v455
      %v458 = vrot.slane %v372, 5
      %v459 = vsel %vm424, %v458, %v457
      %v460 = vrot.slane %v373, 4
      %v461 = vsel %vm427, %v460, %v459
      %v462 = vrot.slane %v374, 3
      %v463 = vsel %vm430, %v462, %v461
      %v464 = vrot.slane %v375, 2
      %v465 = vsel %vm433, %v464, %v463
      %v466 = vrot.slane %v376, 1
      %v467 = vsel %vm436, %v466, %v465
      %v468 = vrot.slane %v378, 7
      %v469 = vsel %vm418, %v468, %v377
      %v470 = vrot.slane %v379, 6
      %v471 = vsel %vm421, %v470, %v469
      %v472 = vrot.slane %v380, 5
      %v473 = vsel %vm424, %v472, %v471
      %v474 = vrot.slane %v381, 4
      %v475 = vsel %vm427, %v474, %v473
      %v476 = vrot.slane %v382, 3
      %v477 = vsel %vm430, %v476, %v475
      %v478 = vrot.slane %v383, 2
      %v479 = vsel %vm433, %v478, %v477
      %v480 = vrot.slane %v384, 1
      %v481 = vsel %vm436, %v480, %v479
      %vm482 = vcmask 64512
      %v483 = vsel %vm482, %v437, 0
      %v485 = vsel %vm482, %v467, 0
      %v487 = vsel %vm482, %v481, 0
      %489 = vmatprep.subr.mxu0 0.0
      %490 = vmatpush1.xpose.msra.mxu0 0.0
      %491 = vmatprep.subr.mxu0 0.0
      %492 = vmatpush1.xpose.msra.mxu0 0.0
      %493 = vmatprep.subr.mxu0 0.0
      %494 = vmatpush1.xpose.msra.mxu0 0.0
      %495 = vmatprep.subr.mxu0 0.0
      %496 = vmatpush1.xpose.msra.mxu0 0.0
      %497 = vmatprep.subr.mxu0 0.0
      %498 = vmatpush1.xpose.msra.mxu0 0.0
      %499 = vmatprep.subr.mxu0 0.0
      %500 = vmatpush1.xpose.msra.mxu0 0.0
      %501 = vmatprep.subr.mxu0 0.0
      %502 = vmatpush1.xpose.msra.mxu0 0.0
      %503 = vmatprep.subr.mxu0 0.0
      %504 = vmatpush1.xpose.msra.mxu0 0.0
      %505 = vmatprep.subr.mxu0 0.0
      %506 = vmatpush1.xpose.msra.mxu0 0.0
      %507 = vmatprep.subr.mxu0 0.0
      %508 = vmatpush1.xpose.msra.mxu0 0.0
      %509 = vmatprep.subr.mxu0 0.0
      %510 = vmatpush1.xpose.msra.mxu0 0.0
      %511 = vmatprep.subr.mxu0 0.0
      %512 = vmatpush1.xpose.msra.mxu0 0.0
      %513 = vmatprep.subr.mxu0 0.0
      %514 = vmatpush1.xpose.msra.mxu0 0.0
      %515 = vmatprep.subr.mxu0 0.0
      %516 = vmatpush1.xpose.msra.mxu0 0.0
      %517 = vmatprep.subr.mxu0 0.0
      %518 = vmatpush1.xpose.msra.mxu0 %v487
      %519 = vmatprep.subr.mxu0 0.0
      %520 = vmatpush1.xpose.msra.mxu0 %v485
      %521 = vmatprep.subr.mxu0 0.0
      %522 = vmatpush2.xpose.msra.mxu0 0.0
      %523 = vmatprep.subr.mxu0 0.0
      %524 = vmatpush2.xpose.msra.mxu0 0.0
      %525 = vmatprep.subr.mxu0 0.0
      %526 = vmatpush2.xpose.msra.mxu0 0.0
      %527 = vmatprep.subr.mxu0 0.0
      %528 = vmatpush2.xpose.msra.mxu0 0.0
      %529 = vmatprep.subr.mxu0 0.0
      %530 = vmatpush2.xpose.msra.mxu0 0.0
      %531 = vmatprep.subr.mxu0 0.0
      %532 = vmatpush2.xpose.msra.mxu0 0.0
      %533 = vmatprep.subr.mxu0 0.0
      %534 = vmatpush2.xpose.msra.mxu0 0.0
      %535 = vmatprep.subr.mxu0 0.0
      %536 = vmatpush2.xpose.msra.mxu0 0.0
      %537 = vmatprep.subr.mxu0 0.0
      %538 = vmatpush2.xpose.msra.mxu0 0.0
      %539 = vmatprep.subr.mxu0 0.0
      %540 = vmatpush2.xpose.msra.mxu0 0.0
      %541 = vmatprep.subr.mxu0 0.0
      %542 = vmatpush2.xpose.msra.mxu0 0.0
      %543 = vmatprep.subr.mxu0 0.0
      %544 = vmatpush2.xpose.msra.mxu0 0.0
      %545 = vmatprep.subr.mxu0 0.0
      %546 = vmatpush2.xpose.msra.mxu0 0.0
      %547 = vmatprep.subr.mxu0 0.0
      %548 = vmatpush2.xpose.msra.mxu0 0.0
      %549 = vmatprep.subr.mxu0 0.0
      %550 = vmatpush2.xpose.msra.mxu0 0.0
      %551 = vmatprep.subr.mxu0 0.0
      %552 = vmatpush2.xpose.msra.mxu0 0.0
      %553 = vmatprep.mubr.f32.mxu0 0.0
      %554 = vmatmul.mubr.f32.gmra.mxu0 %v483
      %v555 = vpop.f32.mrf.mxu0
      %v556 = vadd.f32 0.0, %v555
      %v557 = vpop.f32.mrf.mxu0
      %558 = vdwg.mxu0
      %v559 = vmul.f32 %v556, 0.35355338
      %v560 = vadd.f32 %v559, %v362
      %v561 = vsel %vm368, 1, 0
      %vm562 = vcmp.eq.s32.totalorder %v561, 1
      %v563 = vsel %vm562, %v560, -inf
      %v564 = vld [vmem:[#allocation2] sm:$0xff]
      %vm565 = vcmask 130048
      %v566 = vsel %vm565, %v563, -inf
      %567 = vmax.xlane.f32.xlu0 %v566
      %v568 = vpop.xlane.xlu0 %567
      %v569 = vmax.f32 %v564, %v568
      %v570 = vsub.f32 %v564, %v569
      %v571 = vmul.f32 %v570, 1.442695
      %v572 = vpow.pop %v571
      %574 = vset.pattern.permute.xlu0 0
      %575 = vperm.xlu0 %574, %v569
      %v576 = vpop.permute.xlu0 %575
      %v578 = vsub.f32 %v563, %v576
      %v579 = vmul.f32 %v578, 1.442695
      %v580 = vpow.pop %v579
      %v581 = vld [vmem:[#allocation3] sm:$0xff]
      %v582 = vmul.f32 %v572, %v581
      %v583 = vsel %vm565, %v580, 0.0
      %584 = vadd.xlane.f32.xlu0 %v583
      %v585 = vpop.xlane.xlu0 %584
      %v586 = vadd.f32 %v582, %v585
      %vm587 = vcmask 7168
      %588 = vst.msk [vmem:[#allocation3] sm:$0xff] %vm587, %v586
      %v589 = vld [vmem:[#allocation4] sm:$0xff]
      %591 = vset.pattern.permute.xlu0 0
      %592 = vperm.xlu0 %591, %v572
      %v593 = vpop.permute.xlu0 %592
      %v595 = vmul.f32 %v593, %v589
      %v612 = vrot.slane %v386, 7
      %v613 = vsel %vm418, %v612, %v385
      %v614 = vrot.slane %v387, 6
      %v615 = vsel %vm421, %v614, %v613
      %v616 = vrot.slane %v388, 5
      %v617 = vsel %vm424, %v616, %v615
      %v618 = vrot.slane %v389, 4
      %v619 = vsel %vm427, %v618, %v617
      %v620 = vrot.slane %v390, 3
      %v621 = vsel %vm430, %v620, %v619
      %v622 = vrot.slane %v391, 2
      %v623 = vsel %vm433, %v622, %v621
      %v624 = vrot.slane %v392, 1
      %v625 = vsel %vm436, %v624, %v623
      %v626 = vrot.slane %v394, 7
      %v627 = vsel %vm418, %v626, %v393
      %v628 = vrot.slane %v395, 6
      %v629 = vsel %vm421, %v628, %v627
      %v630 = vrot.slane %v396, 5
      %v631 = vsel %vm424, %v630, %v629
      %v632 = vrot.slane %v397, 4
      %v633 = vsel %vm427, %v632, %v631
      %v634 = vrot.slane %v398, 3
      %v635 = vsel %vm430, %v634, %v633
      %v636 = vrot.slane %v399, 2
      %v637 = vsel %vm433, %v636, %v635
      %v638 = vrot.slane %v400, 1
      %v639 = vsel %vm436, %v638, %v637
      %v643 = vsel %vm565, %v580, 0
      %645 = vmatprep.subr.mxu0 0.0
      %646 = vmatpush1.msra.mxu0 0.0
      %647 = vmatprep.subr.mxu0 0.0
      %648 = vmatpush1.msra.mxu0 0.0
      %649 = vmatprep.subr.mxu0 0.0
      %650 = vmatpush1.msra.mxu0 0.0
      %651 = vmatprep.subr.mxu0 0.0
      %652 = vmatpush1.msra.mxu0 0.0
      %653 = vmatprep.subr.mxu0 0.0
      %654 = vmatpush1.msra.mxu0 0.0
      %655 = vmatprep.subr.mxu0 0.0
      %656 = vmatpush1.msra.mxu0 0.0
      %657 = vmatprep.subr.mxu0 0.0
      %658 = vmatpush1.msra.mxu0 0.0
      %659 = vmatprep.subr.mxu0 0.0
      %660 = vmatpush1.msra.mxu0 0.0
      %661 = vmatprep.subr.mxu0 0.0
      %662 = vmatpush1.msra.mxu0 0.0
      %663 = vmatprep.subr.mxu0 0.0
      %664 = vmatpush1.msra.mxu0 0.0
      %665 = vmatprep.subr.mxu0 0.0
      %666 = vmatpush1.msra.mxu0 0.0
      %667 = vmatprep.subr.mxu0 0.0
      %668 = vmatpush1.msra.mxu0 0.0
      %669 = vmatprep.subr.mxu0 0.0
      %670 = vmatpush1.msra.mxu0 0.0
      %671 = vmatprep.subr.mxu0 0.0
      %672 = vmatpush1.msra.mxu0 0.0
      %673 = vmatprep.subr.mxu0 0.0
      %674 = vmatpush1.msra.mxu0 %v639
      %675 = vmatprep.subr.mxu0 0.0
      %676 = vmatpush1.msra.mxu0 %v625
      %677 = vmatprep.subr.mxu0 0.0
      %678 = vmatpush2.msra.mxu0 0.0
      %679 = vmatprep.subr.mxu0 0.0
      %680 = vmatpush2.msra.mxu0 0.0
      %681 = vmatprep.subr.mxu0 0.0
      %682 = vmatpush2.msra.mxu0 0.0
      %683 = vmatprep.subr.mxu0 0.0
      %684 = vmatpush2.msra.mxu0 0.0
      %685 = vmatprep.subr.mxu0 0.0
      %686 = vmatpush2.msra.mxu0 0.0
      %687 = vmatprep.subr.mxu0 0.0
      %688 = vmatpush2.msra.mxu0 0.0
      %689 = vmatprep.subr.mxu0 0.0
      %690 = vmatpush2.msra.mxu0 0.0
      %691 = vmatprep.subr.mxu0 0.0
      %692 = vmatpush2.msra.mxu0 0.0
      %693 = vmatprep.subr.mxu0 0.0
      %694 = vmatpush2.msra.mxu0 0.0
      %695 = vmatprep.subr.mxu0 0.0
      %696 = vmatpush2.msra.mxu0 0.0
      %697 = vmatprep.subr.mxu0 0.0
      %698 = vmatpush2.msra.mxu0 0.0
      %699 = vmatprep.subr.mxu0 0.0
      %700 = vmatpush2.msra.mxu0 0.0
      %701 = vmatprep.subr.mxu0 0.0
      %702 = vmatpush2.msra.mxu0 0.0
      %703 = vmatprep.subr.mxu0 0.0
      %704 = vmatpush2.msra.mxu0 0.0
      %705 = vmatprep.subr.mxu0 0.0
      %706 = vmatpush2.msra.mxu0 0.0
      %707 = vmatprep.subr.mxu0 0.0
      %708 = vmatpush2.msra.mxu0 0.0
      %709 = vmatprep.mubr.f32.mxu0 0.0
      %710 = vmatmul.mubr.f32.gmra.mxu0 %v643
      %v711 = vpop.f32.mrf.mxu0
      %v712 = vadd.f32 0.0, %v711
      %v713 = vpop.f32.mrf.mxu0
      %714 = vdwg.mxu0
      %v715 = vadd.f32 %v595, %v712
      %716 = vst.msk [vmem:[#allocation4] sm:$0xff] %vm482, %v715
      %717 = vst.msk [vmem:[#allocation2] sm:$0xff] %vm587, %v569
      %v718 = vld [vmem:[%s305 + $0x1] sm:$0x1]
      %v719 = vld [vmem:[%s305 + $0x5] sm:$0x1]
      %v720 = vld [vmem:[%s305 + $0x9] sm:$0x1]
      %v721 = vld [vmem:[%s305 + $0xd] sm:$0x1]
      %v722 = vld [vmem:[%s305 + $0x11] sm:$0x1]
      %v723 = vld [vmem:[%s305 + $0x15] sm:$0x1]
      %v724 = vld [vmem:[%s305 + $0x19] sm:$0x1]
      %v725 = vld [vmem:[%s305 + $0x1d] sm:$0x1]
      %v734 = vrot.slane %v719, 7
      %v735 = vsel %vm418, %v734, %v718
      %v736 = vrot.slane %v720, 6
      %v737 = vsel %vm421, %v736, %v735
      %v738 = vrot.slane %v721, 5
      %v739 = vsel %vm424, %v738, %v737
      %v740 = vrot.slane %v722, 4
      %v741 = vsel %vm427, %v740, %v739
      %v742 = vrot.slane %v723, 3
      %v743 = vsel %vm430, %v742, %v741
      %v744 = vrot.slane %v724, 2
      %v745 = vsel %vm433, %v744, %v743
      %v746 = vrot.slane %v725, 1
      %v747 = vsel %vm436, %v746, %v745
      %v748 = vsel %vm482, %v747, 0
      %750 = vmatprep.subr.mxu0 0.0
      %751 = vmatpush1.xpose.msra.mxu0 0.0
      %752 = vmatprep.subr.mxu0 0.0
      %753 = vmatpush1.xpose.msra.mxu0 0.0
      %754 = vmatprep.subr.mxu0 0.0
      %755 = vmatpush1.xpose.msra.mxu0 0.0
      %756 = vmatprep.subr.mxu0 0.0
      %757 = vmatpush1.xpose.msra.mxu0 0.0
      %758 = vmatprep.subr.mxu0 0.0
      %759 = vmatpush1.xpose.msra.mxu0 0.0
      %760 = vmatprep.subr.mxu0 0.0
      %761 = vmatpush1.xpose.msra.mxu0 0.0
      %762 = vmatprep.subr.mxu0 0.0
      %763 = vmatpush1.xpose.msra.mxu0 0.0
      %764 = vmatprep.subr.mxu0 0.0
      %765 = vmatpush1.xpose.msra.mxu0 0.0
      %766 = vmatprep.subr.mxu0 0.0
      %767 = vmatpush1.xpose.msra.mxu0 0.0
      %768 = vmatprep.subr.mxu0 0.0
      %769 = vmatpush1.xpose.msra.mxu0 0.0
      %770 = vmatprep.subr.mxu0 0.0
      %771 = vmatpush1.xpose.msra.mxu0 0.0
      %772 = vmatprep.subr.mxu0 0.0
      %773 = vmatpush1.xpose.msra.mxu0 0.0
      %774 = vmatprep.subr.mxu0 0.0
      %775 = vmatpush1.xpose.msra.mxu0 0.0
      %776 = vmatprep.subr.mxu0 0.0
      %777 = vmatpush1.xpose.msra.mxu0 0.0
      %778 = vmatprep.subr.mxu0 0.0
      %779 = vmatpush1.xpose.msra.mxu0 %v487
      %780 = vmatprep.subr.mxu0 0.0
      %781 = vmatpush1.xpose.msra.mxu0 %v485
      %782 = vmatprep.subr.mxu0 0.0
      %783 = vmatpush2.xpose.msra.mxu0 0.0
      %784 = vmatprep.subr.mxu0 0.0
      %785 = vmatpush2.xpose.msra.mxu0 0.0
      %786 = vmatprep.subr.mxu0 0.0
      %787 = vmatpush2.xpose.msra.mxu0 0.0
      %788 = vmatprep.subr.mxu0 0.0
      %789 = vmatpush2.xpose.msra.mxu0 0.0
      %790 = vmatprep.subr.mxu0 0.0
      %791 = vmatpush2.xpose.msra.mxu0 0.0
      %792 = vmatprep.subr.mxu0 0.0
      %793 = vmatpush2.xpose.msra.mxu0 0.0
      %794 = vmatprep.subr.mxu0 0.0
      %795 = vmatpush2.xpose.msra.mxu0 0.0
      %796 = vmatprep.subr.mxu0 0.0
      %797 = vmatpush2.xpose.msra.mxu0 0.0
      %798 = vmatprep.subr.mxu0 0.0
      %799 = vmatpush2.xpose.msra.mxu0 0.0
      %800 = vmatprep.subr.mxu0 0.0
      %801 = vmatpush2.xpose.msra.mxu0 0.0
      %802 = vmatprep.subr.mxu0 0.0
      %803 = vmatpush2.xpose.msra.mxu0 0.0
      %804 = vmatprep.subr.mxu0 0.0
      %805 = vmatpush2.xpose.msra.mxu0 0.0
      %806 = vmatprep.subr.mxu0 0.0
      %807 = vmatpush2.xpose.msra.mxu0 0.0
      %808 = vmatprep.subr.mxu0 0.0
      %809 = vmatpush2.xpose.msra.mxu0 0.0
      %810 = vmatprep.subr.mxu0 0.0
      %811 = vmatpush2.xpose.msra.mxu0 0.0
      %812 = vmatprep.subr.mxu0 0.0
      %813 = vmatpush2.xpose.msra.mxu0 0.0
      %814 = vmatprep.mubr.f32.mxu0 0.0
      %815 = vmatmul.mubr.f32.gmra.mxu0 %v748
      %v816 = vpop.f32.mrf.mxu0
      %v817 = vadd.f32 0.0, %v816
      %v818 = vpop.f32.mrf.mxu0
      %819 = vdwg.mxu0
      %v820 = vmul.f32 %v817, 0.35355338
      %v821 = vadd.f32 %v820, %v362
      %v822 = vsel %vm562, %v821, -inf
      %s823 = scalar_lea.vmem [#allocation2], 8
      %v824 = vld [vmem:[%s823] sm:$0xff]
      %v825 = vsel %vm565, %v822, -inf
      %826 = vmax.xlane.f32.xlu0 %v825
      %v827 = vpop.xlane.xlu0 %826
      %v828 = vmax.f32 %v824, %v827
      %v829 = vsub.f32 %v824, %v828
      %v830 = vmul.f32 %v829, 1.442695
      %v831 = vpow.pop %v830
      %833 = vset.pattern.permute.xlu0 0
      %834 = vperm.xlu0 %833, %v828
      %v835 = vpop.permute.xlu0 %834
      %v837 = vsub.f32 %v822, %v835
      %v838 = vmul.f32 %v837, 1.442695
      %v839 = vpow.pop %v838
      %s840 = scalar_lea.vmem [#allocation3], 8
      %v841 = vld [vmem:[%s840] sm:$0xff]
      %v842 = vmul.f32 %v831, %v841
      %v843 = vsel %vm565, %v839, 0.0
      %844 = vadd.xlane.f32.xlu0 %v843
      %v845 = vpop.xlane.xlu0 %844
      %v846 = vadd.f32 %v842, %v845
      %847 = vst.msk [vmem:[%s840] sm:$0xff] %vm587, %v846
      %s848 = scalar_lea.vmem [#allocation4], 8
      %v849 = vld [vmem:[%s848] sm:$0xff]
      %851 = vset.pattern.permute.xlu0 0
      %852 = vperm.xlu0 %851, %v831
      %v853 = vpop.permute.xlu0 %852
      %v855 = vmul.f32 %v853, %v849
      %v857 = vsel %vm565, %v839, 0
      %859 = vmatprep.subr.mxu0 0.0
      %860 = vmatpush1.msra.mxu0 0.0
      %861 = vmatprep.subr.mxu0 0.0
      %862 = vmatpush1.msra.mxu0 0.0
      %863 = vmatprep.subr.mxu0 0.0
      %864 = vmatpush1.msra.mxu0 0.0
      %865 = vmatprep.subr.mxu0 0.0
      %866 = vmatpush1.msra.mxu0 0.0
      %867 = vmatprep.subr.mxu0 0.0
      %868 = vmatpush1.msra.mxu0 0.0
      %869 = vmatprep.subr.mxu0 0.0
      %870 = vmatpush1.msra.mxu0 0.0
      %871 = vmatprep.subr.mxu0 0.0
      %872 = vmatpush1.msra.mxu0 0.0
      %873 = vmatprep.subr.mxu0 0.0
      %874 = vmatpush1.msra.mxu0 0.0
      %875 = vmatprep.subr.mxu0 0.0
      %876 = vmatpush1.msra.mxu0 0.0
      %877 = vmatprep.subr.mxu0 0.0
      %878 = vmatpush1.msra.mxu0 0.0
      %879 = vmatprep.subr.mxu0 0.0
      %880 = vmatpush1.msra.mxu0 0.0
      %881 = vmatprep.subr.mxu0 0.0
      %882 = vmatpush1.msra.mxu0 0.0
      %883 = vmatprep.subr.mxu0 0.0
      %884 = vmatpush1.msra.mxu0 0.0
      %885 = vmatprep.subr.mxu0 0.0
      %886 = vmatpush1.msra.mxu0 0.0
      %887 = vmatprep.subr.mxu0 0.0
      %888 = vmatpush1.msra.mxu0 %v639
      %889 = vmatprep.subr.mxu0 0.0
      %890 = vmatpush1.msra.mxu0 %v625
      %891 = vmatprep.subr.mxu0 0.0
      %892 = vmatpush2.msra.mxu0 0.0
      %893 = vmatprep.subr.mxu0 0.0
      %894 = vmatpush2.msra.mxu0 0.0
      %895 = vmatprep.subr.mxu0 0.0
      %896 = vmatpush2.msra.mxu0 0.0
      %897 = vmatprep.subr.mxu0 0.0
      %898 = vmatpush2.msra.mxu0 0.0
      %899 = vmatprep.subr.mxu0 0.0
      %900 = vmatpush2.msra.mxu0 0.0
      %901 = vmatprep.subr.mxu0 0.0
      %902 = vmatpush2.msra.mxu0 0.0
      %903 = vmatprep.subr.mxu0 0.0
      %904 = vmatpush2.msra.mxu0 0.0
      %905 = vmatprep.subr.mxu0 0.0
      %906 = vmatpush2.msra.mxu0 0.0
      %907 = vmatprep.subr.mxu0 0.0
      %908 = vmatpush2.msra.mxu0 0.0
      %909 = vmatprep.subr.mxu0 0.0
      %910 = vmatpush2.msra.mxu0 0.0
      %911 = vmatprep.subr.mxu0 0.0
      %912 = vmatpush2.msra.mxu0 0.0
      %913 = vmatprep.subr.mxu0 0.0
      %914 = vmatpush2.msra.mxu0 0.0
      %915 = vmatprep.subr.mxu0 0.0
      %916 = vmatpush2.msra.mxu0 0.0
      %917 = vmatprep.subr.mxu0 0.0
      %918 = vmatpush2.msra.mxu0 0.0
      %919 = vmatprep.subr.mxu0 0.0
      %920 = vmatpush2.msra.mxu0 0.0
      %921 = vmatprep.subr.mxu0 0.0
      %922 = vmatpush2.msra.mxu0 0.0
      %923 = vmatprep.mubr.f32.mxu0 0.0
      %924 = vmatmul.mubr.f32.gmra.mxu0 %v857
      %v925 = vpop.f32.mrf.mxu0
      %v926 = vadd.f32 0.0, %v925
      %v927 = vpop.f32.mrf.mxu0
      %928 = vdwg.mxu0
      %v929 = vadd.f32 %v855, %v926
      %930 = vst.msk [vmem:[%s848] sm:$0xff] %vm482, %v929
      %931 = vst.msk [vmem:[%s823] sm:$0xff] %vm587, %v828
      %v932 = vld [vmem:[%s315 + $0x1] sm:$0x1]
      %v933 = vld [vmem:[%s315 + $0x3] sm:$0x1]
      %v934 = vld [vmem:[%s315 + $0x5] sm:$0x1]
      %v935 = vld [vmem:[%s315 + $0x7] sm:$0x1]
      %v936 = vld [vmem:[%s315 + $0x9] sm:$0x1]
      %v937 = vld [vmem:[%s315 + $0xb] sm:$0x1]
      %v938 = vld [vmem:[%s315 + $0xd] sm:$0x1]
      %v939 = vld [vmem:[%s315 + $0xf] sm:$0x1]
      %v940 = vld [vmem:[%s315 + $0x11] sm:$0x1]
      %v941 = vld [vmem:[%s315 + $0x13] sm:$0x1]
      %v942 = vld [vmem:[%s315 + $0x15] sm:$0x1]
      %v943 = vld [vmem:[%s315 + $0x17] sm:$0x1]
      %v944 = vld [vmem:[%s315 + $0x19] sm:$0x1]
      %v945 = vld [vmem:[%s315 + $0x1b] sm:$0x1]
      %v946 = vld [vmem:[%s315 + $0x1d] sm:$0x1]
      %v947 = vld [vmem:[%s315 + $0x1f] sm:$0x1]
      %v948 = vld [vmem:[%s325 + $0x1] sm:$0x1]
      %v949 = vld [vmem:[%s325 + $0x3] sm:$0x1]
      %v950 = vld [vmem:[%s325 + $0x5] sm:$0x1]
      %v951 = vld [vmem:[%s325 + $0x7] sm:$0x1]
      %v952 = vld [vmem:[%s325 + $0x9] sm:$0x1]
      %v953 = vld [vmem:[%s325 + $0xb] sm:$0x1]
      %v954 = vld [vmem:[%s325 + $0xd] sm:$0x1]
      %v955 = vld [vmem:[%s325 + $0xf] sm:$0x1]
      %v956 = vld [vmem:[%s325 + $0x11] sm:$0x1]
      %v957 = vld [vmem:[%s325 + $0x13] sm:$0x1]
      %v958 = vld [vmem:[%s325 + $0x15] sm:$0x1]
      %v959 = vld [vmem:[%s325 + $0x17] sm:$0x1]
      %v960 = vld [vmem:[%s325 + $0x19] sm:$0x1]
      %v961 = vld [vmem:[%s325 + $0x1b] sm:$0x1]
      %v962 = vld [vmem:[%s325 + $0x1d] sm:$0x1]
      %v963 = vld [vmem:[%s325 + $0x1f] sm:$0x1]
      %v964 = vld [vmem:[%s305 + $0x2] sm:$0x1]
      %v965 = vld [vmem:[%s305 + $0x6] sm:$0x1]
      %v966 = vld [vmem:[%s305 + $0xa] sm:$0x1]
      %v967 = vld [vmem:[%s305 + $0xe] sm:$0x1]
      %v968 = vld [vmem:[%s305 + $0x12] sm:$0x1]
      %v969 = vld [vmem:[%s305 + $0x16] sm:$0x1]
      %v970 = vld [vmem:[%s305 + $0x1a] sm:$0x1]
      %v971 = vld [vmem:[%s305 + $0x1e] sm:$0x1]
      %v980 = vrot.slane %v965, 7
      %v981 = vsel %vm418, %v980, %v964
      %v982 = vrot.slane %v966, 6
      %v983 = vsel %vm421, %v982, %v981
      %v984 = vrot.slane %v967, 5
      %v985 = vsel %vm424, %v984, %v983
      %v986 = vrot.slane %v968, 4
      %v987 = vsel %vm427, %v986, %v985
      %v988 = vrot.slane %v969, 3
      %v989 = vsel %vm430, %v988, %v987
      %v990 = vrot.slane %v970, 2
      %v991 = vsel %vm433, %v990, %v989
      %v992 = vrot.slane %v971, 1
      %v993 = vsel %vm436, %v992, %v991
      %v1010 = vrot.slane %v933, 7
      %v1011 = vsel %vm418, %v1010, %v932
      %v1012 = vrot.slane %v934, 6
      %v1013 = vsel %vm421, %v1012, %v1011
      %v1014 = vrot.slane %v935, 5
      %v1015 = vsel %vm424, %v1014, %v1013
      %v1016 = vrot.slane %v936, 4
      %v1017 = vsel %vm427, %v1016, %v1015
      %v1018 = vrot.slane %v937, 3
      %v1019 = vsel %vm430, %v1018, %v1017
      %v1020 = vrot.slane %v938, 2
      %v1021 = vsel %vm433, %v1020, %v1019
      %v1022 = vrot.slane %v939, 1
      %v1023 = vsel %vm436, %v1022, %v1021
      %v1024 = vrot.slane %v941, 7
      %v1025 = vsel %vm418, %v1024, %v940
      %v1026 = vrot.slane %v942, 6
      %v1027 = vsel %vm421, %v1026, %v1025
      %v1028 = vrot.slane %v943, 5
      %v1029 = vsel %vm424, %v1028, %v1027
      %v1030 = vrot.slane %v944, 4
      %v1031 = vsel %vm427, %v1030, %v1029
      %v1032 = vrot.slane %v945, 3
      %v1033 = vsel %vm430, %v1032, %v1031
      %v1034 = vrot.slane %v946, 2
      %v1035 = vsel %vm433, %v1034, %v1033
      %v1036 = vrot.slane %v947, 1
      %v1037 = vsel %vm436, %v1036, %v1035
      %v1038 = vsel %vm482, %v993, 0
      %v1040 = vsel %vm482, %v1023, 0
      %v1042 = vsel %vm482, %v1037, 0
      %1044 = vmatprep.subr.mxu0 0.0
      %1045 = vmatpush1.xpose.msra.mxu0 0.0
      %1046 = vmatprep.subr.mxu0 0.0
      %1047 = vmatpush1.xpose.msra.mxu0 0.0
      %1048 = vmatprep.subr.mxu0 0.0
      %1049 = vmatpush1.xpose.msra.mxu0 0.0
      %1050 = vmatprep.subr.mxu0 0.0
      %1051 = vmatpush1.xpose.msra.mxu0 0.0
      %1052 = vmatprep.subr.mxu0 0.0
      %1053 = vmatpush1.xpose.msra.mxu0 0.0
      %1054 = vmatprep.subr.mxu0 0.0
      %1055 = vmatpush1.xpose.msra.mxu0 0.0
      %1056 = vmatprep.subr.mxu0 0.0
      %1057 = vmatpush1.xpose.msra.mxu0 0.0
      %1058 = vmatprep.subr.mxu0 0.0
      %1059 = vmatpush1.xpose.msra.mxu0 0.0
      %1060 = vmatprep.subr.mxu0 0.0
      %1061 = vmatpush1.xpose.msra.mxu0 0.0
      %1062 = vmatprep.subr.mxu0 0.0
      %1063 = vmatpush1.xpose.msra.mxu0 0.0
      %1064 = vmatprep.subr.mxu0 0.0
      %1065 = vmatpush1.xpose.msra.mxu0 0.0
      %1066 = vmatprep.subr.mxu0 0.0
      %1067 = vmatpush1.xpose.msra.mxu0 0.0
      %1068 = vmatprep.subr.mxu0 0.0
      %1069 = vmatpush1.xpose.msra.mxu0 0.0
      %1070 = vmatprep.subr.mxu0 0.0
      %1071 = vmatpush1.xpose.msra.mxu0 0.0
      %1072 = vmatprep.subr.mxu0 0.0
      %1073 = vmatpush1.xpose.msra.mxu0 %v1042
      %1074 = vmatprep.subr.mxu0 0.0
      %1075 = vmatpush1.xpose.msra.mxu0 %v1040
      %1076 = vmatprep.subr.mxu0 0.0
      %1077 = vmatpush2.xpose.msra.mxu0 0.0
      %1078 = vmatprep.subr.mxu0 0.0
      %1079 = vmatpush2.xpose.msra.mxu0 0.0
      %1080 = vmatprep.subr.mxu0 0.0
      %1081 = vmatpush2.xpose.msra.mxu0 0.0
      %1082 = vmatprep.subr.mxu0 0.0
      %1083 = vmatpush2.xpose.msra.mxu0 0.0
      %1084 = vmatprep.subr.mxu0 0.0
      %1085 = vmatpush2.xpose.msra.mxu0 0.0
      %1086 = vmatprep.subr.mxu0 0.0
      %1087 = vmatpush2.xpose.msra.mxu0 0.0
      %1088 = vmatprep.subr.mxu0 0.0
      %1089 = vmatpush2.xpose.msra.mxu0 0.0
      %1090 = vmatprep.subr.mxu0 0.0
      %1091 = vmatpush2.xpose.msra.mxu0 0.0
      %1092 = vmatprep.subr.mxu0 0.0
      %1093 = vmatpush2.xpose.msra.mxu0 0.0
      %1094 = vmatprep.subr.mxu0 0.0
      %1095 = vmatpush2.xpose.msra.mxu0 0.0
      %1096 = vmatprep.subr.mxu0 0.0
      %1097 = vmatpush2.xpose.msra.mxu0 0.0
      %1098 = vmatprep.subr.mxu0 0.0
      %1099 = vmatpush2.xpose.msra.mxu0 0.0
      %1100 = vmatprep.subr.mxu0 0.0
      %1101 = vmatpush2.xpose.msra.mxu0 0.0
      %1102 = vmatprep.subr.mxu0 0.0
      %1103 = vmatpush2.xpose.msra.mxu0 0.0
      %1104 = vmatprep.subr.mxu0 0.0
      %1105 = vmatpush2.xpose.msra.mxu0 0.0
      %1106 = vmatprep.subr.mxu0 0.0
      %1107 = vmatpush2.xpose.msra.mxu0 0.0
      %1108 = vmatprep.mubr.f32.mxu0 0.0
      %1109 = vmatmul.mubr.f32.gmra.mxu0 %v1038
      %v1110 = vpop.f32.mrf.mxu0
      %v1111 = vadd.f32 0.0, %v1110
      %v1112 = vpop.f32.mrf.mxu0
      %1113 = vdwg.mxu0
      %v1114 = vmul.f32 %v1111, 0.35355338
      %v1115 = vadd.f32 %v1114, %v362
      %v1116 = vsel %vm562, %v1115, -inf
      %s1117 = scalar_lea.vmem [#allocation2], 16
      %v1118 = vld [vmem:[%s1117] sm:$0xff]
      %v1119 = vsel %vm565, %v1116, -inf
      %1120 = vmax.xlane.f32.xlu0 %v1119
      %v1121 = vpop.xlane.xlu0 %1120
      %v1122 = vmax.f32 %v1118, %v1121
      %v1123 = vsub.f32 %v1118, %v1122
      %v1124 = vmul.f32 %v1123, 1.442695
      %v1125 = vpow.pop %v1124
      %1127 = vset.pattern.permute.xlu0 0
      %1128 = vperm.xlu0 %1127, %v1122
      %v1129 = vpop.permute.xlu0 %1128
      %v1131 = vsub.f32 %v1116, %v1129
      %v1132 = vmul.f32 %v1131, 1.442695
      %v1133 = vpow.pop %v1132
      %s1134 = scalar_lea.vmem [#allocation3], 16
      %v1135 = vld [vmem:[%s1134] sm:$0xff]
      %v1136 = vmul.f32 %v1125, %v1135
      %v1137 = vsel %vm565, %v1133, 0.0
      %1138 = vadd.xlane.f32.xlu0 %v1137
      %v1139 = vpop.xlane.xlu0 %1138
      %v1140 = vadd.f32 %v1136, %v1139
      %1141 = vst.msk [vmem:[%s1134] sm:$0xff] %vm587, %v1140
      %s1142 = scalar_lea.vmem [#allocation4], 16
      %v1143 = vld [vmem:[%s1142] sm:$0xff]
      %1145 = vset.pattern.permute.xlu0 0
      %1146 = vperm.xlu0 %1145, %v1125
      %v1147 = vpop.permute.xlu0 %1146
      %v1149 = vmul.f32 %v1147, %v1143
      %v1166 = vrot.slane %v949, 7
      %v1167 = vsel %vm418, %v1166, %v948
      %v1168 = vrot.slane %v950, 6
      %v1169 = vsel %vm421, %v1168, %v1167
      %v1170 = vrot.slane %v951, 5
      %v1171 = vsel %vm424, %v1170, %v1169
      %v1172 = vrot.slane %v952, 4
      %v1173 = vsel %vm427, %v1172, %v1171
      %v1174 = vrot.slane %v953, 3
      %v1175 = vsel %vm430, %v1174, %v1173
      %v1176 = vrot.slane %v954, 2
      %v1177 = vsel %vm433, %v1176, %v1175
      %v1178 = vrot.slane %v955, 1
      %v1179 = vsel %vm436, %v1178, %v1177
      %v1180 = vrot.slane %v957, 7
      %v1181 = vsel %vm418, %v1180, %v956
      %v1182 = vrot.slane %v958, 6
      %v1183 = vsel %vm421, %v1182, %v1181
      %v1184 = vrot.slane %v959, 5
      %v1185 = vsel %vm424, %v1184, %v1183
      %v1186 = vrot.slane %v960, 4
      %v1187 = vsel %vm427, %v1186, %v1185
      %v1188 = vrot.slane %v961, 3
      %v1189 = vsel %vm430, %v1188, %v1187
      %v1190 = vrot.slane %v962, 2
      %v1191 = vsel %vm433, %v1190, %v1189
      %v1192 = vrot.slane %v963, 1
      %v1193 = vsel %vm436, %v1192, %v1191
      %v1197 = vsel %vm565, %v1133, 0
      %1199 = vmatprep.subr.mxu0 0.0
      %1200 = vmatpush1.msra.mxu0 0.0
      %1201 = vmatprep.subr.mxu0 0.0
      %1202 = vmatpush1.msra.mxu0 0.0
      %1203 = vmatprep.subr.mxu0 0.0
      %1204 = vmatpush1.msra.mxu0 0.0
      %1205 = vmatprep.subr.mxu0 0.0
      %1206 = vmatpush1.msra.mxu0 0.0
      %1207 = vmatprep.subr.mxu0 0.0
      %1208 = vmatpush1.msra.mxu0 0.0
      %1209 = vmatprep.subr.mxu0 0.0
      %1210 = vmatpush1.msra.mxu0 0.0
      %1211 = vmatprep.subr.mxu0 0.0
      %1212 = vmatpush1.msra.mxu0 0.0
      %1213 = vmatprep.subr.mxu0 0.0
      %1214 = vmatpush1.msra.mxu0 0.0
      %1215 = vmatprep.subr.mxu0 0.0
      %1216 = vmatpush1.msra.mxu0 0.0
      %1217 = vmatprep.subr.mxu0 0.0
      %1218 = vmatpush1.msra.mxu0 0.0
      %1219 = vmatprep.subr.mxu0 0.0
      %1220 = vmatpush1.msra.mxu0 0.0
      %1221 = vmatprep.subr.mxu0 0.0
      %1222 = vmatpush1.msra.mxu0 0.0
      %1223 = vmatprep.subr.mxu0 0.0
      %1224 = vmatpush1.msra.mxu0 0.0
      %1225 = vmatprep.subr.mxu0 0.0
      %1226 = vmatpush1.msra.mxu0 0.0
      %1227 = vmatprep.subr.mxu0 0.0
      %1228 = vmatpush1.msra.mxu0 %v1193
      %1229 = vmatprep.subr.mxu0 0.0
      %1230 = vmatpush1.msra.mxu0 %v1179
      %1231 = vmatprep.subr.mxu0 0.0
      %1232 = vmatpush2.msra.mxu0 0.0
      %1233 = vmatprep.subr.mxu0 0.0
      %1234 = vmatpush2.msra.mxu0 0.0
      %1235 = vmatprep.subr.mxu0 0.0
      %1236 = vmatpush2.msra.mxu0 0.0
      %1237 = vmatprep.subr.mxu0 0.0
      %1238 = vmatpush2.msra.mxu0 0.0
      %1239 = vmatprep.subr.mxu0 0.0
      %1240 = vmatpush2.msra.mxu0 0.0
      %1241 = vmatprep.subr.mxu0 0.0
      %1242 = vmatpush2.msra.mxu0 0.0
      %1243 = vmatprep.subr.mxu0 0.0
      %1244 = vmatpush2.msra.mxu0 0.0
      %1245 = vmatprep.subr.mxu0 0.0
      %1246 = vmatpush2.msra.mxu0 0.0
      %1247 = vmatprep.subr.mxu0 0.0
      %1248 = vmatpush2.msra.mxu0 0.0
      %1249 = vmatprep.subr.mxu0 0.0
      %1250 = vmatpush2.msra.mxu0 0.0
      %1251 = vmatprep.subr.mxu0 0.0
      %1252 = vmatpush2.msra.mxu0 0.0
      %1253 = vmatprep.subr.mxu0 0.0
      %1254 = vmatpush2.msra.mxu0 0.0
      %1255 = vmatprep.subr.mxu0 0.0
      %1256 = vmatpush2.msra.mxu0 0.0
      %1257 = vmatprep.subr.mxu0 0.0
      %1258 = vmatpush2.msra.mxu0 0.0
      %1259 = vmatprep.subr.mxu0 0.0
      %1260 = vmatpush2.msra.mxu0 0.0
      %1261 = vmatprep.subr.mxu0 0.0
      %1262 = vmatpush2.msra.mxu0 0.0
      %1263 = vmatprep.mubr.f32.mxu0 0.0
      %1264 = vmatmul.mubr.f32.gmra.mxu0 %v1197
      %v1265 = vpop.f32.mrf.mxu0
      %v1266 = vadd.f32 0.0, %v1265
      %v1267 = vpop.f32.mrf.mxu0
      %1268 = vdwg.mxu0
      %v1269 = vadd.f32 %v1149, %v1266
      %1270 = vst.msk [vmem:[%s1142] sm:$0xff] %vm482, %v1269
      %1271 = vst.msk [vmem:[%s1117] sm:$0xff] %vm587, %v1122
      %v1272 = vld [vmem:[%s305 + $0x3] sm:$0x1]
      %v1273 = vld [vmem:[%s305 + $0x7] sm:$0x1]
      %v1274 = vld [vmem:[%s305 + $0xb] sm:$0x1]
      %v1275 = vld [vmem:[%s305 + $0xf] sm:$0x1]
      %v1276 = vld [vmem:[%s305 + $0x13] sm:$0x1]
      %v1277 = vld [vmem:[%s305 + $0x17] sm:$0x1]
      %v1278 = vld [vmem:[%s305 + $0x1b] sm:$0x1]
      %v1279 = vld [vmem:[%s305 + $0x1f] sm:$0x1]
      %v1288 = vrot.slane %v1273, 7
      %v1289 = vsel %vm418, %v1288, %v1272
      %v1290 = vrot.slane %v1274, 6
      %v1291 = vsel %vm421, %v1290, %v1289
      %v1292 = vrot.slane %v1275, 5
      %v1293 = vsel %vm424, %v1292, %v1291
      %v1294 = vrot.slane %v1276, 4
      %v1295 = vsel %vm427, %v1294, %v1293
      %v1296 = vrot.slane %v1277, 3
      %v1297 = vsel %vm430, %v1296, %v1295
      %v1298 = vrot.slane %v1278, 2
      %v1299 = vsel %vm433, %v1298, %v1297
      %v1300 = vrot.slane %v1279, 1
      %v1301 = vsel %vm436, %v1300, %v1299
      %v1302 = vsel %vm482, %v1301, 0
      %1304 = vmatprep.subr.mxu0 0.0
      %1305 = vmatpush1.xpose.msra.mxu0 0.0
      %1306 = vmatprep.subr.mxu0 0.0
      %1307 = vmatpush1.xpose.msra.mxu0 0.0
      %1308 = vmatprep.subr.mxu0 0.0
      %1309 = vmatpush1.xpose.msra.mxu0 0.0
      %1310 = vmatprep.subr.mxu0 0.0
      %1311 = vmatpush1.xpose.msra.mxu0 0.0
      %1312 = vmatprep.subr.mxu0 0.0
      %1313 = vmatpush1.xpose.msra.mxu0 0.0
      %1314 = vmatprep.subr.mxu0 0.0
      %1315 = vmatpush1.xpose.msra.mxu0 0.0
      %1316 = vmatprep.subr.mxu0 0.0
      %1317 = vmatpush1.xpose.msra.mxu0 0.0
      %1318 = vmatprep.subr.mxu0 0.0
      %1319 = vmatpush1.xpose.msra.mxu0 0.0
      %1320 = vmatprep.subr.mxu0 0.0
      %1321 = vmatpush1.xpose.msra.mxu0 0.0
      %1322 = vmatprep.subr.mxu0 0.0
      %1323 = vmatpush1.xpose.msra.mxu0 0.0
      %1324 = vmatprep.subr.mxu0 0.0
      %1325 = vmatpush1.xpose.msra.mxu0 0.0
      %1326 = vmatprep.subr.mxu0 0.0
      %1327 = vmatpush1.xpose.msra.mxu0 0.0
      %1328 = vmatprep.subr.mxu0 0.0
      %1329 = vmatpush1.xpose.msra.mxu0 0.0
      %1330 = vmatprep.subr.mxu0 0.0
      %1331 = vmatpush1.xpose.msra.mxu0 0.0
      %1332 = vmatprep.subr.mxu0 0.0
      %1333 = vmatpush1.xpose.msra.mxu0 %v1042
      %1334 = vmatprep.subr.mxu0 0.0
      %1335 = vmatpush1.xpose.msra.mxu0 %v1040
      %1336 = vmatprep.subr.mxu0 0.0
      %1337 = vmatpush2.xpose.msra.mxu0 0.0
      %1338 = vmatprep.subr.mxu0 0.0
      %1339 = vmatpush2.xpose.msra.mxu0 0.0
      %1340 = vmatprep.subr.mxu0 0.0
      %1341 = vmatpush2.xpose.msra.mxu0 0.0
      %1342 = vmatprep.subr.mxu0 0.0
      %1343 = vmatpush2.xpose.msra.mxu0 0.0
      %1344 = vmatprep.subr.mxu0 0.0
      %1345 = vmatpush2.xpose.msra.mxu0 0.0
      %1346 = vmatprep.subr.mxu0 0.0
      %1347 = vmatpush2.xpose.msra.mxu0 0.0
      %1348 = vmatprep.subr.mxu0 0.0
      %1349 = vmatpush2.xpose.msra.mxu0 0.0
      %1350 = vmatprep.subr.mxu0 0.0
      %1351 = vmatpush2.xpose.msra.mxu0 0.0
      %1352 = vmatprep.subr.mxu0 0.0
      %1353 = vmatpush2.xpose.msra.mxu0 0.0
      %1354 = vmatprep.subr.mxu0 0.0
      %1355 = vmatpush2.xpose.msra.mxu0 0.0
      %1356 = vmatprep.subr.mxu0 0.0
      %1357 = vmatpush2.xpose.msra.mxu0 0.0
      %1358 = vmatprep.subr.mxu0 0.0
      %1359 = vmatpush2.xpose.msra.mxu0 0.0
      %1360 = vmatprep.subr.mxu0 0.0
      %1361 = vmatpush2.xpose.msra.mxu0 0.0
      %1362 = vmatprep.subr.mxu0 0.0
      %1363 = vmatpush2.xpose.msra.mxu0 0.0
      %1364 = vmatprep.subr.mxu0 0.0
      %1365 = vmatpush2.xpose.msra.mxu0 0.0
      %1366 = vmatprep.subr.mxu0 0.0
      %1367 = vmatpush2.xpose.msra.mxu0 0.0
      %1368 = vmatprep.mubr.f32.mxu0 0.0
      %1369 = vmatmul.mubr.f32.gmra.mxu0 %v1302
      %v1370 = vpop.f32.mrf.mxu0
      %v1371 = vadd.f32 0.0, %v1370
      %v1372 = vpop.f32.mrf.mxu0
      %1373 = vdwg.mxu0
      %v1374 = vmul.f32 %v1371, 0.35355338
      %v1375 = vadd.f32 %v1374, %v362
      %v1376 = vsel %vm562, %v1375, -inf
      %s1377 = scalar_lea.vmem [#allocation2], 24
      %v1378 = vld [vmem:[%s1377] sm:$0xff]
      %v1379 = vsel %vm565, %v1376, -inf
      %1380 = vmax.xlane.f32.xlu0 %v1379
      %v1381 = vpop.xlane.xlu0 %1380
      %v1382 = vmax.f32 %v1378, %v1381
      %v1383 = vsub.f32 %v1378, %v1382
      %v1384 = vmul.f32 %v1383, 1.442695
      %v1385 = vpow.pop %v1384
      %1387 = vset.pattern.permute.xlu0 0
      %1388 = vperm.xlu0 %1387, %v1382
      %v1389 = vpop.permute.xlu0 %1388
      %v1391 = vsub.f32 %v1376, %v1389
      %v1392 = vmul.f32 %v1391, 1.442695
      %v1393 = vpow.pop %v1392
      %s1394 = scalar_lea.vmem [#allocation3], 24
      %v1395 = vld [vmem:[%s1394] sm:$0xff]
      %v1396 = vmul.f32 %v1385, %v1395
      %v1397 = vsel %vm565, %v1393, 0.0
      %1398 = vadd.xlane.f32.xlu0 %v1397
      %v1399 = vpop.xlane.xlu0 %1398
      %v1400 = vadd.f32 %v1396, %v1399
      %1401 = vst.msk [vmem:[%s1394] sm:$0xff] %vm587, %v1400
      %s1402 = scalar_lea.vmem [#allocation4], 24
      %v1403 = vld [vmem:[%s1402] sm:$0xff]
      %1405 = vset.pattern.permute.xlu0 0
      %1406 = vperm.xlu0 %1405, %v1385
      %v1407 = vpop.permute.xlu0 %1406
      %v1409 = vmul.f32 %v1407, %v1403
      %v1411 = vsel %vm565, %v1393, 0
      %1413 = vmatprep.subr.mxu0 0.0
      %1414 = vmatpush1.msra.mxu0 0.0
      %1415 = vmatprep.subr.mxu0 0.0
      %1416 = vmatpush1.msra.mxu0 0.0
      %1417 = vmatprep.subr.mxu0 0.0
      %1418 = vmatpush1.msra.mxu0 0.0
      %1419 = vmatprep.subr.mxu0 0.0
      %1420 = vmatpush1.msra.mxu0 0.0
      %1421 = vmatprep.subr.mxu0 0.0
      %1422 = vmatpush1.msra.mxu0 0.0
      %1423 = vmatprep.subr.mxu0 0.0
      %1424 = vmatpush1.msra.mxu0 0.0
      %1425 = vmatprep.subr.mxu0 0.0
      %1426 = vmatpush1.msra.mxu0 0.0
      %1427 = vmatprep.subr.mxu0 0.0
      %1428 = vmatpush1.msra.mxu0 0.0
      %1429 = vmatprep.subr.mxu0 0.0
      %1430 = vmatpush1.msra.mxu0 0.0
      %1431 = vmatprep.subr.mxu0 0.0
      %1432 = vmatpush1.msra.mxu0 0.0
      %1433 = vmatprep.subr.mxu0 0.0
      %1434 = vmatpush1.msra.mxu0 0.0
      %1435 = vmatprep.subr.mxu0 0.0
      %1436 = vmatpush1.msra.mxu0 0.0
      %1437 = vmatprep.subr.mxu0 0.0
      %1438 = vmatpush1.msra.mxu0 0.0
      %1439 = vmatprep.subr.mxu0 0.0
      %1440 = vmatpush1.msra.mxu0 0.0
      %1441 = vmatprep.subr.mxu0 0.0
      %1442 = vmatpush1.msra.mxu0 %v1193
      %1443 = vmatprep.subr.mxu0 0.0
      %1444 = vmatpush1.msra.mxu0 %v1179
      %1445 = vmatprep.subr.mxu0 0.0
      %1446 = vmatpush2.msra.mxu0 0.0
      %1447 = vmatprep.subr.mxu0 0.0
      %1448 = vmatpush2.msra.mxu0 0.0
      %1449 = vmatprep.subr.mxu0 0.0
      %1450 = vmatpush2.msra.mxu0 0.0
      %1451 = vmatprep.subr.mxu0 0.0
      %1452 = vmatpush2.msra.mxu0 0.0
      %1453 = vmatprep.subr.mxu0 0.0
      %1454 = vmatpush2.msra.mxu0 0.0
      %1455 = vmatprep.subr.mxu0 0.0
      %1456 = vmatpush2.msra.mxu0 0.0
      %1457 = vmatprep.subr.mxu0 0.0
      %1458 = vmatpush2.msra.mxu0 0.0
      %1459 = vmatprep.subr.mxu0 0.0
      %1460 = vmatpush2.msra.mxu0 0.0
      %1461 = vmatprep.subr.mxu0 0.0
      %1462 = vmatpush2.msra.mxu0 0.0
      %1463 = vmatprep.subr.mxu0 0.0
      %1464 = vmatpush2.msra.mxu0 0.0
      %1465 = vmatprep.subr.mxu0 0.0
      %1466 = vmatpush2.msra.mxu0 0.0
      %1467 = vmatprep.subr.mxu0 0.0
      %1468 = vmatpush2.msra.mxu0 0.0
      %1469 = vmatprep.subr.mxu0 0.0
      %1470 = vmatpush2.msra.mxu0 0.0
      %1471 = vmatprep.subr.mxu0 0.0
      %1472 = vmatpush2.msra.mxu0 0.0
      %1473 = vmatprep.subr.mxu0 0.0
      %1474 = vmatpush2.msra.mxu0 0.0
      %1475 = vmatprep.subr.mxu0 0.0
      %1476 = vmatpush2.msra.mxu0 0.0
      %1477 = vmatprep.mubr.f32.mxu0 0.0
      %1478 = vmatmul.mubr.f32.gmra.mxu0 %v1411
      %v1479 = vpop.f32.mrf.mxu0
      %v1480 = vadd.f32 0.0, %v1479
      %v1481 = vpop.f32.mrf.mxu0
      %1482 = vdwg.mxu0
      %v1483 = vadd.f32 %v1409, %v1480
      %1484 = vst.msk [vmem:[%s1402] sm:$0xff] %vm482, %v1483
      %1485 = vst.msk [vmem:[%s1377] sm:$0xff] %vm587, %v1382
      // Predicated region
      $region41: #{adaptive_cache_attention_forward.8} parent=35 // pred_check
        %p1486 = pneg %p344
      $region42: #{adaptive_cache_attention_forward.8} parent=35 // pred_check_branch
        %1488 = sbr.rel (%p1486) target = $region44
      $region43: #{adaptive_cache_attention_forward.8} parent=35 // pred_region
        %v1489 = vld [vmem:[#allocation3] sm:$0xff]
        %v1490 = vrcp.pop %v1489
        %v1491 = vld [vmem:[#allocation4] sm:$0xff]
        %1493 = vset.pattern.permute.xlu0 0
        %1494 = vperm.xlu0 %1493, %v1490
        %v1495 = vpop.permute.xlu0 %1494
        %v1497 = vmul.f32 %v1491, %v1495
        %v1499 = vcombine.high %v1497, %v1497
        %v1501 = vunpack.c.l.s4 1966171168
        %v1502 = vunpack.c.0.s8 %v1501
        %v1503 = vlaneseq
        %v1504 = vshrl.u32 %v1503, 7
        %v1505 = vsub.s32 %v1502, %v1504
        %v1506 = vrot.slane %v1497, %v1505
        %v1508 = vunpack.c.l.s4 1966171168
        %v1509 = vunpack.c.0.s8 %v1508
        %v1510 = vlaneseq
        %v1511 = vshrl.u32 %v1510, 7
        %v1512 = vsub.s32 %v1509, %v1511
        %v1513 = vrot.slane %v1499, %v1512
        %v1514 = vcombine.high %v1506, %v1506
        %v1515 = vcombine.high %v1513, %v1513
        %v1517 = vunpack.c.l.s4 1966171168
        %v1518 = vunpack.c.0.s8 %v1517
        %v1519 = vlaneseq
        %v1520 = vshrl.u32 %v1519, 7
        %v1521 = vsub.s32 %v1518, %v1520
        %v1522 = vrot.slane %v1506, %v1521
        %v1524 = vunpack.c.l.s4 1966171168
        %v1525 = vunpack.c.0.s8 %v1524
        %v1526 = vlaneseq
        %v1527 = vshrl.u32 %v1526, 7
        %v1528 = vsub.s32 %v1525, %v1527
        %v1529 = vrot.slane %v1513, %v1528
        %v1531 = vunpack.c.l.s4 1966171168
        %v1532 = vunpack.c.0.s8 %v1531
        %v1533 = vlaneseq
        %v1534 = vshrl.u32 %v1533, 7
        %v1535 = vsub.s32 %v1532, %v1534
        %v1536 = vrot.slane %v1514, %v1535
        %v1538 = vunpack.c.l.s4 1966171168
        %v1539 = vunpack.c.0.s8 %v1538
        %v1540 = vlaneseq
        %v1541 = vshrl.u32 %v1540, 7
        %v1542 = vsub.s32 %v1539, %v1541
        %v1543 = vrot.slane %v1515, %v1542
        %v1544 = vcombine.high %v1522, %v1522
        %v1545 = vcombine.high %v1529, %v1529
        %v1546 = vcombine.high %v1536, %v1536
        %v1547 = vcombine.high %v1543, %v1543
        %vm1556 = vcmask 57344
        %1557 = vst.msk [vmem:[%s342] sm:$0x1] %vm1556, %v1522
        %1558 = vst.msk [vmem:[%s342 + $0x4] sm:$0x1] %vm1556, %v1536
        %1559 = vst.msk [vmem:[%s342 + $0x8] sm:$0x1] %vm1556, %v1544
        %1560 = vst.msk [vmem:[%s342 + $0xc] sm:$0x1] %vm1556, %v1546
        %1561 = vst.msk [vmem:[%s342 + $0x10] sm:$0x1] %vm1556, %v1529
        %1562 = vst.msk [vmem:[%s342 + $0x14] sm:$0x1] %vm1556, %v1543
        %1563 = vst.msk [vmem:[%s342 + $0x18] sm:$0x1] %vm1556, %v1545
        %1564 = vst.msk [vmem:[%s342 + $0x1c] sm:$0x1] %vm1556, %v1547
        %v1565 = vld [vmem:[%s840] sm:$0xff]
        %v1566 = vrcp.pop %v1565
        %v1567 = vld [vmem:[%s848] sm:$0xff]
        %1569 = vset.pattern.permute.xlu0 0
        %1570 = vperm.xlu0 %1569, %v1566
        %v1571 = vpop.permute.xlu0 %1570
        %v1573 = vmul.f32 %v1567, %v1571
        %v1575 = vcombine.high %v1573, %v1573
        %v1577 = vunpack.c.l.s4 1966171168
        %v1578 = vunpack.c.0.s8 %v1577
        %v1579 = vlaneseq
        %v1580 = vshrl.u32 %v1579, 7
        %v1581 = vsub.s32 %v1578, %v1580
        %v1582 = vrot.slane %v1573, %v1581
        %v1584 = vunpack.c.l.s4 1966171168
        %v1585 = vunpack.c.0.s8 %v1584
        %v1586 = vlaneseq
        %v1587 = vshrl.u32 %v1586, 7
        %v1588 = vsub.s32 %v1585, %v1587
        %v1589 = vrot.slane %v1575, %v1588
        %v1590 = vcombine.high %v1582, %v1582
        %v1591 = vcombine.high %v1589, %v1589
        %v1593 = vunpack.c.l.s4 1966171168
        %v1594 = vunpack.c.0.s8 %v1593
        %v1595 = vlaneseq
        %v1596 = vshrl.u32 %v1595, 7
        %v1597 = vsub.s32 %v1594, %v1596
        %v1598 = vrot.slane %v1582, %v1597
        %v1600 = vunpack.c.l.s4 1966171168
        %v1601 = vunpack.c.0.s8 %v1600
        %v1602 = vlaneseq
        %v1603 = vshrl.u32 %v1602, 7
        %v1604 = vsub.s32 %v1601, %v1603
        %v1605 = vrot.slane %v1589, %v1604
        %v1607 = vunpack.c.l.s4 1966171168
        %v1608 = vunpack.c.0.s8 %v1607
        %v1609 = vlaneseq
        %v1610 = vshrl.u32 %v1609, 7
        %v1611 = vsub.s32 %v1608, %v1610
        %v1612 = vrot.slane %v1590, %v1611
        %v1614 = vunpack.c.l.s4 1966171168
        %v1615 = vunpack.c.0.s8 %v1614
        %v1616 = vlaneseq
        %v1617 = vshrl.u32 %v1616, 7
        %v1618 = vsub.s32 %v1615, %v1617
        %v1619 = vrot.slane %v1591, %v1618
        %v1620 = vcombine.high %v1598, %v1598
        %v1621 = vcombine.high %v1605, %v1605
        %v1622 = vcombine.high %v1612, %v1612
        %v1623 = vcombine.high %v1619, %v1619
        %1632 = vst.msk [vmem:[%s342 + $0x1] sm:$0x1] %vm1556, %v1598
        %1633 = vst.msk [vmem:[%s342 + $0x5] sm:$0x1] %vm1556, %v1612
        %1634 = vst.msk [vmem:[%s342 + $0x9] sm:$0x1] %vm1556, %v1620
        %1635 = vst.msk [vmem:[%s342 + $0xd] sm:$0x1] %vm1556, %v1622
        %1636 = vst.msk [vmem:[%s342 + $0x11] sm:$0x1] %vm1556, %v1605
        %1637 = vst.msk [vmem:[%s342 + $0x15] sm:$0x1] %vm1556, %v1619
        %1638 = vst.msk [vmem:[%s342 + $0x19] sm:$0x1] %vm1556, %v1621
        %1639 = vst.msk [vmem:[%s342 + $0x1d] sm:$0x1] %vm1556, %v1623
        %v1640 = vld [vmem:[%s1134] sm:$0xff]
        %v1641 = vrcp.pop %v1640
        %v1642 = vld [vmem:[%s1142] sm:$0xff]
        %1644 = vset.pattern.permute.xlu0 0
        %1645 = vperm.xlu0 %1644, %v1641
        %v1646 = vpop.permute.xlu0 %1645
        %v1648 = vmul.f32 %v1642, %v1646
        %v1650 = vcombine.high %v1648, %v1648
        %v1652 = vunpack.c.l.s4 1966171168
        %v1653 = vunpack.c.0.s8 %v1652
        %v1654 = vlaneseq
        %v1655 = vshrl.u32 %v1654, 7
        %v1656 = vsub.s32 %v1653, %v1655
        %v1657 = vrot.slane %v1648, %v1656
        %v1659 = vunpack.c.l.s4 1966171168
        %v1660 = vunpack.c.0.s8 %v1659
        %v1661 = vlaneseq
        %v1662 = vshrl.u32 %v1661, 7
        %v1663 = vsub.s32 %v1660, %v1662
        %v1664 = vrot.slane %v1650, %v1663
        %v1665 = vcombine.high %v1657, %v1657
        %v1666 = vcombine.high %v1664, %v1664
        %v1668 = vunpack.c.l.s4 1966171168
        %v1669 = vunpack.c.0.s8 %v1668
        %v1670 = vlaneseq
        %v1671 = vshrl.u32 %v1670, 7
        %v1672 = vsub.s32 %v1669, %v1671
        %v1673 = vrot.slane %v1657, %v1672
        %v1675 = vunpack.c.l.s4 1966171168
        %v1676 = vunpack.c.0.s8 %v1675
        %v1677 = vlaneseq
        %v1678 = vshrl.u32 %v1677, 7
        %v1679 = vsub.s32 %v1676, %v1678
        %v1680 = vrot.slane %v1664, %v1679
        %v1682 = vunpack.c.l.s4 1966171168
        %v1683 = vunpack.c.0.s8 %v1682
        %v1684 = vlaneseq
        %v1685 = vshrl.u32 %v1684, 7
        %v1686 = vsub.s32 %v1683, %v1685
        %v1687 = vrot.slane %v1665, %v1686
        %v1689 = vunpack.c.l.s4 1966171168
        %v1690 = vunpack.c.0.s8 %v1689
        %v1691 = vlaneseq
        %v1692 = vshrl.u32 %v1691, 7
        %v1693 = vsub.s32 %v1690, %v1692
        %v1694 = vrot.slane %v1666, %v1693
        %v1695 = vcombine.high %v1673, %v1673
        %v1696 = vcombine.high %v1680, %v1680
        %v1697 = vcombine.high %v1687, %v1687
        %v1698 = vcombine.high %v1694, %v1694
        %1707 = vst.msk [vmem:[%s342 + $0x2] sm:$0x1] %vm1556, %v1673
        %1708 = vst.msk [vmem:[%s342 + $0x6] sm:$0x1] %vm1556, %v1687
        %1709 = vst.msk [vmem:[%s342 + $0xa] sm:$0x1] %vm1556, %v1695
        %1710 = vst.msk [vmem:[%s342 + $0xe] sm:$0x1] %vm1556, %v1697
        %1711 = vst.msk [vmem:[%s342 + $0x12] sm:$0x1] %vm1556, %v1680
        %1712 = vst.msk [vmem:[%s342 + $0x16] sm:$0x1] %vm1556, %v1694
        %1713 = vst.msk [vmem:[%s342 + $0x1a] sm:$0x1] %vm1556, %v1696
        %1714 = vst.msk [vmem:[%s342 + $0x1e] sm:$0x1] %vm1556, %v1698
        %v1715 = vld [vmem:[%s1394] sm:$0xff]
        %v1716 = vrcp.pop %v1715
        %v1717 = vld [vmem:[%s1402] sm:$0xff]
        %1719 = vset.pattern.permute.xlu0 0
        %1720 = vperm.xlu0 %1719, %v1716
        %v1721 = vpop.permute.xlu0 %1720
        %v1723 = vmul.f32 %v1717, %v1721
        %v1725 = vcombine.high %v1723, %v1723
        %v1727 = vunpack.c.l.s4 1966171168
        %v1728 = vunpack.c.0.s8 %v1727
        %v1729 = vlaneseq
        %v1730 = vshrl.u32 %v1729, 7
        %v1731 = vsub.s32 %v1728, %v1730
        %v1732 = vrot.slane %v1723, %v1731
        %v1734 = vunpack.c.l.s4 1966171168
        %v1735 = vunpack.c.0.s8 %v1734
        %v1736 = vlaneseq
        %v1737 = vshrl.u32 %v1736, 7
        %v1738 = vsub.s32 %v1735, %v1737
        %v1739 = vrot.slane %v1725, %v1738
        %v1740 = vcombine.high %v1732, %v1732
        %v1741 = vcombine.high %v1739, %v1739
        %v1743 = vunpack.c.l.s4 1966171168
        %v1744 = vunpack.c.0.s8 %v1743
        %v1745 = vlaneseq
        %v1746 = vshrl.u32 %v1745, 7
        %v1747 = vsub.s32 %v1744, %v1746
        %v1748 = vrot.slane %v1732, %v1747
        %v1750 = vunpack.c.l.s4 1966171168
        %v1751 = vunpack.c.0.s8 %v1750
        %v1752 = vlaneseq
        %v1753 = vshrl.u32 %v1752, 7
        %v1754 = vsub.s32 %v1751, %v1753
        %v1755 = vrot.slane %v1739, %v1754
        %v1757 = vunpack.c.l.s4 1966171168
        %v1758 = vunpack.c.0.s8 %v1757
        %v1759 = vlaneseq
        %v1760 = vshrl.u32 %v1759, 7
        %v1761 = vsub.s32 %v1758, %v1760
        %v1762 = vrot.slane %v1740, %v1761
        %v1764 = vunpack.c.l.s4 1966171168
        %v1765 = vunpack.c.0.s8 %v1764
        %v1766 = vlaneseq
        %v1767 = vshrl.u32 %v1766, 7
        %v1768 = vsub.s32 %v1765, %v1767
        %v1769 = vrot.slane %v1741, %v1768
        %v1770 = vcombine.high %v1748, %v1748
        %v1771 = vcombine.high %v1755, %v1755
        %v1772 = vcombine.high %v1762, %v1762
        %v1773 = vcombine.high %v1769, %v1769
        %1782 = vst.msk [vmem:[%s342 + $0x3] sm:$0x1] %vm1556, %v1748
        %1783 = vst.msk [vmem:[%s342 + $0x7] sm:$0x1] %vm1556, %v1762
        %1784 = vst.msk [vmem:[%s342 + $0xb] sm:$0x1] %vm1556, %v1770
        %1785 = vst.msk [vmem:[%s342 + $0xf] sm:$0x1] %vm1556, %v1772
        %1786 = vst.msk [vmem:[%s342 + $0x13] sm:$0x1] %vm1556, %v1755
        %1787 = vst.msk [vmem:[%s342 + $0x17] sm:$0x1] %vm1556, %v1769
        %1788 = vst.msk [vmem:[%s342 + $0x1b] sm:$0x1] %vm1556, %v1771
        %1789 = vst.msk [vmem:[%s342 + $0x1f] sm:$0x1] %vm1556, %v1773
      $region44: #{adaptive_cache_attention_forward.8} parent=35 // pred_fallthru
        _
      %s1790 = smul.u32 8, %s21
      %p1791 = scmp.lt.s32.totalorder %s20, 1
      %s1792 = scalar_select %p1791, %s20, 1
      %p1793 = scmp.lt.s32.totalorder %s1790, 7
      %s1794 = scalar_select %p1793, %s1790, 7
      %s1795 = smul.addr %s1792, 8
      %s1796 = sadd.s32 %s1794, %s1795
      %s1797 = smul.addr %s1796, 4
      %s1798 = scalar_lea.vmem %s4, %s1797
      // Predicated region
      $region45: #{adaptive_cache_attention_forward.8} parent=35 // pred_check
        %p1799 = pneg %p166
      $region46: #{adaptive_cache_attention_forward.8} parent=35 // pred_check_branch
        %1801 = sbr.rel (%p1799) target = $region48
      $region47: #{adaptive_cache_attention_forward.8} parent=35 // pred_region
        %s1802 = smul.u32 8, %s21
      $region48: #{adaptive_cache_attention_forward.8} parent=35 // pred_fallthru
        _
    $region36: #{adaptive_cache_attention_forward.8} parent=5 // pred_fallthru
      _
    %p1803 = scmp.le.s32.totalorder 2, %s10
    // Predicated region
    $region49: #{adaptive_cache_attention_forward.8} parent=5 // pred_check
      %p1804 = pneg %p1803
    $region50: #{adaptive_cache_attention_forward.8} parent=5 // pred_check_branch
      %1806 = sbr.rel (%p1804) target = $region52
    $region51: #{adaptive_cache_attention_forward.8} parent=5 // pred_region
      %s1807 = ssub.s32 %s10, 2
      // Predicated region
      $region53: #{adaptive_cache_attention_forward.8} parent=51 // pred_check
        %p1808 = pneg %p172
      $region54: #{adaptive_cache_attention_forward.8} parent=51 // pred_check_branch
        %1810 = sbr.rel (%p1808) target = $region56
      $region55: #{adaptive_cache_attention_forward.8} parent=51 // pred_region
        %s1811 = smul.u32 8, %s24
        %p1812 = scmp.lt.s32.totalorder %s23, 1
        %s1813 = scalar_select %p1812, %s23, 1
        %p1814 = scmp.lt.s32.totalorder %s1811, 7
        %s1815 = scalar_select %p1814, %s1811, 7
        %s1816 = smul.addr %s1813, 8
        %s1817 = sadd.s32 %s1815, %s1816
        %s1818 = smul.addr %s1817, 4
        %s1819 = scalar_lea.vmem %s4, %s1818
      $region56: #{adaptive_cache_attention_forward.8} parent=51 // pred_fallthru
        _
    $region52: #{adaptive_cache_attention_forward.8} parent=5 // pred_fallthru
      _
  $region6: #{adaptive_cache_attention_forward.8} parent=0 // loop_footer
    %s14 = sadd.s32 1, %s10
  $region7: #{adaptive_cache_attention_forward.8} parent=0 // loop_footer_branch
    %9 = sbr.rel target = $region3
  $region8: #{adaptive_cache_attention_forward.8} parent=0 // loop_exit
    _

</llo_original>
